<compile_context>
chip_gen: v7x
topology: tpu7x:2x2x1
jax: 0.10.0
libtpu: 0.0.40
codegen_flags: <defaults>
</compile_context>

<pallas_src>
import functools

import numpy as np

import jax
import jax.numpy as jnp
from jax.experimental import pallas as pl
from jax.experimental.pallas import tpu as pltpu


# ============================================================================
# Host-side constant builders (run ONCE inside prepare_params, never per call)
# ============================================================================

def _row_shift_mats(batch, h):
    """(2, rows, rows): [0] reads row i-1, [1] reads row i+1; rows that would
    cross an image boundary are zeroed (== the conv's zero padding)."""
    rows = batch * h
    s = np.zeros((2, rows, rows), np.float32)
    for r in range(rows):
        if r % h != 0:
            s[0, r, r - 1] = 1.0
        if r % h != h - 1:
            s[1, r, r + 1] = 1.0
    return s


def _conv_mix_mats(w, width):
    """(3, cin*W, cout*W) banded channel-mix matrices for a 3x3/pad-1 conv.

    m[ky, ci*W + j1, co*W + j2] = w[co, ci, ky, (j1 - j2) + 1]  for |j1-j2| <= 1,
    so (row_shifted_x @ m[ky]) applies the three kx taps (with zero padding at
    the left/right image edge) and the cin->cout mix in one lane-dense matmul.
    """
    cout, cin = w.shape[0], w.shape[1]
    m = np.zeros((3, cin * width, cout * width), np.float32)
    for ky in range(3):
        for ci in range(cin):
            for co in range(cout):
                for j2 in range(width):
                    for off in (-1, 0, 1):
                        j1 = j2 + off
                        if 0 <= j1 < width:
                            m[ky, ci * width + j1, co * width + j2] = w[co, ci, ky, off + 1]
    return m


def _pool_mats(batch, h, w, c):
    """MaxPool2d(2,2) as 0/1 lane-decimation (2, C*W, C*W/2) and row-decimation
    (2, rows/2, rows) matrices; max() of the two decimated copies == 2x2 max."""
    rows = batch * h
    dcol = np.zeros((2, c * w, c * (w // 2)), np.float32)
    for d in range(2):
        for ci in range(c):
            for j in range(w // 2):
                dcol[d, ci * w + 2 * j + d, ci * (w // 2) + j] = 1.0
    drow = np.zeros((2, rows // 2, rows), np.float32)
    for d in range(2):
        for r in range(rows // 2):
            drow[d, r, 2 * r + d] = 1.0
    return dcol, drow


def _deconv_mats(w, batch, h):
    """ConvTranspose2d(k=2, s=2): per-d1 lane-scatter mix matrices
    (2, cin*W, cout*2W) carrying the weights, plus per-d1 row scatters
    (2, batch*2H, batch*H)."""
    cin, cout = w.shape[0], w.shape[1]
    win, wout = h, 2 * h
    mcol = np.zeros((2, cin * win, cout * wout), np.float32)
    for d1 in range(2):
        for ci in range(cin):
            for co in range(cout):
                for j in range(win):
                    for d2 in range(2):
                        mcol[d1, ci * win + j, co * wout + 2 * j + d2] = w[ci, co, d1, d2]
    urow = np.zeros((2, batch * 2 * h, batch * h), np.float32)
    for d1 in range(2):
        for b in range(batch):
            for i in range(h):
                urow[d1, b * 2 * h + 2 * i + d1, b * h + i] = 1.0
    return mcol, urow


# Fixed argument order of the precomputed constants passed to the kernel.
_PARAM_ORDER = ("c1s", "c1m", "c1b", "p1c", "p1r",
                "c2s", "c2m", "c2b", "p2c", "p2r",
                "c3s", "c3m", "c3b",
                "f1w", "f1b", "f2w", "f2b",
                "d1m", "d1b",
                "d2m", "d2r", "d2b",
                "d3m", "d3r", "d3b")


def prepare_params(raw, batch):
    """One-time weight/layout preparation for a per-grid-step batch of `batch`.

    Folds all conv / pool / deconv structure and weights into lane-dense
    matrices so the kernel only issues slab matmuls, adds and ReLUs.
    """
    f32 = lambda a: np.asarray(a, np.float32)

    p = {}
    # conv1 (1->4, 28x28) + pool1
    p["c1s"] = _row_shift_mats(batch, 28)
    p["c1m"] = _conv_mix_mats(f32(raw["conv1_w"]), 28)
    p["c1b"] = np.repeat(f32(raw["conv1_b"]), 28)[None, :]
    p["p1c"], p["p1r"] = _pool_mats(batch, 28, 28, 4)
    # conv2 (4->8, 14x14) + pool2
    p["c2s"] = _row_shift_mats(batch, 14)
    p["c2m"] = _conv_mix_mats(f32(raw["conv2_w"]), 14)
    p["c2b"] = np.repeat(f32(raw["conv2_b"]), 14)[None, :]
    p["p2c"], p["p2r"] = _pool_mats(batch, 14, 14, 8)
    # conv3 (8->8, 7x7)
    p["c3s"] = _row_shift_mats(batch, 7)
    p["c3m"] = _conv_mix_mats(f32(raw["conv3_w"]), 7)
    p["c3b"] = np.repeat(f32(raw["conv3_b"]), 7)[None, :]
    # fc1 / fc2 weights as (7, 8*7) slab-layout planes (flat idx = c*49 + i*7 + j)
    p["f1w"] = f32(raw["fc1_w"]).reshape(2, 8, 7, 7).transpose(0, 2, 1, 3).reshape(2, 7, 56)
    p["f1b"] = f32(raw["fc1_b"]).reshape(1, 2)
    p["f2w"] = f32(raw["fc2_w"]).T.reshape(2, 8, 7, 7).transpose(0, 2, 1, 3).reshape(2, 7, 56)
    p["f2b"] = f32(raw["fc2_b"]).reshape(8, 7, 7).transpose(1, 0, 2).reshape(7, 56)
    # deconv1 (1x1, 8->8): block-diagonal channel mix
    p["d1m"] = np.kron(f32(raw["dc1_w"]).reshape(8, 8), np.eye(7, dtype=np.float32))
    p["d1b"] = np.repeat(f32(raw["dc1_b"]), 7)[None, :]
    # deconv2 (2x2/s2, 8->4), deconv3 (2x2/s2, 4->1)
    p["d2m"], p["d2r"] = _deconv_mats(f32(raw["dc2_w"]), batch, 7)
    p["d2b"] = np.repeat(f32(raw["dc2_b"]), 14)[None, :]
    p["d3m"], p["d3r"] = _deconv_mats(f32(raw["dc3_w"]), batch, 14)
    p["d3b"] = np.repeat(f32(raw["dc3_b"]), 28)[None, :]

    return {k: jnp.asarray(v, jnp.float32) for k, v in p.items()}


# ============================================================================
# The fused forward kernel (one grid step == one batch block)
# ============================================================================

def _chansmall_kernel(x_ref,
                      c1s, c1m, c1b, p1c, p1r,
                      c2s, c2m, c2b, p2c, p2r,
                      c3s, c3m, c3b,
                      f1w, f1b, f2w, f2b,
                      d1m, d1b,
                      d2m, d2r, d2b,
                      d3m, d3r, d3b,
                      o_ref, *, block_batch):
    def mm(a, b):
        return jnp.dot(a, b, preferred_element_type=jnp.float32)

    def conv3x3_relu(x, s_ref, m_ref, b_ref):
        # y = x[i-1] @ M0 + x[i] @ M1 + x[i+1] @ M2 + bias ; row shifts are
        # per-image (boundary rows zeroed); the kx taps, zero padding and the
        # channel mix all live inside the banded M matrices.
        x_up = mm(s_ref[0], x)
        x_dn = mm(s_ref[1], x)
        y = mm(x_up, m_ref[0]) + mm(x, m_ref[1]) + mm(x_dn, m_ref[2]) + b_ref[...]
        return jnp.maximum(y, 0.0)

    def maxpool2x2(x, pc_ref, pr_ref):
        cm = jnp.maximum(mm(x, pc_ref[0]), mm(x, pc_ref[1]))
        return jnp.maximum(mm(pr_ref[0], cm), mm(pr_ref[1], cm))

    # ------------------------------ encoder ------------------------------
    h = conv3x3_relu(x_ref[...], c1s, c1m, c1b)      # (B*28, 4*28)
    h = maxpool2x2(h, p1c, p1r)                      # (B*14, 4*14)
    h = conv3x3_relu(h, c2s, c2m, c2b)               # (B*14, 8*14)
    h = maxpool2x2(h, p2c, p2r)                      # (B*7,  8*7)
    h = conv3x3_relu(h, c3s, c3m, c3b)               # (B*7,  8*7)

    # -------------- bottleneck: fc1 -> ReLU -> fc2 -> ReLU ----------------
    # Per-image static slices (no block-extract matmuls); the loop is over the
    # small fixed block batch only — large total batch is handled by the grid.
    w1_0, w1_1 = f1w[0], f1w[1]                      # (7, 56) weight planes
    w2_0, w2_1 = f2w[0], f2w[1]
    b1 = f1b[...]                                    # (1, 2)
    b2 = f2b[...]                                    # (7, 56)
    blocks = []
    for b in range(block_batch):
        hb = h[b * 7:(b + 1) * 7, :]
        z0 = jnp.sum(jnp.sum(hb * w1_0, axis=1, keepdims=True), axis=0, keepdims=True)
        z1 = jnp.sum(jnp.sum(hb * w1_1, axis=1, keepdims=True), axis=0, keepdims=True)
        z0 = jnp.maximum(z0 + b1[:, 0:1], 0.0)       # (1,1) latent, ReLU between
        z1 = jnp.maximum(z1 + b1[:, 1:2], 0.0)       # encode() and decode()
        blocks.append(jnp.maximum(z0 * w2_0 + z1 * w2_1 + b2, 0.0))
    h = blocks[0] if block_batch == 1 else jnp.concatenate(blocks, axis=0)

    # ------------------------------ decoder ------------------------------
    h = jnp.maximum(mm(h, d1m[...]) + d1b[...], 0.0)                # deconv1 1x1
    t0, t1 = mm(h, d2m[0]), mm(h, d2m[1])                           # deconv2 2x2/s2
    h = jnp.maximum(mm(d2r[0], t0) + mm(d2r[1], t1) + d2b[...], 0.0)
    t0, t1 = mm(h, d3m[0]), mm(h, d3m[1])                           # deconv3 2x2/s2
    o_ref[...] = mm(d3r[0], t0) + mm(d3r[1], t1) + d3b[...]         # no ReLU


def chan_small_forward(params, x):
    """ChanSmall forward.  x is NCHW (B, 1, 28, 28); params from prepare_params.

    Runs a 1-D "parallel" grid over batch blocks of size block_batch (the batch
    the params were prepared for) so large batches shard across TensorCores
    (v7x); at B == block_batch this is a single grid step.
    """
    bsz = x.shape[0]
    assert x.shape[1:] == (1, 28, 28), x.shape
    block_batch = params["c1s"].shape[1] // 28
    assert bsz % block_batch == 0, (bsz, block_batch)
    nblk = bsz // block_batch

    # (B,1,28,28) row-major -> (B*28, 28): pure metadata reshape, no copy.
    xp = x.astype(jnp.float32).reshape(bsz * 28, 28)

    def io_spec():
        return pl.BlockSpec((block_batch * 28, 28), lambda i: (i, 0))

    def const_spec(a):
        nd = a.ndim
        return pl.BlockSpec(a.shape, lambda i, nd=nd: (0,) * nd)

    consts = [params[k] for k in _PARAM_ORDER]

    out = pl.pallas_call(
        functools.partial(_chansmall_kernel, block_batch=block_batch),
        out_shape=jax.ShapeDtypeStruct((bsz * 28, 28), jnp.float32),
        grid=(nblk,),
        in_specs=[io_spec()] + [const_spec(a) for a in consts],
        out_specs=io_spec(),
        compiler_params=pltpu.CompilerParams(
            dimension_semantics=("parallel",)),
        cost_estimate=pl.CostEstimate(
            flops=3_400_000 * bsz,
            transcendentals=0,
            bytes_accessed=2 * xp.size * 4 + sum(int(a.size) for a in consts) * 4),
    )(xp, *consts)

    # (B*28, 28) row-major == NCHW (B, 1, 28, 28): free reshape.
    return out.reshape(bsz, 1, 28, 28)


# ============================================================================
# Raw torch-shaped parameter init (deterministic)
# ============================================================================

def init_params(key):
    def make(k, shape, fan_in):
        return (jax.random.uniform(k, shape, jnp.float32, -1.0, 1.0)
                / jnp.sqrt(jnp.float32(fan_in)))

    ks = jax.random.split(key, 16)
    return {
        "conv1_w": make(ks[0], (4, 1, 3, 3), 9),    "conv1_b": make(ks[1], (4,), 9),
        "conv2_w": make(ks[2], (8, 4, 3, 3), 36),   "conv2_b": make(ks[3], (8,), 36),
        "conv3_w": make(ks[4], (8, 8, 3, 3), 72),   "conv3_b": make(ks[5], (8,), 72),
        "fc1_w":   make(ks[6], (2, 392), 392),      "fc1_b":   make(ks[7], (2,), 392),
        "fc2_w":   make(ks[8], (392, 2), 2),        "fc2_b":   make(ks[9], (392,), 2),
        "dc1_w":   make(ks[10], (8, 8, 1, 1), 8),   "dc1_b":   make(ks[11], (8,), 8),
        "dc2_w":   make(ks[12], (8, 4, 2, 2), 32),  "dc2_b":   make(ks[13], (4,), 32),
        "dc3_w":   make(ks[14], (4, 1, 2, 2), 16),  "dc3_b":   make(ks[15], (1,), 16),
    }


# ============================================================================
# Pure-JAX reference (mirrors the PyTorch module) for the correctness check
# ============================================================================

def _reference_forward(raw, x):
    def conv3x3_relu(x, w, b):
        B, C, H, W = x.shape
        cout = w.shape[0]
        xp = jnp.pad(x, ((0, 0), (0, 0), (1, 1), (1, 1)))
        cols = [xp[:, :, di:di + H, dj:dj + W] for di in range(3) for dj in range(3)]
        p = jnp.stack(cols, axis=2).transpose(0, 3, 4, 1, 2).reshape(B * H * W, C * 9)
        y = p @ w.reshape(cout, C * 9).T + b
        y = jnp.maximum(y, 0.0)
        return y.reshape(B, H, W, cout).transpose(0, 3, 1, 2)

    def pool(x):
        return jnp.maximum(
            jnp.maximum(x[:, :, 0::2, 0::2], x[:, :, 0::2, 1::2]),
            jnp.maximum(x[:, :, 1::2, 0::2], x[:, :, 1::2, 1::2]))

    def deconv2x2_s2(x, w, b, relu):
        B, C, H, W = x.shape
        cout = w.shape[1]
        y = jnp.einsum('bcij,codl->boidjl', x, w).reshape(B, cout, 2 * H, 2 * W)
        y = y + b[None, :, None, None]
        return jnp.maximum(y, 0.0) if relu else y

    B = x.shape[0]
    h = pool(conv3x3_relu(x, raw["conv1_w"], raw["conv1_b"]))
    h = pool(conv3x3_relu(h, raw["conv2_w"], raw["conv2_b"]))
    h = conv3x3_relu(h, raw["conv3_w"], raw["conv3_b"])
    z = h.reshape(B, 392) @ raw["fc1_w"].T + raw["fc1_b"]
    d = jnp.maximum(jnp.maximum(z, 0.0) @ raw["fc2_w"].T + raw["fc2_b"], 0.0)
    d = d.reshape(B, 8, 7, 7)
    d = jnp.maximum(jnp.einsum('bcij,co->boij', d, raw["dc1_w"].reshape(8, 8))
                    + raw["dc1_b"][None, :, None, None], 0.0)
    d = deconv2x2_s2(d, raw["dc2_w"], raw["dc2_b"], relu=True)
    d = deconv2x2_s2(d, raw["dc3_w"], raw["dc3_b"], relu=False)
    return d


if __name__ == "__main__":
    key = jax.random.PRNGKey(0)
    k_x, k_p = jax.random.split(key)
    raw = init_params(k_p)

    # One-time parameter / constant preparation for a batch block of 2 images.
    params = prepare_params(raw, batch=2)
    fwd = jax.jit(chan_small_forward)

    # ---- B=2: single grid step ----
    x = jax.random.normal(k_x, (2, 1, 28, 28), jnp.float32)
    out = jax.block_until_ready(fwd(params, x))
    assert out.shape == (2, 1, 28, 28), out.shape
    assert out.dtype == jnp.float32
    ref = _reference_forward(raw, x)
    err = float(jnp.max(jnp.abs(out - ref)))
    # Tolerance covers MXU f32 matmul precision vs the XLA reference; any
    # layout / indexing bug would produce O(1) errors.
    assert jnp.allclose(out, ref, atol=1e-2, rtol=1e-2), f"max_abs_err={err}"

    # ---- B=4 with block_batch=2: exercises the parallel batch grid (2 steps) ----
    x4 = jax.random.normal(k_x, (4, 1, 28, 28), jnp.float32)
    out4 = jax.block_until_ready(fwd(params, x4))
    ref4 = _reference_forward(raw, x4)
    err4 = float(jnp.max(jnp.abs(out4 - ref4)))
    assert jnp.allclose(out4, ref4, atol=1e-2, rtol=1e-2), f"max_abs_err={err4}"

    print("KERNEL_OK")
</pallas_src>

<mosaic_0001>
module attributes {stable_mosaic.version = 11 : i64} {
  func.func @_chansmall_kernel(%arg0: i32, %arg1: memref<56x28xf32, #tpu.memory_space<vmem>>, %arg2: memref<2x56x56xf32, #tpu.memory_space<vmem>>, %arg3: memref<3x28x112xf32, #tpu.memory_space<vmem>>, %arg4: memref<1x112xf32, #tpu.memory_space<vmem>>, %arg5: memref<2x112x56xf32, #tpu.memory_space<vmem>>, %arg6: memref<2x28x56xf32, #tpu.memory_space<vmem>>, %arg7: memref<2x28x28xf32, #tpu.memory_space<vmem>>, %arg8: memref<3x56x112xf32, #tpu.memory_space<vmem>>, %arg9: memref<1x112xf32, #tpu.memory_space<vmem>>, %arg10: memref<2x112x56xf32, #tpu.memory_space<vmem>>, %arg11: memref<2x14x28xf32, #tpu.memory_space<vmem>>, %arg12: memref<2x14x14xf32, #tpu.memory_space<vmem>>, %arg13: memref<3x56x56xf32, #tpu.memory_space<vmem>>, %arg14: memref<1x56xf32, #tpu.memory_space<vmem>>, %arg15: memref<2x7x56xf32, #tpu.memory_space<vmem>>, %arg16: memref<1x2xf32, #tpu.memory_space<vmem>>, %arg17: memref<2x7x56xf32, #tpu.memory_space<vmem>>, %arg18: memref<7x56xf32, #tpu.memory_space<vmem>>, %arg19: memref<56x56xf32, #tpu.memory_space<vmem>>, %arg20: memref<1x56xf32, #tpu.memory_space<vmem>>, %arg21: memref<2x56x56xf32, #tpu.memory_space<vmem>>, %arg22: memref<2x28x14xf32, #tpu.memory_space<vmem>>, %arg23: memref<1x56xf32, #tpu.memory_space<vmem>>, %arg24: memref<2x56x28xf32, #tpu.memory_space<vmem>>, %arg25: memref<2x56x28xf32, #tpu.memory_space<vmem>>, %arg26: memref<1x28xf32, #tpu.memory_space<vmem>>, %arg27: memref<56x28xf32, #tpu.memory_space<vmem>>) attributes {dimension_semantics = [#tpu.dimension_semantics<parallel>], iteration_bounds = array<i64: 1>, scalar_prefetch = 0 : i64, scratch_operands = 0 : i64, tpu.core_type = #tpu.core_type<tc>, window_params = [{transform_indices = @transform_0, window_bounds = array<i64: 56, 28>}, {pipeline_mode = #tpu.pipeline_mode<synchronous>, transform_indices = @transform_1, window_bounds = array<i64: 2, 56, 56>}, {pipeline_mode = #tpu.pipeline_mode<synchronous>, transform_indices = @transform_2, window_bounds = array<i64: 3, 28, 112>}, {pipeline_mode = #tpu.pipeline_mode<synchronous>, transform_indices = @transform_3, window_bounds = array<i64: 1, 112>}, {pipeline_mode = #tpu.pipeline_mode<synchronous>, transform_indices = @transform_4, window_bounds = array<i64: 2, 112, 56>}, {pipeline_mode = #tpu.pipeline_mode<synchronous>, transform_indices = @transform_5, window_bounds = array<i64: 2, 28, 56>}, {pipeline_mode = #tpu.pipeline_mode<synchronous>, transform_indices = @transform_6, window_bounds = array<i64: 2, 28, 28>}, {pipeline_mode = #tpu.pipeline_mode<synchronous>, transform_indices = @transform_7, window_bounds = array<i64: 3, 56, 112>}, {pipeline_mode = #tpu.pipeline_mode<synchronous>, transform_indices = @transform_8, window_bounds = array<i64: 1, 112>}, {pipeline_mode = #tpu.pipeline_mode<synchronous>, transform_indices = @transform_9, window_bounds = array<i64: 2, 112, 56>}, {pipeline_mode = #tpu.pipeline_mode<synchronous>, transform_indices = @transform_10, window_bounds = array<i64: 2, 14, 28>}, {pipeline_mode = #tpu.pipeline_mode<synchronous>, transform_indices = @transform_11, window_bounds = array<i64: 2, 14, 14>}, {pipeline_mode = #tpu.pipeline_mode<synchronous>, transform_indices = @transform_12, window_bounds = array<i64: 3, 56, 56>}, {pipeline_mode = #tpu.pipeline_mode<synchronous>, transform_indices = @transform_13, window_bounds = array<i64: 1, 56>}, {pipeline_mode = #tpu.pipeline_mode<synchronous>, transform_indices = @transform_14, window_bounds = array<i64: 2, 7, 56>}, {pipeline_mode = #tpu.pipeline_mode<synchronous>, transform_indices = @transform_15, window_bounds = array<i64: 1, 2>}, {pipeline_mode = #tpu.pipeline_mode<synchronous>, transform_indices = @transform_16, window_bounds = array<i64: 2, 7, 56>}, {pipeline_mode = #tpu.pipeline_mode<synchronous>, transform_indices = @transform_17, window_bounds = array<i64: 7, 56>}, {pipeline_mode = #tpu.pipeline_mode<synchronous>, transform_indices = @transform_18, window_bounds = array<i64: 56, 56>}, {pipeline_mode = #tpu.pipeline_mode<synchronous>, transform_indices = @transform_19, window_bounds = array<i64: 1, 56>}, {pipeline_mode = #tpu.pipeline_mode<synchronous>, transform_indices = @transform_20, window_bounds = array<i64: 2, 56, 56>}, {pipeline_mode = #tpu.pipeline_mode<synchronous>, transform_indices = @transform_21, window_bounds = array<i64: 2, 28, 14>}, {pipeline_mode = #tpu.pipeline_mode<synchronous>, transform_indices = @transform_22, window_bounds = array<i64: 1, 56>}, {pipeline_mode = #tpu.pipeline_mode<synchronous>, transform_indices = @transform_23, window_bounds = array<i64: 2, 56, 28>}, {pipeline_mode = #tpu.pipeline_mode<synchronous>, transform_indices = @transform_24, window_bounds = array<i64: 2, 56, 28>}, {pipeline_mode = #tpu.pipeline_mode<synchronous>, transform_indices = @transform_25, window_bounds = array<i64: 1, 28>}, {transform_indices = @transform_26, window_bounds = array<i64: 56, 28>}]} {
    %c0 = arith.constant 0 : index
    %c0_0 = arith.constant 0 : index
    %0 = vector.load %arg1[%c0, %c0_0] : memref<56x28xf32, #tpu.memory_space<vmem>>, vector<56x28xf32>
    %c0_1 = arith.constant 0 : index
    %c0_2 = arith.constant 0 : index
    %c0_3 = arith.constant 0 : index
    %1 = vector.load %arg2[%c0_1, %c0_2, %c0_3] : memref<2x56x56xf32, #tpu.memory_space<vmem>>, vector<1x56x56xf32>
    %2 = vector.shape_cast %1 : vector<1x56x56xf32> to vector<56x56xf32>
    %cst = arith.constant dense<0.000000e+00> : vector<56x28xf32>
    %3 = tpu.matmul %2, %0, %cst {dimension_numbers = #tpu.dot_dimension_numbers<[1], [0], [0], [1], [0, 0, 1, 1], [], []>} : vector<56x56xf32>, vector<56x28xf32>, vector<56x28xf32> -> vector<56x28xf32>
    %c1 = arith.constant 1 : index
    %c0_4 = arith.constant 0 : index
    %c0_5 = arith.constant 0 : index
    %4 = vector.load %arg2[%c1, %c0_4, %c0_5] : memref<2x56x56xf32, #tpu.memory_space<vmem>>, vector<1x56x56xf32>
    %5 = vector.shape_cast %4 : vector<1x56x56xf32> to vector<56x56xf32>
    %cst_6 = arith.constant dense<0.000000e+00> : vector<56x28xf32>
    %6 = tpu.matmul %5, %0, %cst_6 {dimension_numbers = #tpu.dot_dimension_numbers<[1], [0], [0], [1], [0, 0, 1, 1], [], []>} : vector<56x56xf32>, vector<56x28xf32>, vector<56x28xf32> -> vector<56x28xf32>
    %c0_7 = arith.constant 0 : index
    %c0_8 = arith.constant 0 : index
    %c0_9 = arith.constant 0 : index
    %7 = vector.load %arg3[%c0_7, %c0_8, %c0_9] : memref<3x28x112xf32, #tpu.memory_space<vmem>>, vector<1x28x112xf32>
    %8 = vector.shape_cast %7 : vector<1x28x112xf32> to vector<28x112xf32>
    %cst_10 = arith.constant dense<0.000000e+00> : vector<56x112xf32>
    %9 = tpu.matmul %3, %8, %cst_10 {dimension_numbers = #tpu.dot_dimension_numbers<[1], [0], [0], [1], [0, 0, 1, 1], [], []>} : vector<56x28xf32>, vector<28x112xf32>, vector<56x112xf32> -> vector<56x112xf32>
    %c1_11 = arith.constant 1 : index
    %c0_12 = arith.constant 0 : index
    %c0_13 = arith.constant 0 : index
    %10 = vector.load %arg3[%c1_11, %c0_12, %c0_13] : memref<3x28x112xf32, #tpu.memory_space<vmem>>, vector<1x28x112xf32>
    %11 = vector.shape_cast %10 : vector<1x28x112xf32> to vector<28x112xf32>
    %cst_14 = arith.constant dense<0.000000e+00> : vector<56x112xf32>
    %12 = tpu.matmul %0, %11, %cst_14 {dimension_numbers = #tpu.dot_dimension_numbers<[1], [0], [0], [1], [0, 0, 1, 1], [], []>} : vector<56x28xf32>, vector<28x112xf32>, vector<56x112xf32> -> vector<56x112xf32>
    %13 = arith.addf %9, %12 : vector<56x112xf32>
    %c2 = arith.constant 2 : index
    %c0_15 = arith.constant 0 : index
    %c0_16 = arith.constant 0 : index
    %14 = vector.load %arg3[%c2, %c0_15, %c0_16] : memref<3x28x112xf32, #tpu.memory_space<vmem>>, vector<1x28x112xf32>
    %15 = vector.shape_cast %14 : vector<1x28x112xf32> to vector<28x112xf32>
    %cst_17 = arith.constant dense<0.000000e+00> : vector<56x112xf32>
    %16 = tpu.matmul %6, %15, %cst_17 {dimension_numbers = #tpu.dot_dimension_numbers<[1], [0], [0], [1], [0, 0, 1, 1], [], []>} : vector<56x28xf32>, vector<28x112xf32>, vector<56x112xf32> -> vector<56x112xf32>
    %17 = arith.addf %13, %16 : vector<56x112xf32>
    %c0_18 = arith.constant 0 : index
    %c0_19 = arith.constant 0 : index
    %18 = vector.load %arg4[%c0_18, %c0_19] : memref<1x112xf32, #tpu.memory_space<vmem>>, vector<1x112xf32>
    %19 = vector.broadcast %18 : vector<1x112xf32> to vector<56x112xf32>
    %20 = arith.addf %17, %19 : vector<56x112xf32>
    %cst_20 = arith.constant 0.000000e+00 : f32
    %21 = vector.broadcast %cst_20 : f32 to vector<56x112xf32>
    %22 = arith.maximumf %20, %21 : vector<56x112xf32>
    %c0_21 = arith.constant 0 : index
    %c0_22 = arith.constant 0 : index
    %c0_23 = arith.constant 0 : index
    %23 = vector.load %arg5[%c0_21, %c0_22, %c0_23] : memref<2x112x56xf32, #tpu.memory_space<vmem>>, vector<1x112x56xf32>
    %24 = vector.shape_cast %23 : vector<1x112x56xf32> to vector<112x56xf32>
    %cst_24 = arith.constant dense<0.000000e+00> : vector<56x56xf32>
    %25 = tpu.matmul %22, %24, %cst_24 {dimension_numbers = #tpu.dot_dimension_numbers<[1], [0], [0], [1], [0, 0, 1, 1], [], []>} : vector<56x112xf32>, vector<112x56xf32>, vector<56x56xf32> -> vector<56x56xf32>
    %c1_25 = arith.constant 1 : index
    %c0_26 = arith.constant 0 : index
    %c0_27 = arith.constant 0 : index
    %26 = vector.load %arg5[%c1_25, %c0_26, %c0_27] : memref<2x112x56xf32, #tpu.memory_space<vmem>>, vector<1x112x56xf32>
    %27 = vector.shape_cast %26 : vector<1x112x56xf32> to vector<112x56xf32>
    %cst_28 = arith.constant dense<0.000000e+00> : vector<56x56xf32>
    %28 = tpu.matmul %22, %27, %cst_28 {dimension_numbers = #tpu.dot_dimension_numbers<[1], [0], [0], [1], [0, 0, 1, 1], [], []>} : vector<56x112xf32>, vector<112x56xf32>, vector<56x56xf32> -> vector<56x56xf32>
    %29 = arith.maximumf %25, %28 : vector<56x56xf32>
    %c0_29 = arith.constant 0 : index
    %c0_30 = arith.constant 0 : index
    %c0_31 = arith.constant 0 : index
    %30 = vector.load %arg6[%c0_29, %c0_30, %c0_31] : memref<2x28x56xf32, #tpu.memory_space<vmem>>, vector<1x28x56xf32>
    %31 = vector.shape_cast %30 : vector<1x28x56xf32> to vector<28x56xf32>
    %cst_32 = arith.constant dense<0.000000e+00> : vector<28x56xf32>
    %32 = tpu.matmul %31, %29, %cst_32 {dimension_numbers = #tpu.dot_dimension_numbers<[1], [0], [0], [1], [0, 0, 1, 1], [], []>} : vector<28x56xf32>, vector<56x56xf32>, vector<28x56xf32> -> vector<28x56xf32>
    %c1_33 = arith.constant 1 : index
    %c0_34 = arith.constant 0 : index
    %c0_35 = arith.constant 0 : index
    %33 = vector.load %arg6[%c1_33, %c0_34, %c0_35] : memref<2x28x56xf32, #tpu.memory_space<vmem>>, vector<1x28x56xf32>
    %34 = vector.shape_cast %33 : vector<1x28x56xf32> to vector<28x56xf32>
    %cst_36 = arith.constant dense<0.000000e+00> : vector<28x56xf32>
    %35 = tpu.matmul %34, %29, %cst_36 {dimension_numbers = #tpu.dot_dimension_numbers<[1], [0], [0], [1], [0, 0, 1, 1], [], []>} : vector<28x56xf32>, vector<56x56xf32>, vector<28x56xf32> -> vector<28x56xf32>
    %36 = arith.maximumf %32, %35 : vector<28x56xf32>
    %c0_37 = arith.constant 0 : index
    %c0_38 = arith.constant 0 : index
    %c0_39 = arith.constant 0 : index
    %37 = vector.load %arg7[%c0_37, %c0_38, %c0_39] : memref<2x28x28xf32, #tpu.memory_space<vmem>>, vector<1x28x28xf32>
    %38 = vector.shape_cast %37 : vector<1x28x28xf32> to vector<28x28xf32>
    %cst_40 = arith.constant dense<0.000000e+00> : vector<28x56xf32>
    %39 = tpu.matmul %38, %36, %cst_40 {dimension_numbers = #tpu.dot_dimension_numbers<[1], [0], [0], [1], [0, 0, 1, 1], [], []>} : vector<28x28xf32>, vector<28x56xf32>, vector<28x56xf32> -> vector<28x56xf32>
    %c1_41 = arith.constant 1 : index
    %c0_42 = arith.constant 0 : index
    %c0_43 = arith.constant 0 : index
    %40 = vector.load %arg7[%c1_41, %c0_42, %c0_43] : memref<2x28x28xf32, #tpu.memory_space<vmem>>, vector<1x28x28xf32>
    %41 = vector.shape_cast %40 : vector<1x28x28xf32> to vector<28x28xf32>
    %cst_44 = arith.constant dense<0.000000e+00> : vector<28x56xf32>
    %42 = tpu.matmul %41, %36, %cst_44 {dimension_numbers = #tpu.dot_dimension_numbers<[1], [0], [0], [1], [0, 0, 1, 1], [], []>} : vector<28x28xf32>, vector<28x56xf32>, vector<28x56xf32> -> vector<28x56xf32>
    %c0_45 = arith.constant 0 : index
    %c0_46 = arith.constant 0 : index
    %c0_47 = arith.constant 0 : index
    %43 = vector.load %arg8[%c0_45, %c0_46, %c0_47] : memref<3x56x112xf32, #tpu.memory_space<vmem>>, vector<1x56x112xf32>
    %44 = vector.shape_cast %43 : vector<1x56x112xf32> to vector<56x112xf32>
    %cst_48 = arith.constant dense<0.000000e+00> : vector<28x112xf32>
    %45 = tpu.matmul %39, %44, %cst_48 {dimension_numbers = #tpu.dot_dimension_numbers<[1], [0], [0], [1], [0, 0, 1, 1], [], []>} : vector<28x56xf32>, vector<56x112xf32>, vector<28x112xf32> -> vector<28x112xf32>
    %c1_49 = arith.constant 1 : index
    %c0_50 = arith.constant 0 : index
    %c0_51 = arith.constant 0 : index
    %46 = vector.load %arg8[%c1_49, %c0_50, %c0_51] : memref<3x56x112xf32, #tpu.memory_space<vmem>>, vector<1x56x112xf32>
    %47 = vector.shape_cast %46 : vector<1x56x112xf32> to vector<56x112xf32>
    %cst_52 = arith.constant dense<0.000000e+00> : vector<28x112xf32>
    %48 = tpu.matmul %36, %47, %cst_52 {dimension_numbers = #tpu.dot_dimension_numbers<[1], [0], [0], [1], [0, 0, 1, 1], [], []>} : vector<28x56xf32>, vector<56x112xf32>, vector<28x112xf32> -> vector<28x112xf32>
    %49 = arith.addf %45, %48 : vector<28x112xf32>
    %c2_53 = arith.constant 2 : index
    %c0_54 = arith.constant 0 : index
    %c0_55 = arith.constant 0 : index
    %50 = vector.load %arg8[%c2_53, %c0_54, %c0_55] : memref<3x56x112xf32, #tpu.memory_space<vmem>>, vector<1x56x112xf32>
    %51 = vector.shape_cast %50 : vector<1x56x112xf32> to vector<56x112xf32>
    %cst_56 = arith.constant dense<0.000000e+00> : vector<28x112xf32>
    %52 = tpu.matmul %42, %51, %cst_56 {dimension_numbers = #tpu.dot_dimension_numbers<[1], [0], [0], [1], [0, 0, 1, 1], [], []>} : vector<28x56xf32>, vector<56x112xf32>, vector<28x112xf32> -> vector<28x112xf32>
    %53 = arith.addf %49, %52 : vector<28x112xf32>
    %c0_57 = arith.constant 0 : index
    %c0_58 = arith.constant 0 : index
    %54 = vector.load %arg9[%c0_57, %c0_58] : memref<1x112xf32, #tpu.memory_space<vmem>>, vector<1x112xf32>
    %55 = vector.broadcast %54 : vector<1x112xf32> to vector<28x112xf32>
    %56 = arith.addf %53, %55 : vector<28x112xf32>
    %cst_59 = arith.constant 0.000000e+00 : f32
    %57 = vector.broadcast %cst_59 : f32 to vector<28x112xf32>
    %58 = arith.maximumf %56, %57 : vector<28x112xf32>
    %c0_60 = arith.constant 0 : index
    %c0_61 = arith.constant 0 : index
    %c0_62 = arith.constant 0 : index
    %59 = vector.load %arg10[%c0_60, %c0_61, %c0_62] : memref<2x112x56xf32, #tpu.memory_space<vmem>>, vector<1x112x56xf32>
    %60 = vector.shape_cast %59 : vector<1x112x56xf32> to vector<112x56xf32>
    %cst_63 = arith.constant dense<0.000000e+00> : vector<28x56xf32>
    %61 = tpu.matmul %58, %60, %cst_63 {dimension_numbers = #tpu.dot_dimension_numbers<[1], [0], [0], [1], [0, 0, 1, 1], [], []>} : vector<28x112xf32>, vector<112x56xf32>, vector<28x56xf32> -> vector<28x56xf32>
    %c1_64 = arith.constant 1 : index
    %c0_65 = arith.constant 0 : index
    %c0_66 = arith.constant 0 : index
    %62 = vector.load %arg10[%c1_64, %c0_65, %c0_66] : memref<2x112x56xf32, #tpu.memory_space<vmem>>, vector<1x112x56xf32>
    %63 = vector.shape_cast %62 : vector<1x112x56xf32> to vector<112x56xf32>
    %cst_67 = arith.constant dense<0.000000e+00> : vector<28x56xf32>
    %64 = tpu.matmul %58, %63, %cst_67 {dimension_numbers = #tpu.dot_dimension_numbers<[1], [0], [0], [1], [0, 0, 1, 1], [], []>} : vector<28x112xf32>, vector<112x56xf32>, vector<28x56xf32> -> vector<28x56xf32>
    %65 = arith.maximumf %61, %64 : vector<28x56xf32>
    %c0_68 = arith.constant 0 : index
    %c0_69 = arith.constant 0 : index
    %c0_70 = arith.constant 0 : index
    %66 = vector.load %arg11[%c0_68, %c0_69, %c0_70] : memref<2x14x28xf32, #tpu.memory_space<vmem>>, vector<1x14x28xf32>
    %67 = vector.shape_cast %66 : vector<1x14x28xf32> to vector<14x28xf32>
    %cst_71 = arith.constant dense<0.000000e+00> : vector<14x56xf32>
    %68 = tpu.matmul %67, %65, %cst_71 {dimension_numbers = #tpu.dot_dimension_numbers<[1], [0], [0], [1], [0, 0, 1, 1], [], []>} : vector<14x28xf32>, vector<28x56xf32>, vector<14x56xf32> -> vector<14x56xf32>
    %c1_72 = arith.constant 1 : index
    %c0_73 = arith.constant 0 : index
    %c0_74 = arith.constant 0 : index
    %69 = vector.load %arg11[%c1_72, %c0_73, %c0_74] : memref<2x14x28xf32, #tpu.memory_space<vmem>>, vector<1x14x28xf32>
    %70 = vector.shape_cast %69 : vector<1x14x28xf32> to vector<14x28xf32>
    %cst_75 = arith.constant dense<0.000000e+00> : vector<14x56xf32>
    %71 = tpu.matmul %70, %65, %cst_75 {dimension_numbers = #tpu.dot_dimension_numbers<[1], [0], [0], [1], [0, 0, 1, 1], [], []>} : vector<14x28xf32>, vector<28x56xf32>, vector<14x56xf32> -> vector<14x56xf32>
    %72 = arith.maximumf %68, %71 : vector<14x56xf32>
    %c0_76 = arith.constant 0 : index
    %c0_77 = arith.constant 0 : index
    %c0_78 = arith.constant 0 : index
    %73 = vector.load %arg12[%c0_76, %c0_77, %c0_78] : memref<2x14x14xf32, #tpu.memory_space<vmem>>, vector<1x14x14xf32>
    %74 = vector.shape_cast %73 : vector<1x14x14xf32> to vector<14x14xf32>
    %cst_79 = arith.constant dense<0.000000e+00> : vector<14x56xf32>
    %75 = tpu.matmul %74, %72, %cst_79 {dimension_numbers = #tpu.dot_dimension_numbers<[1], [0], [0], [1], [0, 0, 1, 1], [], []>} : vector<14x14xf32>, vector<14x56xf32>, vector<14x56xf32> -> vector<14x56xf32>
    %c1_80 = arith.constant 1 : index
    %c0_81 = arith.constant 0 : index
    %c0_82 = arith.constant 0 : index
    %76 = vector.load %arg12[%c1_80, %c0_81, %c0_82] : memref<2x14x14xf32, #tpu.memory_space<vmem>>, vector<1x14x14xf32>
    %77 = vector.shape_cast %76 : vector<1x14x14xf32> to vector<14x14xf32>
    %cst_83 = arith.constant dense<0.000000e+00> : vector<14x56xf32>
    %78 = tpu.matmul %77, %72, %cst_83 {dimension_numbers = #tpu.dot_dimension_numbers<[1], [0], [0], [1], [0, 0, 1, 1], [], []>} : vector<14x14xf32>, vector<14x56xf32>, vector<14x56xf32> -> vector<14x56xf32>
    %c0_84 = arith.constant 0 : index
    %c0_85 = arith.constant 0 : index
    %c0_86 = arith.constant 0 : index
    %79 = vector.load %arg13[%c0_84, %c0_85, %c0_86] : memref<3x56x56xf32, #tpu.memory_space<vmem>>, vector<1x56x56xf32>
    %80 = vector.shape_cast %79 : vector<1x56x56xf32> to vector<56x56xf32>
    %cst_87 = arith.constant dense<0.000000e+00> : vector<14x56xf32>
    %81 = tpu.matmul %75, %80, %cst_87 {dimension_numbers = #tpu.dot_dimension_numbers<[1], [0], [0], [1], [0, 0, 1, 1], [], []>} : vector<14x56xf32>, vector<56x56xf32>, vector<14x56xf32> -> vector<14x56xf32>
    %c1_88 = arith.constant 1 : index
    %c0_89 = arith.constant 0 : index
    %c0_90 = arith.constant 0 : index
    %82 = vector.load %arg13[%c1_88, %c0_89, %c0_90] : memref<3x56x56xf32, #tpu.memory_space<vmem>>, vector<1x56x56xf32>
    %83 = vector.shape_cast %82 : vector<1x56x56xf32> to vector<56x56xf32>
    %cst_91 = arith.constant dense<0.000000e+00> : vector<14x56xf32>
    %84 = tpu.matmul %72, %83, %cst_91 {dimension_numbers = #tpu.dot_dimension_numbers<[1], [0], [0], [1], [0, 0, 1, 1], [], []>} : vector<14x56xf32>, vector<56x56xf32>, vector<14x56xf32> -> vector<14x56xf32>
    %85 = arith.addf %81, %84 : vector<14x56xf32>
    %c2_92 = arith.constant 2 : index
    %c0_93 = arith.constant 0 : index
    %c0_94 = arith.constant 0 : index
    %86 = vector.load %arg13[%c2_92, %c0_93, %c0_94] : memref<3x56x56xf32, #tpu.memory_space<vmem>>, vector<1x56x56xf32>
    %87 = vector.shape_cast %86 : vector<1x56x56xf32> to vector<56x56xf32>
    %cst_95 = arith.constant dense<0.000000e+00> : vector<14x56xf32>
    %88 = tpu.matmul %78, %87, %cst_95 {dimension_numbers = #tpu.dot_dimension_numbers<[1], [0], [0], [1], [0, 0, 1, 1], [], []>} : vector<14x56xf32>, vector<56x56xf32>, vector<14x56xf32> -> vector<14x56xf32>
    %89 = arith.addf %85, %88 : vector<14x56xf32>
    %c0_96 = arith.constant 0 : index
    %c0_97 = arith.constant 0 : index
    %90 = vector.load %arg14[%c0_96, %c0_97] : memref<1x56xf32, #tpu.memory_space<vmem>>, vector<1x56xf32>
    %91 = vector.broadcast %90 : vector<1x56xf32> to vector<14x56xf32>
    %92 = arith.addf %89, %91 : vector<14x56xf32>
    %cst_98 = arith.constant 0.000000e+00 : f32
    %93 = vector.broadcast %cst_98 : f32 to vector<14x56xf32>
    %94 = arith.maximumf %92, %93 : vector<14x56xf32>
    %c0_99 = arith.constant 0 : index
    %c0_100 = arith.constant 0 : index
    %c0_101 = arith.constant 0 : index
    %95 = vector.load %arg15[%c0_99, %c0_100, %c0_101] : memref<2x7x56xf32, #tpu.memory_space<vmem>>, vector<1x7x56xf32>
    %96 = vector.shape_cast %95 : vector<1x7x56xf32> to vector<7x56xf32>
    %c1_102 = arith.constant 1 : index
    %c0_103 = arith.constant 0 : index
    %c0_104 = arith.constant 0 : index
    %97 = vector.load %arg15[%c1_102, %c0_103, %c0_104] : memref<2x7x56xf32, #tpu.memory_space<vmem>>, vector<1x7x56xf32>
    %98 = vector.shape_cast %97 : vector<1x7x56xf32> to vector<7x56xf32>
    %c0_105 = arith.constant 0 : index
    %c0_106 = arith.constant 0 : index
    %c0_107 = arith.constant 0 : index
    %99 = vector.load %arg17[%c0_105, %c0_106, %c0_107] : memref<2x7x56xf32, #tpu.memory_space<vmem>>, vector<1x7x56xf32>
    %100 = vector.shape_cast %99 : vector<1x7x56xf32> to vector<7x56xf32>
    %c1_108 = arith.constant 1 : index
    %c0_109 = arith.constant 0 : index
    %c0_110 = arith.constant 0 : index
    %101 = vector.load %arg17[%c1_108, %c0_109, %c0_110] : memref<2x7x56xf32, #tpu.memory_space<vmem>>, vector<1x7x56xf32>
    %102 = vector.shape_cast %101 : vector<1x7x56xf32> to vector<7x56xf32>
    %c0_111 = arith.constant 0 : index
    %c0_112 = arith.constant 0 : index
    %103 = vector.load %arg16[%c0_111, %c0_112] : memref<1x2xf32, #tpu.memory_space<vmem>>, vector<1x2xf32>
    %c0_113 = arith.constant 0 : index
    %c0_114 = arith.constant 0 : index
    %104 = vector.load %arg18[%c0_113, %c0_114] : memref<7x56xf32, #tpu.memory_space<vmem>>, vector<7x56xf32>
    %105 = vector.extract_strided_slice %94 {offsets = [0, 0], sizes = [7, 56], strides = [1, 1]} : vector<14x56xf32> to vector<7x56xf32>
    %106 = arith.mulf %105, %96 : vector<7x56xf32>
    %cst_115 = arith.constant dense<0.000000e+00> : vector<7xf32>
    %107 = vector.multi_reduction <add>, %106, %cst_115 [1] : vector<7x56xf32> to vector<7xf32>
    %108 = vector.shape_cast %107 : vector<7xf32> to vector<7x1xf32>
    %cst_116 = arith.constant dense<0.000000e+00> : vector<1xf32>
    %109 = vector.multi_reduction <add>, %108, %cst_116 [0] : vector<7x1xf32> to vector<1xf32>
    %110 = vector.shape_cast %109 : vector<1xf32> to vector<1x1xf32>
    %111 = arith.mulf %105, %98 : vector<7x56xf32>
    %cst_117 = arith.constant dense<0.000000e+00> : vector<7xf32>
    %112 = vector.multi_reduction <add>, %111, %cst_117 [1] : vector<7x56xf32> to vector<7xf32>
    %113 = vector.shape_cast %112 : vector<7xf32> to vector<7x1xf32>
    %cst_118 = arith.constant dense<0.000000e+00> : vector<1xf32>
    %114 = vector.multi_reduction <add>, %113, %cst_118 [0] : vector<7x1xf32> to vector<1xf32>
    %115 = vector.shape_cast %114 : vector<1xf32> to vector<1x1xf32>
    %116 = vector.extract_strided_slice %103 {offsets = [0, 0], sizes = [1, 1], strides = [1, 1]} : vector<1x2xf32> to vector<1x1xf32>
    %117 = arith.addf %110, %116 : vector<1x1xf32>
    %cst_119 = arith.constant 0.000000e+00 : f32
    %118 = vector.broadcast %cst_119 : f32 to vector<1x1xf32>
    %119 = arith.maximumf %117, %118 : vector<1x1xf32>
    %120 = vector.extract_strided_slice %103 {offsets = [0, 1], sizes = [1, 1], strides = [1, 1]} : vector<1x2xf32> to vector<1x1xf32>
    %121 = arith.addf %115, %120 : vector<1x1xf32>
    %cst_120 = arith.constant 0.000000e+00 : f32
    %122 = vector.broadcast %cst_120 : f32 to vector<1x1xf32>
    %123 = arith.maximumf %121, %122 : vector<1x1xf32>
    %124 = vector.broadcast %119 : vector<1x1xf32> to vector<7x56xf32>
    %125 = arith.mulf %124, %100 : vector<7x56xf32>
    %126 = vector.broadcast %123 : vector<1x1xf32> to vector<7x56xf32>
    %127 = arith.mulf %126, %102 : vector<7x56xf32>
    %128 = arith.addf %125, %127 : vector<7x56xf32>
    %129 = arith.addf %128, %104 : vector<7x56xf32>
    %cst_121 = arith.constant 0.000000e+00 : f32
    %130 = vector.broadcast %cst_121 : f32 to vector<7x56xf32>
    %131 = arith.maximumf %129, %130 : vector<7x56xf32>
    %132 = vector.extract_strided_slice %94 {offsets = [7, 0], sizes = [7, 56], strides = [1, 1]} : vector<14x56xf32> to vector<7x56xf32>
    %133 = arith.mulf %132, %96 : vector<7x56xf32>
    %cst_122 = arith.constant dense<0.000000e+00> : vector<7xf32>
    %134 = vector.multi_reduction <add>, %133, %cst_122 [1] : vector<7x56xf32> to vector<7xf32>
    %135 = vector.shape_cast %134 : vector<7xf32> to vector<7x1xf32>
    %cst_123 = arith.constant dense<0.000000e+00> : vector<1xf32>
    %136 = vector.multi_reduction <add>, %135, %cst_123 [0] : vector<7x1xf32> to vector<1xf32>
    %137 = vector.shape_cast %136 : vector<1xf32> to vector<1x1xf32>
    %138 = arith.mulf %132, %98 : vector<7x56xf32>
    %cst_124 = arith.constant dense<0.000000e+00> : vector<7xf32>
    %139 = vector.multi_reduction <add>, %138, %cst_124 [1] : vector<7x56xf32> to vector<7xf32>
    %140 = vector.shape_cast %139 : vector<7xf32> to vector<7x1xf32>
    %cst_125 = arith.constant dense<0.000000e+00> : vector<1xf32>
    %141 = vector.multi_reduction <add>, %140, %cst_125 [0] : vector<7x1xf32> to vector<1xf32>
    %142 = vector.shape_cast %141 : vector<1xf32> to vector<1x1xf32>
    %143 = vector.extract_strided_slice %103 {offsets = [0, 0], sizes = [1, 1], strides = [1, 1]} : vector<1x2xf32> to vector<1x1xf32>
    %144 = arith.addf %137, %143 : vector<1x1xf32>
    %cst_126 = arith.constant 0.000000e+00 : f32
    %145 = vector.broadcast %cst_126 : f32 to vector<1x1xf32>
    %146 = arith.maximumf %144, %145 : vector<1x1xf32>
    %147 = vector.extract_strided_slice %103 {offsets = [0, 1], sizes = [1, 1], strides = [1, 1]} : vector<1x2xf32> to vector<1x1xf32>
    %148 = arith.addf %142, %147 : vector<1x1xf32>
    %cst_127 = arith.constant 0.000000e+00 : f32
    %149 = vector.broadcast %cst_127 : f32 to vector<1x1xf32>
    %150 = arith.maximumf %148, %149 : vector<1x1xf32>
    %151 = vector.broadcast %146 : vector<1x1xf32> to vector<7x56xf32>
    %152 = arith.mulf %151, %100 : vector<7x56xf32>
    %153 = vector.broadcast %150 : vector<1x1xf32> to vector<7x56xf32>
    %154 = arith.mulf %153, %102 : vector<7x56xf32>
    %155 = arith.addf %152, %154 : vector<7x56xf32>
    %156 = arith.addf %155, %104 : vector<7x56xf32>
    %cst_128 = arith.constant 0.000000e+00 : f32
    %157 = vector.broadcast %cst_128 : f32 to vector<7x56xf32>
    %158 = arith.maximumf %156, %157 : vector<7x56xf32>
    %159 = tpu.concatenate %131, %158 in 0 : vector<7x56xf32>, vector<7x56xf32> -> vector<14x56xf32>
    %c0_129 = arith.constant 0 : index
    %c0_130 = arith.constant 0 : index
    %160 = vector.load %arg19[%c0_129, %c0_130] : memref<56x56xf32, #tpu.memory_space<vmem>>, vector<56x56xf32>
    %cst_131 = arith.constant dense<0.000000e+00> : vector<14x56xf32>
    %161 = tpu.matmul %159, %160, %cst_131 {dimension_numbers = #tpu.dot_dimension_numbers<[1], [0], [0], [1], [0, 0, 1, 1], [], []>} : vector<14x56xf32>, vector<56x56xf32>, vector<14x56xf32> -> vector<14x56xf32>
    %c0_132 = arith.constant 0 : index
    %c0_133 = arith.constant 0 : index
    %162 = vector.load %arg20[%c0_132, %c0_133] : memref<1x56xf32, #tpu.memory_space<vmem>>, vector<1x56xf32>
    %163 = vector.broadcast %162 : vector<1x56xf32> to vector<14x56xf32>
    %164 = arith.addf %161, %163 : vector<14x56xf32>
    %cst_134 = arith.constant 0.000000e+00 : f32
    %165 = vector.broadcast %cst_134 : f32 to vector<14x56xf32>
    %166 = arith.maximumf %164, %165 : vector<14x56xf32>
    %c0_135 = arith.constant 0 : index
    %c0_136 = arith.constant 0 : index
    %c0_137 = arith.constant 0 : index
    %167 = vector.load %arg21[%c0_135, %c0_136, %c0_137] : memref<2x56x56xf32, #tpu.memory_space<vmem>>, vector<1x56x56xf32>
    %168 = vector.shape_cast %167 : vector<1x56x56xf32> to vector<56x56xf32>
    %cst_138 = arith.constant dense<0.000000e+00> : vector<14x56xf32>
    %169 = tpu.matmul %166, %168, %cst_138 {dimension_numbers = #tpu.dot_dimension_numbers<[1], [0], [0], [1], [0, 0, 1, 1], [], []>} : vector<14x56xf32>, vector<56x56xf32>, vector<14x56xf32> -> vector<14x56xf32>
    %c1_139 = arith.constant 1 : index
    %c0_140 = arith.constant 0 : index
    %c0_141 = arith.constant 0 : index
    %170 = vector.load %arg21[%c1_139, %c0_140, %c0_141] : memref<2x56x56xf32, #tpu.memory_space<vmem>>, vector<1x56x56xf32>
    %171 = vector.shape_cast %170 : vector<1x56x56xf32> to vector<56x56xf32>
    %cst_142 = arith.constant dense<0.000000e+00> : vector<14x56xf32>
    %172 = tpu.matmul %166, %171, %cst_142 {dimension_numbers = #tpu.dot_dimension_numbers<[1], [0], [0], [1], [0, 0, 1, 1], [], []>} : vector<14x56xf32>, vector<56x56xf32>, vector<14x56xf32> -> vector<14x56xf32>
    %c0_143 = arith.constant 0 : index
    %c0_144 = arith.constant 0 : index
    %c0_145 = arith.constant 0 : index
    %173 = vector.load %arg22[%c0_143, %c0_144, %c0_145] : memref<2x28x14xf32, #tpu.memory_space<vmem>>, vector<1x28x14xf32>
    %174 = vector.shape_cast %173 : vector<1x28x14xf32> to vector<28x14xf32>
    %cst_146 = arith.constant dense<0.000000e+00> : vector<28x56xf32>
    %175 = tpu.matmul %174, %169, %cst_146 {dimension_numbers = #tpu.dot_dimension_numbers<[1], [0], [0], [1], [0, 0, 1, 1], [], []>} : vector<28x14xf32>, vector<14x56xf32>, vector<28x56xf32> -> vector<28x56xf32>
    %c1_147 = arith.constant 1 : index
    %c0_148 = arith.constant 0 : index
    %c0_149 = arith.constant 0 : index
    %176 = vector.load %arg22[%c1_147, %c0_148, %c0_149] : memref<2x28x14xf32, #tpu.memory_space<vmem>>, vector<1x28x14xf32>
    %177 = vector.shape_cast %176 : vector<1x28x14xf32> to vector<28x14xf32>
    %cst_150 = arith.constant dense<0.000000e+00> : vector<28x56xf32>
    %178 = tpu.matmul %177, %172, %cst_150 {dimension_numbers = #tpu.dot_dimension_numbers<[1], [0], [0], [1], [0, 0, 1, 1], [], []>} : vector<28x14xf32>, vector<14x56xf32>, vector<28x56xf32> -> vector<28x56xf32>
    %179 = arith.addf %175, %178 : vector<28x56xf32>
    %c0_151 = arith.constant 0 : index
    %c0_152 = arith.constant 0 : index
    %180 = vector.load %arg23[%c0_151, %c0_152] : memref<1x56xf32, #tpu.memory_space<vmem>>, vector<1x56xf32>
    %181 = vector.broadcast %180 : vector<1x56xf32> to vector<28x56xf32>
    %182 = arith.addf %179, %181 : vector<28x56xf32>
    %cst_153 = arith.constant 0.000000e+00 : f32
    %183 = vector.broadcast %cst_153 : f32 to vector<28x56xf32>
    %184 = arith.maximumf %182, %183 : vector<28x56xf32>
    %c0_154 = arith.constant 0 : index
    %c0_155 = arith.constant 0 : index
    %c0_156 = arith.constant 0 : index
    %185 = vector.load %arg24[%c0_154, %c0_155, %c0_156] : memref<2x56x28xf32, #tpu.memory_space<vmem>>, vector<1x56x28xf32>
    %186 = vector.shape_cast %185 : vector<1x56x28xf32> to vector<56x28xf32>
    %cst_157 = arith.constant dense<0.000000e+00> : vector<28x28xf32>
    %187 = tpu.matmul %184, %186, %cst_157 {dimension_numbers = #tpu.dot_dimension_numbers<[1], [0], [0], [1], [0, 0, 1, 1], [], []>} : vector<28x56xf32>, vector<56x28xf32>, vector<28x28xf32> -> vector<28x28xf32>
    %c1_158 = arith.constant 1 : index
    %c0_159 = arith.constant 0 : index
    %c0_160 = arith.constant 0 : index
    %188 = vector.load %arg24[%c1_158, %c0_159, %c0_160] : memref<2x56x28xf32, #tpu.memory_space<vmem>>, vector<1x56x28xf32>
    %189 = vector.shape_cast %188 : vector<1x56x28xf32> to vector<56x28xf32>
    %cst_161 = arith.constant dense<0.000000e+00> : vector<28x28xf32>
    %190 = tpu.matmul %184, %189, %cst_161 {dimension_numbers = #tpu.dot_dimension_numbers<[1], [0], [0], [1], [0, 0, 1, 1], [], []>} : vector<28x56xf32>, vector<56x28xf32>, vector<28x28xf32> -> vector<28x28xf32>
    %c0_162 = arith.constant 0 : index
    %c0_163 = arith.constant 0 : index
    %c0_164 = arith.constant 0 : index
    %191 = vector.load %arg25[%c0_162, %c0_163, %c0_164] : memref<2x56x28xf32, #tpu.memory_space<vmem>>, vector<1x56x28xf32>
    %192 = vector.shape_cast %191 : vector<1x56x28xf32> to vector<56x28xf32>
    %cst_165 = arith.constant dense<0.000000e+00> : vector<56x28xf32>
    %193 = tpu.matmul %192, %187, %cst_165 {dimension_numbers = #tpu.dot_dimension_numbers<[1], [0], [0], [1], [0, 0, 1, 1], [], []>} : vector<56x28xf32>, vector<28x28xf32>, vector<56x28xf32> -> vector<56x28xf32>
    %c1_166 = arith.constant 1 : index
    %c0_167 = arith.constant 0 : index
    %c0_168 = arith.constant 0 : index
    %194 = vector.load %arg25[%c1_166, %c0_167, %c0_168] : memref<2x56x28xf32, #tpu.memory_space<vmem>>, vector<1x56x28xf32>
    %195 = vector.shape_cast %194 : vector<1x56x28xf32> to vector<56x28xf32>
    %cst_169 = arith.constant dense<0.000000e+00> : vector<56x28xf32>
    %196 = tpu.matmul %195, %190, %cst_169 {dimension_numbers = #tpu.dot_dimension_numbers<[1], [0], [0], [1], [0, 0, 1, 1], [], []>} : vector<56x28xf32>, vector<28x28xf32>, vector<56x28xf32> -> vector<56x28xf32>
    %197 = arith.addf %193, %196 : vector<56x28xf32>
    %c0_170 = arith.constant 0 : index
    %c0_171 = arith.constant 0 : index
    %198 = vector.load %arg26[%c0_170, %c0_171] : memref<1x28xf32, #tpu.memory_space<vmem>>, vector<1x28xf32>
    %199 = vector.broadcast %198 : vector<1x28xf32> to vector<56x28xf32>
    %200 = arith.addf %197, %199 : vector<56x28xf32>
    %c0_172 = arith.constant 0 : index
    %c0_173 = arith.constant 0 : index
    %201 = vector.load %arg27[%c0_172, %c0_173] : memref<56x28xf32, #tpu.memory_space<vmem>>, vector<56x28xf32>
    tpu.vector_store %arg27[%c0_172, %c0_173], %200 {strides = array<i32>} : memref<56x28xf32, #tpu.memory_space<vmem>>, vector<56x28xf32>,
    return
  }
  func.func @transform_0(%arg0: i32) -> (i32, i32) {
    %c0_i32 = arith.constant 0 : i32
    %c0_i32_0 = arith.constant 0 : i32
    return %arg0, %c0_i32 : i32, i32
  }
  func.func @transform_1(%arg0: i32) -> (i32, i32, i32) {
    %c0_i32 = arith.constant 0 : i32
    %c0_i32_0 = arith.constant 0 : i32
    %c0_i32_1 = arith.constant 0 : i32
    %c0_i32_2 = arith.constant 0 : i32
    return %c0_i32, %c0_i32_0, %c0_i32_1 : i32, i32, i32
  }
  func.func @transform_2(%arg0: i32) -> (i32, i32, i32) {
    %c0_i32 = arith.constant 0 : i32
    %c0_i32_0 = arith.constant 0 : i32
    %c0_i32_1 = arith.constant 0 : i32
    %c0_i32_2 = arith.constant 0 : i32
    return %c0_i32, %c0_i32_0, %c0_i32_1 : i32, i32, i32
  }
  func.func @transform_3(%arg0: i32) -> (i32, i32) {
    %c0_i32 = arith.constant 0 : i32
    %c0_i32_0 = arith.constant 0 : i32
    %c0_i32_1 = arith.constant 0 : i32
    return %c0_i32, %c0_i32_0 : i32, i32
  }
  func.func @transform_4(%arg0: i32) -> (i32, i32, i32) {
    %c0_i32 = arith.constant 0 : i32
    %c0_i32_0 = arith.constant 0 : i32
    %c0_i32_1 = arith.constant 0 : i32
    %c0_i32_2 = arith.constant 0 : i32
    return %c0_i32, %c0_i32_0, %c0_i32_1 : i32, i32, i32
  }
  func.func @transform_5(%arg0: i32) -> (i32, i32, i32) {
    %c0_i32 = arith.constant 0 : i32
    %c0_i32_0 = arith.constant 0 : i32
    %c0_i32_1 = arith.constant 0 : i32
    %c0_i32_2 = arith.constant 0 : i32
    return %c0_i32, %c0_i32_0, %c0_i32_1 : i32, i32, i32
  }
  func.func @transform_6(%arg0: i32) -> (i32, i32, i32) {
    %c0_i32 = arith.constant 0 : i32
    %c0_i32_0 = arith.constant 0 : i32
    %c0_i32_1 = arith.constant 0 : i32
    %c0_i32_2 = arith.constant 0 : i32
    return %c0_i32, %c0_i32_0, %c0_i32_1 : i32, i32, i32
  }
  func.func @transform_7(%arg0: i32) -> (i32, i32, i32) {
    %c0_i32 = arith.constant 0 : i32
    %c0_i32_0 = arith.constant 0 : i32
    %c0_i32_1 = arith.constant 0 : i32
    %c0_i32_2 = arith.constant 0 : i32
    return %c0_i32, %c0_i32_0, %c0_i32_1 : i32, i32, i32
  }
  func.func @transform_8(%arg0: i32) -> (i32, i32) {
    %c0_i32 = arith.constant 0 : i32
    %c0_i32_0 = arith.constant 0 : i32
    %c0_i32_1 = arith.constant 0 : i32
    return %c0_i32, %c0_i32_0 : i32, i32
  }
  func.func @transform_9(%arg0: i32) -> (i32, i32, i32) {
    %c0_i32 = arith.constant 0 : i32
    %c0_i32_0 = arith.constant 0 : i32
    %c0_i32_1 = arith.constant 0 : i32
    %c0_i32_2 = arith.constant 0 : i32
    return %c0_i32, %c0_i32_0, %c0_i32_1 : i32, i32, i32
  }
  func.func @transform_10(%arg0: i32) -> (i32, i32, i32) {
    %c0_i32 = arith.constant 0 : i32
    %c0_i32_0 = arith.constant 0 : i32
    %c0_i32_1 = arith.constant 0 : i32
    %c0_i32_2 = arith.constant 0 : i32
    return %c0_i32, %c0_i32_0, %c0_i32_1 : i32, i32, i32
  }
  func.func @transform_11(%arg0: i32) -> (i32, i32, i32) {
    %c0_i32 = arith.constant 0 : i32
    %c0_i32_0 = arith.constant 0 : i32
    %c0_i32_1 = arith.constant 0 : i32
    %c0_i32_2 = arith.constant 0 : i32
    return %c0_i32, %c0_i32_0, %c0_i32_1 : i32, i32, i32
  }
  func.func @transform_12(%arg0: i32) -> (i32, i32, i32) {
    %c0_i32 = arith.constant 0 : i32
    %c0_i32_0 = arith.constant 0 : i32
    %c0_i32_1 = arith.constant 0 : i32
    %c0_i32_2 = arith.constant 0 : i32
    return %c0_i32, %c0_i32_0, %c0_i32_1 : i32, i32, i32
  }
  func.func @transform_13(%arg0: i32) -> (i32, i32) {
    %c0_i32 = arith.constant 0 : i32
    %c0_i32_0 = arith.constant 0 : i32
    %c0_i32_1 = arith.constant 0 : i32
    return %c0_i32, %c0_i32_0 : i32, i32
  }
  func.func @transform_14(%arg0: i32) -> (i32, i32, i32) {
    %c0_i32 = arith.constant 0 : i32
    %c0_i32_0 = arith.constant 0 : i32
    %c0_i32_1 = arith.constant 0 : i32
    %c0_i32_2 = arith.constant 0 : i32
    return %c0_i32, %c0_i32_0, %c0_i32_1 : i32, i32, i32
  }
  func.func @transform_15(%arg0: i32) -> (i32, i32) {
    %c0_i32 = arith.constant 0 : i32
    %c0_i32_0 = arith.constant 0 : i32
    %c0_i32_1 = arith.constant 0 : i32
    return %c0_i32, %c0_i32_0 : i32, i32
  }
  func.func @transform_16(%arg0: i32) -> (i32, i32, i32) {
    %c0_i32 = arith.constant 0 : i32
    %c0_i32_0 = arith.constant 0 : i32
    %c0_i32_1 = arith.constant 0 : i32
    %c0_i32_2 = arith.constant 0 : i32
    return %c0_i32, %c0_i32_0, %c0_i32_1 : i32, i32, i32
  }
  func.func @transform_17(%arg0: i32) -> (i32, i32) {
    %c0_i32 = arith.constant 0 : i32
    %c0_i32_0 = arith.constant 0 : i32
    %c0_i32_1 = arith.constant 0 : i32
    return %c0_i32, %c0_i32_0 : i32, i32
  }
  func.func @transform_18(%arg0: i32) -> (i32, i32) {
    %c0_i32 = arith.constant 0 : i32
    %c0_i32_0 = arith.constant 0 : i32
    %c0_i32_1 = arith.constant 0 : i32
    return %c0_i32, %c0_i32_0 : i32, i32
  }
  func.func @transform_19(%arg0: i32) -> (i32, i32) {
    %c0_i32 = arith.constant 0 : i32
    %c0_i32_0 = arith.constant 0 : i32
    %c0_i32_1 = arith.constant 0 : i32
    return %c0_i32, %c0_i32_0 : i32, i32
  }
  func.func @transform_20(%arg0: i32) -> (i32, i32, i32) {
    %c0_i32 = arith.constant 0 : i32
    %c0_i32_0 = arith.constant 0 : i32
    %c0_i32_1 = arith.constant 0 : i32
    %c0_i32_2 = arith.constant 0 : i32
    return %c0_i32, %c0_i32_0, %c0_i32_1 : i32, i32, i32
  }
  func.func @transform_21(%arg0: i32) -> (i32, i32, i32) {
    %c0_i32 = arith.constant 0 : i32
    %c0_i32_0 = arith.constant 0 : i32
    %c0_i32_1 = arith.constant 0 : i32
    %c0_i32_2 = arith.constant 0 : i32
    return %c0_i32, %c0_i32_0, %c0_i32_1 : i32, i32, i32
  }
  func.func @transform_22(%arg0: i32) -> (i32, i32) {
    %c0_i32 = arith.constant 0 : i32
    %c0_i32_0 = arith.constant 0 : i32
    %c0_i32_1 = arith.constant 0 : i32
    return %c0_i32, %c0_i32_0 : i32, i32
  }
  func.func @transform_23(%arg0: i32) -> (i32, i32, i32) {
    %c0_i32 = arith.constant 0 : i32
    %c0_i32_0 = arith.constant 0 : i32
    %c0_i32_1 = arith.constant 0 : i32
    %c0_i32_2 = arith.constant 0 : i32
    return %c0_i32, %c0_i32_0, %c0_i32_1 : i32, i32, i32
  }
  func.func @transform_24(%arg0: i32) -> (i32, i32, i32) {
    %c0_i32 = arith.constant 0 : i32
    %c0_i32_0 = arith.constant 0 : i32
    %c0_i32_1 = arith.constant 0 : i32
    %c0_i32_2 = arith.constant 0 : i32
    return %c0_i32, %c0_i32_0, %c0_i32_1 : i32, i32, i32
  }
  func.func @transform_25(%arg0: i32) -> (i32, i32) {
    %c0_i32 = arith.constant 0 : i32
    %c0_i32_0 = arith.constant 0 : i32
    %c0_i32_1 = arith.constant 0 : i32
    return %c0_i32, %c0_i32_0 : i32, i32
  }
  func.func @transform_26(%arg0: i32) -> (i32, i32) {
    %c0_i32 = arith.constant 0 : i32
    %c0_i32_0 = arith.constant 0 : i32
    return %arg0, %c0_i32 : i32, i32
  }
}

</mosaic_0001>

<llo_original>
// kernel: chan_small_forward.1
$region0: #{chan_small_forward.1}
  #allocation0 [shape = 'u32[]', space=smem, size = 0x4, offset = 0x4, fixed_abs, tag = 'smem constant byte address 0x4 - core index']
  #allocation1 [shape = 'u32[144,128]{1,0:T(1,128)}', space=vmem, size = 0x12000, scoped, tag = 'internal scratch']
  %s0 = inlined_call_operand.vmem [shape: f32[56,28], index: 0, kind: input, shape index: {}]
  %s1 = inlined_call_operand.vmem [shape: f32[2,56,56], index: 1, kind: input, shape index: {}]
  %s2 = inlined_call_operand.vmem [shape: f32[3,28,112], index: 2, kind: input, shape index: {}]
  %s3 = inlined_call_operand.vmem [shape: f32[1,112], index: 3, kind: input, shape index: {}]
  %s4 = inlined_call_operand.vmem [shape: f32[2,112,56], index: 4, kind: input, shape index: {}]
  %s5 = inlined_call_operand.vmem [shape: f32[2,28,56], index: 5, kind: input, shape index: {}]
  %s6 = inlined_call_operand.vmem [shape: f32[2,28,28], index: 6, kind: input, shape index: {}]
  %s7 = inlined_call_operand.vmem [shape: f32[3,56,112], index: 7, kind: input, shape index: {}]
  %s8 = inlined_call_operand.vmem [shape: f32[1,112], index: 8, kind: input, shape index: {}]
  %s9 = inlined_call_operand.vmem [shape: f32[2,112,56], index: 9, kind: input, shape index: {}]
  %s10 = inlined_call_operand.vmem [shape: f32[2,14,28], index: 10, kind: input, shape index: {}]
  %s11 = inlined_call_operand.vmem [shape: f32[2,14,14], index: 11, kind: input, shape index: {}]
  %s12 = inlined_call_operand.vmem [shape: f32[3,56,56], index: 12, kind: input, shape index: {}]
  %s13 = inlined_call_operand.vmem [shape: f32[1,56], index: 13, kind: input, shape index: {}]
  %s14 = inlined_call_operand.vmem [shape: f32[2,7,56], index: 14, kind: input, shape index: {}]
  %s15 = inlined_call_operand.vmem [shape: f32[1,2], index: 15, kind: input, shape index: {}]
  %s16 = inlined_call_operand.vmem [shape: f32[2,7,56], index: 16, kind: input, shape index: {}]
  %s17 = inlined_call_operand.vmem [shape: f32[7,56], index: 17, kind: input, shape index: {}]
  %s18 = inlined_call_operand.vmem [shape: f32[56,56], index: 18, kind: input, shape index: {}]
  %s19 = inlined_call_operand.vmem [shape: f32[1,56], index: 19, kind: input, shape index: {}]
  %s20 = inlined_call_operand.vmem [shape: f32[2,56,56], index: 20, kind: input, shape index: {}]
  %s21 = inlined_call_operand.vmem [shape: f32[2,28,14], index: 21, kind: input, shape index: {}]
  %s22 = inlined_call_operand.vmem [shape: f32[1,56], index: 22, kind: input, shape index: {}]
  %s23 = inlined_call_operand.vmem [shape: f32[2,56,28], index: 23, kind: input, shape index: {}]
  %s24 = inlined_call_operand.vmem [shape: f32[2,56,28], index: 24, kind: input, shape index: {}]
  %s25 = inlined_call_operand.vmem [shape: f32[1,28], index: 25, kind: input, shape index: {}]
  %s26 = inlined_call_operand.hbm [shape: f32[56,28], index: 26, kind: output, shape index: {}]
  %s27 = sld [smem:[#allocation0]]
  $region114: #{chan_small_forward.1} parent=0
    _
  %s29 = ssub.s32 1, %s27
  %s30 = scalar_select 0, %s29, %s27
  $region1: #{chan_small_forward.1} parent=0
    #allocation2 [shape = 'u8[28672]{0}', space=vmem, size = 0x7000, scoped, tag = 'output window, operand 0, single buffered']
    #allocation3 [shape = 's32[1]{0}', space=sflag, size = 0x4, scoped, tag = 'scoped memory for chan_small_forward.1']
    %31 = vsyncpa [#allocation3], 0
    // Predicated region
    $region2: #{chan_small_forward.1} parent=1 // pred_check
      _
    $region3: #{chan_small_forward.1} parent=1 // pred_check_branch
      %33 = sbr.rel (0) target = $region5
    $region4: #{chan_small_forward.1} parent=1 // pred_region
      _
    $region5: #{chan_small_forward.1} parent=1 // pred_fallthru
      _
    // Predicated region
    $region6: #{chan_small_forward.1} parent=1 // pred_check
      _
    $region7: #{chan_small_forward.1} parent=1 // pred_check_branch
      %35 = sbr.rel (0) target = $region9
    $region8: #{chan_small_forward.1} parent=1 // pred_region
      _
    $region9: #{chan_small_forward.1} parent=1 // pred_fallthru
      _
    // Predicated region
    $region10: #{chan_small_forward.1} parent=1 // pred_check
      _
    $region11: #{chan_small_forward.1} parent=1 // pred_check_branch
      %37 = sbr.rel (0) target = $region13
    $region12: #{chan_small_forward.1} parent=1 // pred_region
      _
    $region13: #{chan_small_forward.1} parent=1 // pred_fallthru
      _
    // Predicated region
    $region14: #{chan_small_forward.1} parent=1 // pred_check
      _
    $region15: #{chan_small_forward.1} parent=1 // pred_check_branch
      %39 = sbr.rel (0) target = $region17
    $region16: #{chan_small_forward.1} parent=1 // pred_region
      _
    $region17: #{chan_small_forward.1} parent=1 // pred_fallthru
      _
    // Predicated region
    $region18: #{chan_small_forward.1} parent=1 // pred_check
      _
    $region19: #{chan_small_forward.1} parent=1 // pred_check_branch
      %41 = sbr.rel (0) target = $region21
    $region20: #{chan_small_forward.1} parent=1 // pred_region
      _
    $region21: #{chan_small_forward.1} parent=1 // pred_fallthru
      _
    // Predicated region
    $region22: #{chan_small_forward.1} parent=1 // pred_check
      _
    $region23: #{chan_small_forward.1} parent=1 // pred_check_branch
      %43 = sbr.rel (0) target = $region25
    $region24: #{chan_small_forward.1} parent=1 // pred_region
      _
    $region25: #{chan_small_forward.1} parent=1 // pred_fallthru
      _
    // Predicated region
    $region26: #{chan_small_forward.1} parent=1 // pred_check
      _
    $region27: #{chan_small_forward.1} parent=1 // pred_check_branch
      %45 = sbr.rel (0) target = $region29
    $region28: #{chan_small_forward.1} parent=1 // pred_region
      _
    $region29: #{chan_small_forward.1} parent=1 // pred_fallthru
      _
    // Predicated region
    $region30: #{chan_small_forward.1} parent=1 // pred_check
      _
    $region31: #{chan_small_forward.1} parent=1 // pred_check_branch
      %47 = sbr.rel (0) target = $region33
    $region32: #{chan_small_forward.1} parent=1 // pred_region
      _
    $region33: #{chan_small_forward.1} parent=1 // pred_fallthru
      _
    // Predicated region
    $region34: #{chan_small_forward.1} parent=1 // pred_check
      _
    $region35: #{chan_small_forward.1} parent=1 // pred_check_branch
      %49 = sbr.rel (0) target = $region37
    $region36: #{chan_small_forward.1} parent=1 // pred_region
      _
    $region37: #{chan_small_forward.1} parent=1 // pred_fallthru
      _
    // Predicated region
    $region38: #{chan_small_forward.1} parent=1 // pred_check
      _
    $region39: #{chan_small_forward.1} parent=1 // pred_check_branch
      %51 = sbr.rel (0) target = $region41
    $region40: #{chan_small_forward.1} parent=1 // pred_region
      _
    $region41: #{chan_small_forward.1} parent=1 // pred_fallthru
      _
    // Predicated region
    $region42: #{chan_small_forward.1} parent=1 // pred_check
      _
    $region43: #{chan_small_forward.1} parent=1 // pred_check_branch
      %53 = sbr.rel (0) target = $region45
    $region44: #{chan_small_forward.1} parent=1 // pred_region
      _
    $region45: #{chan_small_forward.1} parent=1 // pred_fallthru
      _
    // Predicated region
    $region46: #{chan_small_forward.1} parent=1 // pred_check
      _
    $region47: #{chan_small_forward.1} parent=1 // pred_check_branch
      %55 = sbr.rel (0) target = $region49
    $region48: #{chan_small_forward.1} parent=1 // pred_region
      _
    $region49: #{chan_small_forward.1} parent=1 // pred_fallthru
      _
    // Predicated region
    $region50: #{chan_small_forward.1} parent=1 // pred_check
      _
    $region51: #{chan_small_forward.1} parent=1 // pred_check_branch
      %57 = sbr.rel (0) target = $region53
    $region52: #{chan_small_forward.1} parent=1 // pred_region
      _
    $region53: #{chan_small_forward.1} parent=1 // pred_fallthru
      _
    // Predicated region
    $region54: #{chan_small_forward.1} parent=1 // pred_check
      _
    $region55: #{chan_small_forward.1} parent=1 // pred_check_branch
      %59 = sbr.rel (0) target = $region57
    $region56: #{chan_small_forward.1} parent=1 // pred_region
      _
    $region57: #{chan_small_forward.1} parent=1 // pred_fallthru
      _
    // Predicated region
    $region58: #{chan_small_forward.1} parent=1 // pred_check
      _
    $region59: #{chan_small_forward.1} parent=1 // pred_check_branch
      %61 = sbr.rel (0) target = $region61
    $region60: #{chan_small_forward.1} parent=1 // pred_region
      _
    $region61: #{chan_small_forward.1} parent=1 // pred_fallthru
      _
    // Predicated region
    $region62: #{chan_small_forward.1} parent=1 // pred_check
      _
    $region63: #{chan_small_forward.1} parent=1 // pred_check_branch
      %63 = sbr.rel (0) target = $region65
    $region64: #{chan_small_forward.1} parent=1 // pred_region
      _
    $region65: #{chan_small_forward.1} parent=1 // pred_fallthru
      _
    // Predicated region
    $region66: #{chan_small_forward.1} parent=1 // pred_check
      _
    $region67: #{chan_small_forward.1} parent=1 // pred_check_branch
      %65 = sbr.rel (0) target = $region69
    $region68: #{chan_small_forward.1} parent=1 // pred_region
      _
    $region69: #{chan_small_forward.1} parent=1 // pred_fallthru
      _
    // Predicated region
    $region70: #{chan_small_forward.1} parent=1 // pred_check
      _
    $region71: #{chan_small_forward.1} parent=1 // pred_check_branch
      %67 = sbr.rel (0) target = $region73
    $region72: #{chan_small_forward.1} parent=1 // pred_region
      _
    $region73: #{chan_small_forward.1} parent=1 // pred_fallthru
      _
    // Predicated region
    $region74: #{chan_small_forward.1} parent=1 // pred_check
      _
    $region75: #{chan_small_forward.1} parent=1 // pred_check_branch
      %69 = sbr.rel (0) target = $region77
    $region76: #{chan_small_forward.1} parent=1 // pred_region
      _
    $region77: #{chan_small_forward.1} parent=1 // pred_fallthru
      _
    // Predicated region
    $region78: #{chan_small_forward.1} parent=1 // pred_check
      _
    $region79: #{chan_small_forward.1} parent=1 // pred_check_branch
      %71 = sbr.rel (0) target = $region81
    $region80: #{chan_small_forward.1} parent=1 // pred_region
      _
    $region81: #{chan_small_forward.1} parent=1 // pred_fallthru
      _
    // Predicated region
    $region82: #{chan_small_forward.1} parent=1 // pred_check
      _
    $region83: #{chan_small_forward.1} parent=1 // pred_check_branch
      %73 = sbr.rel (0) target = $region85
    $region84: #{chan_small_forward.1} parent=1 // pred_region
      _
    $region85: #{chan_small_forward.1} parent=1 // pred_fallthru
      _
    // Predicated region
    $region86: #{chan_small_forward.1} parent=1 // pred_check
      _
    $region87: #{chan_small_forward.1} parent=1 // pred_check_branch
      %75 = sbr.rel (0) target = $region89
    $region88: #{chan_small_forward.1} parent=1 // pred_region
      _
    $region89: #{chan_small_forward.1} parent=1 // pred_fallthru
      _
    // Predicated region
    $region90: #{chan_small_forward.1} parent=1 // pred_check
      _
    $region91: #{chan_small_forward.1} parent=1 // pred_check_branch
      %77 = sbr.rel (0) target = $region93
    $region92: #{chan_small_forward.1} parent=1 // pred_region
      _
    $region93: #{chan_small_forward.1} parent=1 // pred_fallthru
      _
    // Predicated region
    $region94: #{chan_small_forward.1} parent=1 // pred_check
      _
    $region95: #{chan_small_forward.1} parent=1 // pred_check_branch
      %79 = sbr.rel (0) target = $region97
    $region96: #{chan_small_forward.1} parent=1 // pred_region
      _
    $region97: #{chan_small_forward.1} parent=1 // pred_fallthru
      _
    // Predicated region
    $region98: #{chan_small_forward.1} parent=1 // pred_check
      _
    $region99: #{chan_small_forward.1} parent=1 // pred_check_branch
      %81 = sbr.rel (0) target = $region101
    $region100: #{chan_small_forward.1} parent=1 // pred_region
      _
    $region101: #{chan_small_forward.1} parent=1 // pred_fallthru
      _
    // Predicated region
    $region102: #{chan_small_forward.1} parent=1 // pred_check
      _
    $region103: #{chan_small_forward.1} parent=1 // pred_check_branch
      %83 = sbr.rel (0) target = $region105
    $region104: #{chan_small_forward.1} parent=1 // pred_region
      _
    $region105: #{chan_small_forward.1} parent=1 // pred_fallthru
      _
    %v84 = vld [vmem:[%s0] sm:$0xff]
    %v85 = vld [vmem:[%s0 + $0x8] sm:$0xff]
    %v86 = vld [vmem:[%s0 + $0x10] sm:$0xff]
    %v87 = vld [vmem:[%s0 + $0x18] sm:$0xff]
    %v88 = vld [vmem:[%s0 + $0x20] sm:$0xff]
    %v89 = vld [vmem:[%s0 + $0x28] sm:$0xff]
    %v90 = vld [vmem:[%s0 + $0x30] sm:$0xff]
    %v91 = vld [vmem:[%s1] sm:$0xff]
    %v92 = vld [vmem:[%s1 + $0x8] sm:$0xff]
    %v93 = vld [vmem:[%s1 + $0x10] sm:$0xff]
    %v94 = vld [vmem:[%s1 + $0x18] sm:$0xff]
    %v95 = vld [vmem:[%s1 + $0x20] sm:$0xff]
    %v96 = vld [vmem:[%s1 + $0x28] sm:$0xff]
    %v97 = vld [vmem:[%s1 + $0x30] sm:$0xff]
    %vm98 = vcmask 457728
    %v100 = vsel %vm98, %v91, 0
    %v103 = vsel %vm98, %v92, 0
    %v106 = vsel %vm98, %v93, 0
    %v109 = vsel %vm98, %v94, 0
    %v112 = vsel %vm98, %v95, 0
    %v115 = vsel %vm98, %v96, 0
    %v118 = vsel %vm98, %v97, 0
    %120 = vmatprep.subr.mxu0 0.0
    %121 = vmatpush1.msra.mxu0 %v84
    %122 = vmatprep.subr.mxu0 0.0
    %123 = vmatpush1.msra.mxu0 %v85
    %124 = vmatprep.subr.mxu0 0.0
    %125 = vmatpush1.msra.mxu0 %v86
    %126 = vmatprep.subr.mxu0 0.0
    %127 = vmatpush1.msra.mxu0 %v87
    %128 = vmatprep.subr.mxu0 0.0
    %129 = vmatpush1.msra.mxu0 %v88
    %130 = vmatprep.subr.mxu0 0.0
    %131 = vmatpush1.msra.mxu0 %v89
    %132 = vmatprep.subr.mxu0 0.0
    %133 = vmatpush1.msra.mxu0 %v90
    %134 = vmatprep.subr.mxu0 0.0
    %135 = vmatpush1.msra.mxu0 0.0
    %136 = vmatprep.subr.mxu0 0.0
    %137 = vmatpush1.msra.mxu0 0.0
    %138 = vmatprep.subr.mxu0 0.0
    %139 = vmatpush1.msra.mxu0 0.0
    %140 = vmatprep.subr.mxu0 0.0
    %141 = vmatpush1.msra.mxu0 0.0
    %142 = vmatprep.subr.mxu0 0.0
    %143 = vmatpush1.msra.mxu0 0.0
    %144 = vmatprep.subr.mxu0 0.0
    %145 = vmatpush1.msra.mxu0 0.0
    %146 = vmatprep.subr.mxu0 0.0
    %147 = vmatpush1.msra.mxu0 0.0
    %148 = vmatprep.subr.mxu0 0.0
    %149 = vmatpush1.msra.mxu0 0.0
    %150 = vmatprep.subr.mxu0 0.0
    %151 = vmatpush1.msra.mxu0 0.0
    %152 = vmatprep.subr.mxu0 0.0
    %153 = vmatpush1.msra.mxu0 0.0
    %154 = vmatprep.subr.mxu0 0.0
    %155 = vmatpush1.msra.mxu0 0.0
    %156 = vmatprep.subr.mxu0 0.0
    %157 = vmatpush1.msra.mxu0 0.0
    %158 = vmatprep.subr.mxu0 0.0
    %159 = vmatpush1.msra.mxu0 0.0
    %160 = vmatprep.subr.mxu0 0.0
    %161 = vmatpush1.msra.mxu0 0.0
    %162 = vmatprep.subr.mxu0 0.0
    %163 = vmatpush1.msra.mxu0 0.0
    %164 = vmatprep.subr.mxu0 0.0
    %165 = vmatpush1.msra.mxu0 0.0
    %166 = vmatprep.subr.mxu0 0.0
    %167 = vmatpush1.msra.mxu0 0.0
    %168 = vmatprep.subr.mxu0 0.0
    %169 = vmatpush1.msra.mxu0 0.0
    %170 = vmatprep.subr.mxu0 0.0
    %171 = vmatpush1.msra.mxu0 0.0
    %172 = vmatprep.subr.mxu0 0.0
    %173 = vmatpush1.msra.mxu0 0.0
    %174 = vmatprep.subr.mxu0 0.0
    %175 = vmatpush1.msra.mxu0 0.0
    %176 = vmatprep.subr.mxu0 0.0
    %177 = vmatpush1.msra.mxu0 0.0
    %178 = vmatprep.subr.mxu0 0.0
    %179 = vmatpush1.msra.mxu0 0.0
    %180 = vmatprep.subr.mxu0 0.0
    %181 = vmatpush1.msra.mxu0 0.0
    %182 = vmatprep.subr.mxu0 0.0
    %183 = vmatpush1.msra.mxu0 0.0
    %184 = vmatprep.mubr.f32.mxu0 0.0
    %185 = vmatmul.mubr.f32.gmra.mrb[0].mxu0 %v100
    %v186 = vpop.f32.mrb[0].mxu0
    %v187 = vadd.f32 0.0, %v186
    %v188 = vpop.f32.mrb[0].mxu0
    %189 = vmatprep.mubr.f32.mxu0 0.0
    %190 = vmatmul.mubr.f32.gmra.mrb[0].mxu0 %v103
    %v191 = vpop.f32.mrb[0].mxu0
    %v192 = vadd.f32 0.0, %v191
    %v193 = vpop.f32.mrb[0].mxu0
    %194 = vmatprep.mubr.f32.mxu0 0.0
    %195 = vmatmul.mubr.f32.gmra.mrb[0].mxu0 %v106
    %v196 = vpop.f32.mrb[0].mxu0
    %v197 = vadd.f32 0.0, %v196
    %v198 = vpop.f32.mrb[0].mxu0
    %199 = vmatprep.mubr.f32.mxu0 0.0
    %200 = vmatmul.mubr.f32.gmra.mrb[0].mxu0 %v109
    %v201 = vpop.f32.mrb[0].mxu0
    %v202 = vadd.f32 0.0, %v201
    %v203 = vpop.f32.mrb[0].mxu0
    %204 = vmatprep.mubr.f32.mxu0 0.0
    %205 = vmatmul.mubr.f32.gmra.mrb[0].mxu0 %v112
    %v206 = vpop.f32.mrb[0].mxu0
    %v207 = vadd.f32 0.0, %v206
    %v208 = vpop.f32.mrb[0].mxu0
    %209 = vmatprep.mubr.f32.mxu0 0.0
    %210 = vmatmul.mubr.f32.gmra.mrb[0].mxu0 %v115
    %v211 = vpop.f32.mrb[0].mxu0
    %v212 = vadd.f32 0.0, %v211
    %v213 = vpop.f32.mrb[0].mxu0
    %214 = vmatprep.mubr.f32.mxu0 0.0
    %215 = vmatmul.mubr.f32.gmra.mrb[0].mxu0 %v118
    %v216 = vpop.f32.mrb[0].mxu0
    %v217 = vadd.f32 0.0, %v216
    %v218 = vpop.f32.mrb[0].mxu0
    %219 = vdwg.mxu0
    %s220 = scalar_lea.vmem %s1, 56
    %v221 = vld [vmem:[%s220] sm:$0xff]
    %v222 = vld [vmem:[%s220 + $0x8] sm:$0xff]
    %v223 = vld [vmem:[%s220 + $0x10] sm:$0xff]
    %v224 = vld [vmem:[%s220 + $0x18] sm:$0xff]
    %v225 = vld [vmem:[%s220 + $0x20] sm:$0xff]
    %v226 = vld [vmem:[%s220 + $0x28] sm:$0xff]
    %v227 = vld [vmem:[%s220 + $0x30] sm:$0xff]
    %v229 = vsel %vm98, %v221, 0
    %v232 = vsel %vm98, %v222, 0
    %v235 = vsel %vm98, %v223, 0
    %v238 = vsel %vm98, %v224, 0
    %v241 = vsel %vm98, %v225, 0
    %v244 = vsel %vm98, %v226, 0
    %v247 = vsel %vm98, %v227, 0
    %249 = vmatprep.subr.mxu0 0.0
    %250 = vmatpush1.msra.mxu0 %v84
    %251 = vmatprep.subr.mxu0 0.0
    %252 = vmatpush1.msra.mxu0 %v85
    %253 = vmatprep.subr.mxu0 0.0
    %254 = vmatpush1.msra.mxu0 %v86
    %255 = vmatprep.subr.mxu0 0.0
    %256 = vmatpush1.msra.mxu0 %v87
    %257 = vmatprep.subr.mxu0 0.0
    %258 = vmatpush1.msra.mxu0 %v88
    %259 = vmatprep.subr.mxu0 0.0
    %260 = vmatpush1.msra.mxu0 %v89
    %261 = vmatprep.subr.mxu0 0.0
    %262 = vmatpush1.msra.mxu0 %v90
    %263 = vmatprep.subr.mxu0 0.0
    %264 = vmatpush1.msra.mxu0 0.0
    %265 = vmatprep.subr.mxu0 0.0
    %266 = vmatpush1.msra.mxu0 0.0
    %267 = vmatprep.subr.mxu0 0.0
    %268 = vmatpush1.msra.mxu0 0.0
    %269 = vmatprep.subr.mxu0 0.0
    %270 = vmatpush1.msra.mxu0 0.0
    %271 = vmatprep.subr.mxu0 0.0
    %272 = vmatpush1.msra.mxu0 0.0
    %273 = vmatprep.subr.mxu0 0.0
    %274 = vmatpush1.msra.mxu0 0.0
    %275 = vmatprep.subr.mxu0 0.0
    %276 = vmatpush1.msra.mxu0 0.0
    %277 = vmatprep.subr.mxu0 0.0
    %278 = vmatpush1.msra.mxu0 0.0
    %279 = vmatprep.subr.mxu0 0.0
    %280 = vmatpush1.msra.mxu0 0.0
    %281 = vmatprep.subr.mxu0 0.0
    %282 = vmatpush1.msra.mxu0 0.0
    %283 = vmatprep.subr.mxu0 0.0
    %284 = vmatpush1.msra.mxu0 0.0
    %285 = vmatprep.subr.mxu0 0.0
    %286 = vmatpush1.msra.mxu0 0.0
    %287 = vmatprep.subr.mxu0 0.0
    %288 = vmatpush1.msra.mxu0 0.0
    %289 = vmatprep.subr.mxu0 0.0
    %290 = vmatpush1.msra.mxu0 0.0
    %291 = vmatprep.subr.mxu0 0.0
    %292 = vmatpush1.msra.mxu0 0.0
    %293 = vmatprep.subr.mxu0 0.0
    %294 = vmatpush1.msra.mxu0 0.0
    %295 = vmatprep.subr.mxu0 0.0
    %296 = vmatpush1.msra.mxu0 0.0
    %297 = vmatprep.subr.mxu0 0.0
    %298 = vmatpush1.msra.mxu0 0.0
    %299 = vmatprep.subr.mxu0 0.0
    %300 = vmatpush1.msra.mxu0 0.0
    %301 = vmatprep.subr.mxu0 0.0
    %302 = vmatpush1.msra.mxu0 0.0
    %303 = vmatprep.subr.mxu0 0.0
    %304 = vmatpush1.msra.mxu0 0.0
    %305 = vmatprep.subr.mxu0 0.0
    %306 = vmatpush1.msra.mxu0 0.0
    %307 = vmatprep.subr.mxu0 0.0
    %308 = vmatpush1.msra.mxu0 0.0
    %309 = vmatprep.subr.mxu0 0.0
    %310 = vmatpush1.msra.mxu0 0.0
    %311 = vmatprep.subr.mxu0 0.0
    %312 = vmatpush1.msra.mxu0 0.0
    %313 = vmatprep.mubr.f32.mxu0 0.0
    %314 = vmatmul.mubr.f32.gmra.mrb[0].mxu0 %v229
    %v315 = vpop.f32.mrb[0].mxu0
    %v316 = vadd.f32 0.0, %v315
    %v317 = vpop.f32.mrb[0].mxu0
    %318 = vmatprep.mubr.f32.mxu0 0.0
    %319 = vmatmul.mubr.f32.gmra.mrb[0].mxu0 %v232
    %v320 = vpop.f32.mrb[0].mxu0
    %v321 = vadd.f32 0.0, %v320
    %v322 = vpop.f32.mrb[0].mxu0
    %323 = vmatprep.mubr.f32.mxu0 0.0
    %324 = vmatmul.mubr.f32.gmra.mrb[0].mxu0 %v235
    %v325 = vpop.f32.mrb[0].mxu0
    %v326 = vadd.f32 0.0, %v325
    %v327 = vpop.f32.mrb[0].mxu0
    %328 = vmatprep.mubr.f32.mxu0 0.0
    %329 = vmatmul.mubr.f32.gmra.mrb[0].mxu0 %v238
    %v330 = vpop.f32.mrb[0].mxu0
    %v331 = vadd.f32 0.0, %v330
    %v332 = vpop.f32.mrb[0].mxu0
    %333 = vmatprep.mubr.f32.mxu0 0.0
    %334 = vmatmul.mubr.f32.gmra.mrb[0].mxu0 %v241
    %v335 = vpop.f32.mrb[0].mxu0
    %v336 = vadd.f32 0.0, %v335
    %v337 = vpop.f32.mrb[0].mxu0
    %338 = vmatprep.mubr.f32.mxu0 0.0
    %339 = vmatmul.mubr.f32.gmra.mrb[0].mxu0 %v244
    %v340 = vpop.f32.mrb[0].mxu0
    %v341 = vadd.f32 0.0, %v340
    %v342 = vpop.f32.mrb[0].mxu0
    %343 = vmatprep.mubr.f32.mxu0 0.0
    %344 = vmatmul.mubr.f32.gmra.mrb[0].mxu0 %v247
    %v345 = vpop.f32.mrb[0].mxu0
    %v346 = vadd.f32 0.0, %v345
    %v347 = vpop.f32.mrb[0].mxu0
    %348 = vdwg.mxu0
    %v349 = vld [vmem:[%s2] sm:$0xff]
    %v350 = vld [vmem:[%s2 + $0x8] sm:$0xff]
    %v351 = vld [vmem:[%s2 + $0x10] sm:$0xff]
    %v352 = vld [vmem:[%s2 + $0x18] sm:$0xf]
    %s353 = scalar_lea.vmem %s2, 32
    %v354 = vld [vmem:[%s353] sm:$0xff]
    %v355 = vld [vmem:[%s353 + $0x8] sm:$0xff]
    %v356 = vld [vmem:[%s353 + $0x10] sm:$0xff]
    %v357 = vld [vmem:[%s353 + $0x18] sm:$0xf]
    %vm358 = vcmask 228352
    %v360 = vsel %vm358, %v84, 0
    %v363 = vsel %vm358, %v85, 0
    %v366 = vsel %vm358, %v86, 0
    %v369 = vsel %vm358, %v87, 0
    %v372 = vsel %vm358, %v88, 0
    %v375 = vsel %vm358, %v89, 0
    %v378 = vsel %vm358, %v90, 0
    %vm380 = vcmask 1043456
    %v382 = vsel %vm380, %v357, 0
    %384 = vmatprep.subr.mxu0 0.0
    %385 = vmatpush1.msra.mxu0 %v354
    %386 = vmatprep.subr.mxu0 0.0
    %387 = vmatpush1.msra.mxu0 %v355
    %388 = vmatprep.subr.mxu0 0.0
    %389 = vmatpush1.msra.mxu0 %v356
    %390 = vmatprep.subr.mxu0 0.0
    %391 = vmatpush1.msra.mxu0 %v382
    %392 = vmatprep.subr.mxu0 0.0
    %393 = vmatpush1.msra.mxu0 0.0
    %394 = vmatprep.subr.mxu0 0.0
    %395 = vmatpush1.msra.mxu0 0.0
    %396 = vmatprep.subr.mxu0 0.0
    %397 = vmatpush1.msra.mxu0 0.0
    %398 = vmatprep.subr.mxu0 0.0
    %399 = vmatpush1.msra.mxu0 0.0
    %400 = vmatprep.subr.mxu0 0.0
    %401 = vmatpush1.msra.mxu0 0.0
    %402 = vmatprep.subr.mxu0 0.0
    %403 = vmatpush1.msra.mxu0 0.0
    %404 = vmatprep.subr.mxu0 0.0
    %405 = vmatpush1.msra.mxu0 0.0
    %406 = vmatprep.subr.mxu0 0.0
    %407 = vmatpush1.msra.mxu0 0.0
    %408 = vmatprep.subr.mxu0 0.0
    %409 = vmatpush1.msra.mxu0 0.0
    %410 = vmatprep.subr.mxu0 0.0
    %411 = vmatpush1.msra.mxu0 0.0
    %412 = vmatprep.subr.mxu0 0.0
    %413 = vmatpush1.msra.mxu0 0.0
    %414 = vmatprep.subr.mxu0 0.0
    %415 = vmatpush1.msra.mxu0 0.0
    %416 = vmatprep.subr.mxu0 0.0
    %417 = vmatpush1.msra.mxu0 0.0
    %418 = vmatprep.subr.mxu0 0.0
    %419 = vmatpush1.msra.mxu0 0.0
    %420 = vmatprep.subr.mxu0 0.0
    %421 = vmatpush1.msra.mxu0 0.0
    %422 = vmatprep.subr.mxu0 0.0
    %423 = vmatpush1.msra.mxu0 0.0
    %424 = vmatprep.subr.mxu0 0.0
    %425 = vmatpush1.msra.mxu0 0.0
    %426 = vmatprep.subr.mxu0 0.0
    %427 = vmatpush1.msra.mxu0 0.0
    %428 = vmatprep.subr.mxu0 0.0
    %429 = vmatpush1.msra.mxu0 0.0
    %430 = vmatprep.subr.mxu0 0.0
    %431 = vmatpush1.msra.mxu0 0.0
    %432 = vmatprep.subr.mxu0 0.0
    %433 = vmatpush1.msra.mxu0 0.0
    %434 = vmatprep.subr.mxu0 0.0
    %435 = vmatpush1.msra.mxu0 0.0
    %436 = vmatprep.subr.mxu0 0.0
    %437 = vmatpush1.msra.mxu0 0.0
    %438 = vmatprep.subr.mxu0 0.0
    %439 = vmatpush1.msra.mxu0 0.0
    %440 = vmatprep.subr.mxu0 0.0
    %441 = vmatpush1.msra.mxu0 0.0
    %442 = vmatprep.subr.mxu0 0.0
    %443 = vmatpush1.msra.mxu0 0.0
    %444 = vmatprep.subr.mxu0 0.0
    %445 = vmatpush1.msra.mxu0 0.0
    %446 = vmatprep.subr.mxu0 0.0
    %447 = vmatpush1.msra.mxu0 0.0
    %448 = vmatprep.mubr.f32.mxu0 0.0
    %449 = vmatmul.mubr.f32.gmra.mrb[0].mxu0 %v360
    %v450 = vpop.f32.mrb[0].mxu0
    %v451 = vadd.f32 0.0, %v450
    %v452 = vpop.f32.mrb[0].mxu0
    %453 = vmatprep.mubr.f32.mxu0 0.0
    %454 = vmatmul.mubr.f32.gmra.mrb[0].mxu0 %v363
    %v455 = vpop.f32.mrb[0].mxu0
    %v456 = vadd.f32 0.0, %v455
    %v457 = vpop.f32.mrb[0].mxu0
    %458 = vmatprep.mubr.f32.mxu0 0.0
    %459 = vmatmul.mubr.f32.gmra.mrb[0].mxu0 %v366
    %v460 = vpop.f32.mrb[0].mxu0
    %v461 = vadd.f32 0.0, %v460
    %v462 = vpop.f32.mrb[0].mxu0
    %463 = vmatprep.mubr.f32.mxu0 0.0
    %464 = vmatmul.mubr.f32.gmra.mrb[0].mxu0 %v369
    %v465 = vpop.f32.mrb[0].mxu0
    %v466 = vadd.f32 0.0, %v465
    %v467 = vpop.f32.mrb[0].mxu0
    %468 = vmatprep.mubr.f32.mxu0 0.0
    %469 = vmatmul.mubr.f32.gmra.mrb[0].mxu0 %v372
    %v470 = vpop.f32.mrb[0].mxu0
    %v471 = vadd.f32 0.0, %v470
    %v472 = vpop.f32.mrb[0].mxu0
    %473 = vmatprep.mubr.f32.mxu0 0.0
    %474 = vmatmul.mubr.f32.gmra.mrb[0].mxu0 %v375
    %v475 = vpop.f32.mrb[0].mxu0
    %v476 = vadd.f32 0.0, %v475
    %v477 = vpop.f32.mrb[0].mxu0
    %478 = vmatprep.mubr.f32.mxu0 0.0
    %479 = vmatmul.mubr.f32.gmra.mrb[0].mxu0 %v378
    %v480 = vpop.f32.mrb[0].mxu0
    %v481 = vadd.f32 0.0, %v480
    %v482 = vpop.f32.mrb[0].mxu0
    %483 = vdwg.mxu0
    %v485 = vsel %vm358, %v187, 0
    %v488 = vsel %vm358, %v192, 0
    %v491 = vsel %vm358, %v197, 0
    %v494 = vsel %vm358, %v202, 0
    %v497 = vsel %vm358, %v207, 0
    %v500 = vsel %vm358, %v212, 0
    %v503 = vsel %vm358, %v217, 0
    %v506 = vsel %vm380, %v352, 0
    %508 = vmatprep.subr.mxu0 0.0
    %509 = vmatpush1.msra.mxu0 %v349
    %510 = vmatprep.subr.mxu0 0.0
    %511 = vmatpush1.msra.mxu0 %v350
    %512 = vmatprep.subr.mxu0 0.0
    %513 = vmatpush1.msra.mxu0 %v351
    %514 = vmatprep.subr.mxu0 0.0
    %515 = vmatpush1.msra.mxu0 %v506
    %516 = vmatprep.subr.mxu0 0.0
    %517 = vmatpush1.msra.mxu0 0.0
    %518 = vmatprep.subr.mxu0 0.0
    %519 = vmatpush1.msra.mxu0 0.0
    %520 = vmatprep.subr.mxu0 0.0
    %521 = vmatpush1.msra.mxu0 0.0
    %522 = vmatprep.subr.mxu0 0.0
    %523 = vmatpush1.msra.mxu0 0.0
    %524 = vmatprep.subr.mxu0 0.0
    %525 = vmatpush1.msra.mxu0 0.0
    %526 = vmatprep.subr.mxu0 0.0
    %527 = vmatpush1.msra.mxu0 0.0
    %528 = vmatprep.subr.mxu0 0.0
    %529 = vmatpush1.msra.mxu0 0.0
    %530 = vmatprep.subr.mxu0 0.0
    %531 = vmatpush1.msra.mxu0 0.0
    %532 = vmatprep.subr.mxu0 0.0
    %533 = vmatpush1.msra.mxu0 0.0
    %534 = vmatprep.subr.mxu0 0.0
    %535 = vmatpush1.msra.mxu0 0.0
    %536 = vmatprep.subr.mxu0 0.0
    %537 = vmatpush1.msra.mxu0 0.0
    %538 = vmatprep.subr.mxu0 0.0
    %539 = vmatpush1.msra.mxu0 0.0
    %540 = vmatprep.subr.mxu0 0.0
    %541 = vmatpush1.msra.mxu0 0.0
    %542 = vmatprep.subr.mxu0 0.0
    %543 = vmatpush1.msra.mxu0 0.0
    %544 = vmatprep.subr.mxu0 0.0
    %545 = vmatpush1.msra.mxu0 0.0
    %546 = vmatprep.subr.mxu0 0.0
    %547 = vmatpush1.msra.mxu0 0.0
    %548 = vmatprep.subr.mxu0 0.0
    %549 = vmatpush1.msra.mxu0 0.0
    %550 = vmatprep.subr.mxu0 0.0
    %551 = vmatpush1.msra.mxu0 0.0
    %552 = vmatprep.subr.mxu0 0.0
    %553 = vmatpush1.msra.mxu0 0.0
    %554 = vmatprep.subr.mxu0 0.0
    %555 = vmatpush1.msra.mxu0 0.0
    %556 = vmatprep.subr.mxu0 0.0
    %557 = vmatpush1.msra.mxu0 0.0
    %558 = vmatprep.subr.mxu0 0.0
    %559 = vmatpush1.msra.mxu0 0.0
    %560 = vmatprep.subr.mxu0 0.0
    %561 = vmatpush1.msra.mxu0 0.0
    %562 = vmatprep.subr.mxu0 0.0
    %563 = vmatpush1.msra.mxu0 0.0
    %564 = vmatprep.subr.mxu0 0.0
    %565 = vmatpush1.msra.mxu0 0.0
    %566 = vmatprep.subr.mxu0 0.0
    %567 = vmatpush1.msra.mxu0 0.0
    %568 = vmatprep.subr.mxu0 0.0
    %569 = vmatpush1.msra.mxu0 0.0
    %570 = vmatprep.subr.mxu0 0.0
    %571 = vmatpush1.msra.mxu0 0.0
    %572 = vmatprep.mubr.f32.mxu0 0.0
    %573 = vmatmul.mubr.f32.gmra.mrb[0].mxu0 %v485
    %v574 = vpop.f32.mrb[0].mxu0
    %v575 = vadd.f32 %v451, %v574
    %v576 = vpop.f32.mrb[0].mxu0
    %577 = vmatprep.mubr.f32.mxu0 0.0
    %578 = vmatmul.mubr.f32.gmra.mrb[0].mxu0 %v488
    %v579 = vpop.f32.mrb[0].mxu0
    %v580 = vadd.f32 %v456, %v579
    %v581 = vpop.f32.mrb[0].mxu0
    %582 = vmatprep.mubr.f32.mxu0 0.0
    %583 = vmatmul.mubr.f32.gmra.mrb[0].mxu0 %v491
    %v584 = vpop.f32.mrb[0].mxu0
    %v585 = vadd.f32 %v461, %v584
    %v586 = vpop.f32.mrb[0].mxu0
    %587 = vmatprep.mubr.f32.mxu0 0.0
    %588 = vmatmul.mubr.f32.gmra.mrb[0].mxu0 %v494
    %v589 = vpop.f32.mrb[0].mxu0
    %v590 = vadd.f32 %v466, %v589
    %v591 = vpop.f32.mrb[0].mxu0
    %592 = vmatprep.mubr.f32.mxu0 0.0
    %593 = vmatmul.mubr.f32.gmra.mrb[0].mxu0 %v497
    %v594 = vpop.f32.mrb[0].mxu0
    %v595 = vadd.f32 %v471, %v594
    %v596 = vpop.f32.mrb[0].mxu0
    %597 = vmatprep.mubr.f32.mxu0 0.0
    %598 = vmatmul.mubr.f32.gmra.mrb[0].mxu0 %v500
    %v599 = vpop.f32.mrb[0].mxu0
    %v600 = vadd.f32 %v476, %v599
    %v601 = vpop.f32.mrb[0].mxu0
    %602 = vmatprep.mubr.f32.mxu0 0.0
    %603 = vmatmul.mubr.f32.gmra.mrb[0].mxu0 %v503
    %v604 = vpop.f32.mrb[0].mxu0
    %v605 = vadd.f32 %v481, %v604
    %v606 = vpop.f32.mrb[0].mxu0
    %607 = vdwg.mxu0
    %s608 = scalar_lea.vmem %s2, 64
    %v609 = vld [vmem:[%s608] sm:$0xff]
    %v610 = vld [vmem:[%s608 + $0x8] sm:$0xff]
    %v611 = vld [vmem:[%s608 + $0x10] sm:$0xff]
    %v612 = vld [vmem:[%s608 + $0x18] sm:$0xf]
    %v614 = vsel %vm358, %v316, 0
    %v617 = vsel %vm358, %v321, 0
    %v620 = vsel %vm358, %v326, 0
    %v623 = vsel %vm358, %v331, 0
    %v626 = vsel %vm358, %v336, 0
    %v629 = vsel %vm358, %v341, 0
    %v632 = vsel %vm358, %v346, 0
    %v635 = vsel %vm380, %v612, 0
    %637 = vmatprep.subr.mxu0 0.0
    %638 = vmatpush1.msra.mxu0 %v609
    %639 = vmatprep.subr.mxu0 0.0
    %640 = vmatpush1.msra.mxu0 %v610
    %641 = vmatprep.subr.mxu0 0.0
    %642 = vmatpush1.msra.mxu0 %v611
    %643 = vmatprep.subr.mxu0 0.0
    %644 = vmatpush1.msra.mxu0 %v635
    %645 = vmatprep.subr.mxu0 0.0
    %646 = vmatpush1.msra.mxu0 0.0
    %647 = vmatprep.subr.mxu0 0.0
    %648 = vmatpush1.msra.mxu0 0.0
    %649 = vmatprep.subr.mxu0 0.0
    %650 = vmatpush1.msra.mxu0 0.0
    %651 = vmatprep.subr.mxu0 0.0
    %652 = vmatpush1.msra.mxu0 0.0
    %653 = vmatprep.subr.mxu0 0.0
    %654 = vmatpush1.msra.mxu0 0.0
    %655 = vmatprep.subr.mxu0 0.0
    %656 = vmatpush1.msra.mxu0 0.0
    %657 = vmatprep.subr.mxu0 0.0
    %658 = vmatpush1.msra.mxu0 0.0
    %659 = vmatprep.subr.mxu0 0.0
    %660 = vmatpush1.msra.mxu0 0.0
    %661 = vmatprep.subr.mxu0 0.0
    %662 = vmatpush1.msra.mxu0 0.0
    %663 = vmatprep.subr.mxu0 0.0
    %664 = vmatpush1.msra.mxu0 0.0
    %665 = vmatprep.subr.mxu0 0.0
    %666 = vmatpush1.msra.mxu0 0.0
    %667 = vmatprep.subr.mxu0 0.0
    %668 = vmatpush1.msra.mxu0 0.0
    %669 = vmatprep.subr.mxu0 0.0
    %670 = vmatpush1.msra.mxu0 0.0
    %671 = vmatprep.subr.mxu0 0.0
    %672 = vmatpush1.msra.mxu0 0.0
    %673 = vmatprep.subr.mxu0 0.0
    %674 = vmatpush1.msra.mxu0 0.0
    %675 = vmatprep.subr.mxu0 0.0
    %676 = vmatpush1.msra.mxu0 0.0
    %677 = vmatprep.subr.mxu0 0.0
    %678 = vmatpush1.msra.mxu0 0.0
    %679 = vmatprep.subr.mxu0 0.0
    %680 = vmatpush1.msra.mxu0 0.0
    %681 = vmatprep.subr.mxu0 0.0
    %682 = vmatpush1.msra.mxu0 0.0
    %683 = vmatprep.subr.mxu0 0.0
    %684 = vmatpush1.msra.mxu0 0.0
    %685 = vmatprep.subr.mxu0 0.0
    %686 = vmatpush1.msra.mxu0 0.0
    %687 = vmatprep.subr.mxu0 0.0
    %688 = vmatpush1.msra.mxu0 0.0
    %689 = vmatprep.subr.mxu0 0.0
    %690 = vmatpush1.msra.mxu0 0.0
    %691 = vmatprep.subr.mxu0 0.0
    %692 = vmatpush1.msra.mxu0 0.0
    %693 = vmatprep.subr.mxu0 0.0
    %694 = vmatpush1.msra.mxu0 0.0
    %695 = vmatprep.subr.mxu0 0.0
    %696 = vmatpush1.msra.mxu0 0.0
    %697 = vmatprep.subr.mxu0 0.0
    %698 = vmatpush1.msra.mxu0 0.0
    %699 = vmatprep.subr.mxu0 0.0
    %700 = vmatpush1.msra.mxu0 0.0
    %701 = vmatprep.mubr.f32.mxu0 0.0
    %702 = vmatmul.mubr.f32.gmra.mrb[0].mxu0 %v614
    %v703 = vpop.f32.mrb[0].mxu0
    %v704 = vadd.f32 0.0, %v703
    %v705 = vpop.f32.mrb[0].mxu0
    %706 = vmatprep.mubr.f32.mxu0 0.0
    %707 = vmatmul.mubr.f32.gmra.mrb[0].mxu0 %v617
    %v708 = vpop.f32.mrb[0].mxu0
    %v709 = vadd.f32 0.0, %v708
    %v710 = vpop.f32.mrb[0].mxu0
    %711 = vmatprep.mubr.f32.mxu0 0.0
    %712 = vmatmul.mubr.f32.gmra.mrb[0].mxu0 %v620
    %v713 = vpop.f32.mrb[0].mxu0
    %v714 = vadd.f32 0.0, %v713
    %v715 = vpop.f32.mrb[0].mxu0
    %716 = vmatprep.mubr.f32.mxu0 0.0
    %717 = vmatmul.mubr.f32.gmra.mrb[0].mxu0 %v623
    %v718 = vpop.f32.mrb[0].mxu0
    %v719 = vadd.f32 0.0, %v718
    %v720 = vpop.f32.mrb[0].mxu0
    %721 = vmatprep.mubr.f32.mxu0 0.0
    %722 = vmatmul.mubr.f32.gmra.mrb[0].mxu0 %v626
    %v723 = vpop.f32.mrb[0].mxu0
    %v724 = vadd.f32 0.0, %v723
    %v725 = vpop.f32.mrb[0].mxu0
    %726 = vmatprep.mubr.f32.mxu0 0.0
    %727 = vmatmul.mubr.f32.gmra.mrb[0].mxu0 %v629
    %v728 = vpop.f32.mrb[0].mxu0
    %v729 = vadd.f32 0.0, %v728
    %v730 = vpop.f32.mrb[0].mxu0
    %731 = vmatprep.mubr.f32.mxu0 0.0
    %732 = vmatmul.mubr.f32.gmra.mrb[0].mxu0 %v632
    %v733 = vpop.f32.mrb[0].mxu0
    %v734 = vadd.f32 0.0, %v733
    %v735 = vpop.f32.mrb[0].mxu0
    %736 = vdwg.mxu0
    %v737 = vadd.f32 %v575, %v704
    %v738 = vadd.f32 %v580, %v709
    %v739 = vadd.f32 %v585, %v714
    %v740 = vadd.f32 %v590, %v719
    %v741 = vadd.f32 %v595, %v724
    %v742 = vadd.f32 %v600, %v729
    %v743 = vadd.f32 %v605, %v734
    %v744 = vld [vmem:[%s3] sm:$0x1]
    %v746 = vlaneseq
    %v747 = vshrl.u32 %v746, 7
    %v748 = vsub.s32 0, %v747
    %v749 = vrot.slane %v744, %v748
    %v751 = vadd.f32 %v737, %v749
    %v752 = vadd.f32 %v738, %v749
    %v753 = vadd.f32 %v739, %v749
    %v754 = vadd.f32 %v740, %v749
    %v755 = vadd.f32 %v741, %v749
    %v756 = vadd.f32 %v742, %v749
    %v757 = vadd.f32 %v743, %v749
    %v758 = vmax.f32 %v751, 0.0
    %v759 = vmax.f32 %v752, 0.0
    %v760 = vmax.f32 %v753, 0.0
    %v761 = vmax.f32 %v754, 0.0
    %v762 = vmax.f32 %v755, 0.0
    %v763 = vmax.f32 %v756, 0.0
    %v764 = vmax.f32 %v757, 0.0
    %v765 = vld [vmem:[%s4] sm:$0xff]
    %v766 = vld [vmem:[%s4 + $0x8] sm:$0xff]
    %v767 = vld [vmem:[%s4 + $0x10] sm:$0xff]
    %v768 = vld [vmem:[%s4 + $0x18] sm:$0xff]
    %v769 = vld [vmem:[%s4 + $0x20] sm:$0xff]
    %v770 = vld [vmem:[%s4 + $0x28] sm:$0xff]
    %v771 = vld [vmem:[%s4 + $0x30] sm:$0xff]
    %v772 = vld [vmem:[%s4 + $0x38] sm:$0xff]
    %v773 = vld [vmem:[%s4 + $0x40] sm:$0xff]
    %v774 = vld [vmem:[%s4 + $0x48] sm:$0xff]
    %v775 = vld [vmem:[%s4 + $0x50] sm:$0xff]
    %v776 = vld [vmem:[%s4 + $0x58] sm:$0xff]
    %v777 = vld [vmem:[%s4 + $0x60] sm:$0xff]
    %v778 = vld [vmem:[%s4 + $0x68] sm:$0xff]
    %vm779 = vcmask 916480
    %v781 = vsel %vm779, %v758, 0
    %v784 = vsel %vm779, %v759, 0
    %v787 = vsel %vm779, %v760, 0
    %v790 = vsel %vm779, %v761, 0
    %v793 = vsel %vm779, %v762, 0
    %v796 = vsel %vm779, %v763, 0
    %v799 = vsel %vm779, %v764, 0
    %801 = vmatprep.subr.mxu0 0.0
    %802 = vmatpush1.msra.mxu0 %v765
    %803 = vmatprep.subr.mxu0 0.0
    %804 = vmatpush1.msra.mxu0 %v766
    %805 = vmatprep.subr.mxu0 0.0
    %806 = vmatpush1.msra.mxu0 %v767
    %807 = vmatprep.subr.mxu0 0.0
    %808 = vmatpush1.msra.mxu0 %v768
    %809 = vmatprep.subr.mxu0 0.0
    %810 = vmatpush1.msra.mxu0 %v769
    %811 = vmatprep.subr.mxu0 0.0
    %812 = vmatpush1.msra.mxu0 %v770
    %813 = vmatprep.subr.mxu0 0.0
    %814 = vmatpush1.msra.mxu0 %v771
    %815 = vmatprep.subr.mxu0 0.0
    %816 = vmatpush1.msra.mxu0 %v772
    %817 = vmatprep.subr.mxu0 0.0
    %818 = vmatpush1.msra.mxu0 %v773
    %819 = vmatprep.subr.mxu0 0.0
    %820 = vmatpush1.msra.mxu0 %v774
    %821 = vmatprep.subr.mxu0 0.0
    %822 = vmatpush1.msra.mxu0 %v775
    %823 = vmatprep.subr.mxu0 0.0
    %824 = vmatpush1.msra.mxu0 %v776
    %825 = vmatprep.subr.mxu0 0.0
    %826 = vmatpush1.msra.mxu0 %v777
    %827 = vmatprep.subr.mxu0 0.0
    %828 = vmatpush1.msra.mxu0 %v778
    %829 = vmatprep.subr.mxu0 0.0
    %830 = vmatpush1.msra.mxu0 0.0
    %831 = vmatprep.subr.mxu0 0.0
    %832 = vmatpush1.msra.mxu0 0.0
    %833 = vmatprep.subr.mxu0 0.0
    %834 = vmatpush1.msra.mxu0 0.0
    %835 = vmatprep.subr.mxu0 0.0
    %836 = vmatpush1.msra.mxu0 0.0
    %837 = vmatprep.subr.mxu0 0.0
    %838 = vmatpush1.msra.mxu0 0.0
    %839 = vmatprep.subr.mxu0 0.0
    %840 = vmatpush1.msra.mxu0 0.0
    %841 = vmatprep.subr.mxu0 0.0
    %842 = vmatpush1.msra.mxu0 0.0
    %843 = vmatprep.subr.mxu0 0.0
    %844 = vmatpush1.msra.mxu0 0.0
    %845 = vmatprep.subr.mxu0 0.0
    %846 = vmatpush1.msra.mxu0 0.0
    %847 = vmatprep.subr.mxu0 0.0
    %848 = vmatpush1.msra.mxu0 0.0
    %849 = vmatprep.subr.mxu0 0.0
    %850 = vmatpush1.msra.mxu0 0.0
    %851 = vmatprep.subr.mxu0 0.0
    %852 = vmatpush1.msra.mxu0 0.0
    %853 = vmatprep.subr.mxu0 0.0
    %854 = vmatpush1.msra.mxu0 0.0
    %855 = vmatprep.subr.mxu0 0.0
    %856 = vmatpush1.msra.mxu0 0.0
    %857 = vmatprep.subr.mxu0 0.0
    %858 = vmatpush1.msra.mxu0 0.0
    %859 = vmatprep.subr.mxu0 0.0
    %860 = vmatpush1.msra.mxu0 0.0
    %861 = vmatprep.subr.mxu0 0.0
    %862 = vmatpush1.msra.mxu0 0.0
    %863 = vmatprep.subr.mxu0 0.0
    %864 = vmatpush1.msra.mxu0 0.0
    %865 = vmatprep.mubr.f32.mxu0 0.0
    %866 = vmatmul.mubr.f32.gmra.mrb[0].mxu0 %v781
    %v867 = vpop.f32.mrb[0].mxu0
    %v868 = vadd.f32 0.0, %v867
    %v869 = vpop.f32.mrb[0].mxu0
    %870 = vmatprep.mubr.f32.mxu0 0.0
    %871 = vmatmul.mubr.f32.gmra.mrb[0].mxu0 %v784
    %v872 = vpop.f32.mrb[0].mxu0
    %v873 = vadd.f32 0.0, %v872
    %v874 = vpop.f32.mrb[0].mxu0
    %875 = vmatprep.mubr.f32.mxu0 0.0
    %876 = vmatmul.mubr.f32.gmra.mrb[0].mxu0 %v787
    %v877 = vpop.f32.mrb[0].mxu0
    %v878 = vadd.f32 0.0, %v877
    %v879 = vpop.f32.mrb[0].mxu0
    %880 = vmatprep.mubr.f32.mxu0 0.0
    %881 = vmatmul.mubr.f32.gmra.mrb[0].mxu0 %v790
    %v882 = vpop.f32.mrb[0].mxu0
    %v883 = vadd.f32 0.0, %v882
    %v884 = vpop.f32.mrb[0].mxu0
    %885 = vmatprep.mubr.f32.mxu0 0.0
    %886 = vmatmul.mubr.f32.gmra.mrb[0].mxu0 %v793
    %v887 = vpop.f32.mrb[0].mxu0
    %v888 = vadd.f32 0.0, %v887
    %v889 = vpop.f32.mrb[0].mxu0
    %890 = vmatprep.mubr.f32.mxu0 0.0
    %891 = vmatmul.mubr.f32.gmra.mrb[0].mxu0 %v796
    %v892 = vpop.f32.mrb[0].mxu0
    %v893 = vadd.f32 0.0, %v892
    %v894 = vpop.f32.mrb[0].mxu0
    %895 = vmatprep.mubr.f32.mxu0 0.0
    %896 = vmatmul.mubr.f32.gmra.mrb[0].mxu0 %v799
    %v897 = vpop.f32.mrb[0].mxu0
    %v898 = vadd.f32 0.0, %v897
    %v899 = vpop.f32.mrb[0].mxu0
    %900 = vdwg.mxu0
    %s901 = scalar_lea.vmem %s4, 112
    %v902 = vld [vmem:[%s901] sm:$0xff]
    %v903 = vld [vmem:[%s901 + $0x8] sm:$0xff]
    %v904 = vld [vmem:[%s901 + $0x10] sm:$0xff]
    %v905 = vld [vmem:[%s901 + $0x18] sm:$0xff]
    %v906 = vld [vmem:[%s901 + $0x20] sm:$0xff]
    %v907 = vld [vmem:[%s901 + $0x28] sm:$0xff]
    %v908 = vld [vmem:[%s901 + $0x30] sm:$0xff]
    %v909 = vld [vmem:[%s901 + $0x38] sm:$0xff]
    %v910 = vld [vmem:[%s901 + $0x40] sm:$0xff]
    %v911 = vld [vmem:[%s901 + $0x48] sm:$0xff]
    %v912 = vld [vmem:[%s901 + $0x50] sm:$0xff]
    %v913 = vld [vmem:[%s901 + $0x58] sm:$0xff]
    %v914 = vld [vmem:[%s901 + $0x60] sm:$0xff]
    %v915 = vld [vmem:[%s901 + $0x68] sm:$0xff]
    %916 = vmatprep.subr.mxu0 0.0
    %917 = vmatpush1.msra.mxu0 %v902
    %918 = vmatprep.subr.mxu0 0.0
    %919 = vmatpush1.msra.mxu0 %v903
    %920 = vmatprep.subr.mxu0 0.0
    %921 = vmatpush1.msra.mxu0 %v904
    %922 = vmatprep.subr.mxu0 0.0
    %923 = vmatpush1.msra.mxu0 %v905
    %924 = vmatprep.subr.mxu0 0.0
    %925 = vmatpush1.msra.mxu0 %v906
    %926 = vmatprep.subr.mxu0 0.0
    %927 = vmatpush1.msra.mxu0 %v907
    %928 = vmatprep.subr.mxu0 0.0
    %929 = vmatpush1.msra.mxu0 %v908
    %930 = vmatprep.subr.mxu0 0.0
    %931 = vmatpush1.msra.mxu0 %v909
    %932 = vmatprep.subr.mxu0 0.0
    %933 = vmatpush1.msra.mxu0 %v910
    %934 = vmatprep.subr.mxu0 0.0
    %935 = vmatpush1.msra.mxu0 %v911
    %936 = vmatprep.subr.mxu0 0.0
    %937 = vmatpush1.msra.mxu0 %v912
    %938 = vmatprep.subr.mxu0 0.0
    %939 = vmatpush1.msra.mxu0 %v913
    %940 = vmatprep.subr.mxu0 0.0
    %941 = vmatpush1.msra.mxu0 %v914
    %942 = vmatprep.subr.mxu0 0.0
    %943 = vmatpush1.msra.mxu0 %v915
    %944 = vmatprep.subr.mxu0 0.0
    %945 = vmatpush1.msra.mxu0 0.0
    %946 = vmatprep.subr.mxu0 0.0
    %947 = vmatpush1.msra.mxu0 0.0
    %948 = vmatprep.subr.mxu0 0.0
    %949 = vmatpush1.msra.mxu0 0.0
    %950 = vmatprep.subr.mxu0 0.0
    %951 = vmatpush1.msra.mxu0 0.0
    %952 = vmatprep.subr.mxu0 0.0
    %953 = vmatpush1.msra.mxu0 0.0
    %954 = vmatprep.subr.mxu0 0.0
    %955 = vmatpush1.msra.mxu0 0.0
    %956 = vmatprep.subr.mxu0 0.0
    %957 = vmatpush1.msra.mxu0 0.0
    %958 = vmatprep.subr.mxu0 0.0
    %959 = vmatpush1.msra.mxu0 0.0
    %960 = vmatprep.subr.mxu0 0.0
    %961 = vmatpush1.msra.mxu0 0.0
    %962 = vmatprep.subr.mxu0 0.0
    %963 = vmatpush1.msra.mxu0 0.0
    %964 = vmatprep.subr.mxu0 0.0
    %965 = vmatpush1.msra.mxu0 0.0
    %966 = vmatprep.subr.mxu0 0.0
    %967 = vmatpush1.msra.mxu0 0.0
    %968 = vmatprep.subr.mxu0 0.0
    %969 = vmatpush1.msra.mxu0 0.0
    %970 = vmatprep.subr.mxu0 0.0
    %971 = vmatpush1.msra.mxu0 0.0
    %972 = vmatprep.subr.mxu0 0.0
    %973 = vmatpush1.msra.mxu0 0.0
    %974 = vmatprep.subr.mxu0 0.0
    %975 = vmatpush1.msra.mxu0 0.0
    %976 = vmatprep.subr.mxu0 0.0
    %977 = vmatpush1.msra.mxu0 0.0
    %978 = vmatprep.subr.mxu0 0.0
    %979 = vmatpush1.msra.mxu0 0.0
    %980 = vmatprep.mubr.f32.mxu0 0.0
    %981 = vmatmul.mubr.f32.gmra.mrb[0].mxu0 %v781
    %v982 = vpop.f32.mrb[0].mxu0
    %v983 = vadd.f32 0.0, %v982
    %v984 = vpop.f32.mrb[0].mxu0
    %985 = vmatprep.mubr.f32.mxu0 0.0
    %986 = vmatmul.mubr.f32.gmra.mrb[0].mxu0 %v784
    %v987 = vpop.f32.mrb[0].mxu0
    %v988 = vadd.f32 0.0, %v987
    %v989 = vpop.f32.mrb[0].mxu0
    %990 = vmatprep.mubr.f32.mxu0 0.0
    %991 = vmatmul.mubr.f32.gmra.mrb[0].mxu0 %v787
    %v992 = vpop.f32.mrb[0].mxu0
    %v993 = vadd.f32 0.0, %v992
    %v994 = vpop.f32.mrb[0].mxu0
    %995 = vmatprep.mubr.f32.mxu0 0.0
    %996 = vmatmul.mubr.f32.gmra.mrb[0].mxu0 %v790
    %v997 = vpop.f32.mrb[0].mxu0
    %v998 = vadd.f32 0.0, %v997
    %v999 = vpop.f32.mrb[0].mxu0
    %1000 = vmatprep.mubr.f32.mxu0 0.0
    %1001 = vmatmul.mubr.f32.gmra.mrb[0].mxu0 %v793
    %v1002 = vpop.f32.mrb[0].mxu0
    %v1003 = vadd.f32 0.0, %v1002
    %v1004 = vpop.f32.mrb[0].mxu0
    %1005 = vmatprep.mubr.f32.mxu0 0.0
    %1006 = vmatmul.mubr.f32.gmra.mrb[0].mxu0 %v796
    %v1007 = vpop.f32.mrb[0].mxu0
    %v1008 = vadd.f32 0.0, %v1007
    %v1009 = vpop.f32.mrb[0].mxu0
    %1010 = vmatprep.mubr.f32.mxu0 0.0
    %1011 = vmatmul.mubr.f32.gmra.mrb[0].mxu0 %v799
    %v1012 = vpop.f32.mrb[0].mxu0
    %v1013 = vadd.f32 0.0, %v1012
    %v1014 = vpop.f32.mrb[0].mxu0
    %1015 = vdwg.mxu0
    %v1016 = vmax.f32 %v868, %v983
    %v1017 = vmax.f32 %v873, %v988
    %v1018 = vmax.f32 %v878, %v993
    %v1019 = vmax.f32 %v883, %v998
    %v1020 = vmax.f32 %v888, %v1003
    %v1021 = vmax.f32 %v893, %v1008
    %v1022 = vmax.f32 %v898, %v1013
    %v1023 = vld [vmem:[%s5] sm:$0xff]
    %v1024 = vld [vmem:[%s5 + $0x8] sm:$0xff]
    %v1025 = vld [vmem:[%s5 + $0x10] sm:$0xff]
    %v1026 = vld [vmem:[%s5 + $0x18] sm:$0xf]
    %v1028 = vsel %vm98, %v1023, 0
    %v1031 = vsel %vm98, %v1024, 0
    %v1034 = vsel %vm98, %v1025, 0
    %v1037 = vsel %vm98, %v1026, 0
    %1039 = vmatprep.subr.mxu0 0.0
    %1040 = vmatpush1.msra.mxu0 %v1016
    %1041 = vmatprep.subr.mxu0 0.0
    %1042 = vmatpush1.msra.mxu0 %v1017
    %1043 = vmatprep.subr.mxu0 0.0
    %1044 = vmatpush1.msra.mxu0 %v1018
    %1045 = vmatprep.subr.mxu0 0.0
    %1046 = vmatpush1.msra.mxu0 %v1019
    %1047 = vmatprep.subr.mxu0 0.0
    %1048 = vmatpush1.msra.mxu0 %v1020
    %1049 = vmatprep.subr.mxu0 0.0
    %1050 = vmatpush1.msra.mxu0 %v1021
    %1051 = vmatprep.subr.mxu0 0.0
    %1052 = vmatpush1.msra.mxu0 %v1022
    %1053 = vmatprep.subr.mxu0 0.0
    %1054 = vmatpush1.msra.mxu0 0.0
    %1055 = vmatprep.subr.mxu0 0.0
    %1056 = vmatpush1.msra.mxu0 0.0
    %1057 = vmatprep.subr.mxu0 0.0
    %1058 = vmatpush1.msra.mxu0 0.0
    %1059 = vmatprep.subr.mxu0 0.0
    %1060 = vmatpush1.msra.mxu0 0.0
    %1061 = vmatprep.subr.mxu0 0.0
    %1062 = vmatpush1.msra.mxu0 0.0
    %1063 = vmatprep.subr.mxu0 0.0
    %1064 = vmatpush1.msra.mxu0 0.0
    %1065 = vmatprep.subr.mxu0 0.0
    %1066 = vmatpush1.msra.mxu0 0.0
    %1067 = vmatprep.subr.mxu0 0.0
    %1068 = vmatpush1.msra.mxu0 0.0
    %1069 = vmatprep.subr.mxu0 0.0
    %1070 = vmatpush1.msra.mxu0 0.0
    %1071 = vmatprep.subr.mxu0 0.0
    %1072 = vmatpush1.msra.mxu0 0.0
    %1073 = vmatprep.subr.mxu0 0.0
    %1074 = vmatpush1.msra.mxu0 0.0
    %1075 = vmatprep.subr.mxu0 0.0
    %1076 = vmatpush1.msra.mxu0 0.0
    %1077 = vmatprep.subr.mxu0 0.0
    %1078 = vmatpush1.msra.mxu0 0.0
    %1079 = vmatprep.subr.mxu0 0.0
    %1080 = vmatpush1.msra.mxu0 0.0
    %1081 = vmatprep.subr.mxu0 0.0
    %1082 = vmatpush1.msra.mxu0 0.0
    %1083 = vmatprep.subr.mxu0 0.0
    %1084 = vmatpush1.msra.mxu0 0.0
    %1085 = vmatprep.subr.mxu0 0.0
    %1086 = vmatpush1.msra.mxu0 0.0
    %1087 = vmatprep.subr.mxu0 0.0
    %1088 = vmatpush1.msra.mxu0 0.0
    %1089 = vmatprep.subr.mxu0 0.0
    %1090 = vmatpush1.msra.mxu0 0.0
    %1091 = vmatprep.subr.mxu0 0.0
    %1092 = vmatpush1.msra.mxu0 0.0
    %1093 = vmatprep.subr.mxu0 0.0
    %1094 = vmatpush1.msra.mxu0 0.0
    %1095 = vmatprep.subr.mxu0 0.0
    %1096 = vmatpush1.msra.mxu0 0.0
    %1097 = vmatprep.subr.mxu0 0.0
    %1098 = vmatpush1.msra.mxu0 0.0
    %1099 = vmatprep.subr.mxu0 0.0
    %1100 = vmatpush1.msra.mxu0 0.0
    %1101 = vmatprep.subr.mxu0 0.0
    %1102 = vmatpush1.msra.mxu0 0.0
    %1103 = vmatprep.mubr.f32.mxu0 0.0
    %1104 = vmatmul.mubr.f32.gmra.mrb[0].mxu0 %v1028
    %v1105 = vpop.f32.mrb[0].mxu0
    %v1106 = vadd.f32 0.0, %v1105
    %v1107 = vpop.f32.mrb[0].mxu0
    %1108 = vmatprep.mubr.f32.mxu0 0.0
    %1109 = vmatmul.mubr.f32.gmra.mrb[0].mxu0 %v1031
    %v1110 = vpop.f32.mrb[0].mxu0
    %v1111 = vadd.f32 0.0, %v1110
    %v1112 = vpop.f32.mrb[0].mxu0
    %1113 = vmatprep.mubr.f32.mxu0 0.0
    %1114 = vmatmul.mubr.f32.gmra.mrb[0].mxu0 %v1034
    %v1115 = vpop.f32.mrb[0].mxu0
    %v1116 = vadd.f32 0.0, %v1115
    %v1117 = vpop.f32.mrb[0].mxu0
    %1118 = vmatprep.mubr.f32.mxu0 0.0
    %1119 = vmatmul.mubr.f32.gmra.mrb[0].mxu0 %v1037
    %v1120 = vpop.f32.mrb[0].mxu0
    %v1121 = vadd.f32 0.0, %v1120
    %v1122 = vpop.f32.mrb[0].mxu0
    %1123 = vdwg.mxu0
    %s1124 = scalar_lea.vmem %s5, 32
    %v1125 = vld [vmem:[%s1124] sm:$0xff]
    %v1126 = vld [vmem:[%s1124 + $0x8] sm:$0xff]
    %v1127 = vld [vmem:[%s1124 + $0x10] sm:$0xff]
    %v1128 = vld [vmem:[%s1124 + $0x18] sm:$0xf]
    %v1130 = vsel %vm98, %v1125, 0
    %v1133 = vsel %vm98, %v1126, 0
    %v1136 = vsel %vm98, %v1127, 0
    %v1139 = vsel %vm98, %v1128, 0
    %1141 = vmatprep.subr.mxu0 0.0
    %1142 = vmatpush1.msra.mxu0 %v1016
    %1143 = vmatprep.subr.mxu0 0.0
    %1144 = vmatpush1.msra.mxu0 %v1017
    %1145 = vmatprep.subr.mxu0 0.0
    %1146 = vmatpush1.msra.mxu0 %v1018
    %1147 = vmatprep.subr.mxu0 0.0
    %1148 = vmatpush1.msra.mxu0 %v1019
    %1149 = vmatprep.subr.mxu0 0.0
    %1150 = vmatpush1.msra.mxu0 %v1020
    %1151 = vmatprep.subr.mxu0 0.0
    %1152 = vmatpush1.msra.mxu0 %v1021
    %1153 = vmatprep.subr.mxu0 0.0
    %1154 = vmatpush1.msra.mxu0 %v1022
    %1155 = vmatprep.subr.mxu0 0.0
    %1156 = vmatpush1.msra.mxu0 0.0
    %1157 = vmatprep.subr.mxu0 0.0
    %1158 = vmatpush1.msra.mxu0 0.0
    %1159 = vmatprep.subr.mxu0 0.0
    %1160 = vmatpush1.msra.mxu0 0.0
    %1161 = vmatprep.subr.mxu0 0.0
    %1162 = vmatpush1.msra.mxu0 0.0
    %1163 = vmatprep.subr.mxu0 0.0
    %1164 = vmatpush1.msra.mxu0 0.0
    %1165 = vmatprep.subr.mxu0 0.0
    %1166 = vmatpush1.msra.mxu0 0.0
    %1167 = vmatprep.subr.mxu0 0.0
    %1168 = vmatpush1.msra.mxu0 0.0
    %1169 = vmatprep.subr.mxu0 0.0
    %1170 = vmatpush1.msra.mxu0 0.0
    %1171 = vmatprep.subr.mxu0 0.0
    %1172 = vmatpush1.msra.mxu0 0.0
    %1173 = vmatprep.subr.mxu0 0.0
    %1174 = vmatpush1.msra.mxu0 0.0
    %1175 = vmatprep.subr.mxu0 0.0
    %1176 = vmatpush1.msra.mxu0 0.0
    %1177 = vmatprep.subr.mxu0 0.0
    %1178 = vmatpush1.msra.mxu0 0.0
    %1179 = vmatprep.subr.mxu0 0.0
    %1180 = vmatpush1.msra.mxu0 0.0
    %1181 = vmatprep.subr.mxu0 0.0
    %1182 = vmatpush1.msra.mxu0 0.0
    %1183 = vmatprep.subr.mxu0 0.0
    %1184 = vmatpush1.msra.mxu0 0.0
    %1185 = vmatprep.subr.mxu0 0.0
    %1186 = vmatpush1.msra.mxu0 0.0
    %1187 = vmatprep.subr.mxu0 0.0
    %1188 = vmatpush1.msra.mxu0 0.0
    %1189 = vmatprep.subr.mxu0 0.0
    %1190 = vmatpush1.msra.mxu0 0.0
    %1191 = vmatprep.subr.mxu0 0.0
    %1192 = vmatpush1.msra.mxu0 0.0
    %1193 = vmatprep.subr.mxu0 0.0
    %1194 = vmatpush1.msra.mxu0 0.0
    %1195 = vmatprep.subr.mxu0 0.0
    %1196 = vmatpush1.msra.mxu0 0.0
    %1197 = vmatprep.subr.mxu0 0.0
    %1198 = vmatpush1.msra.mxu0 0.0
    %1199 = vmatprep.subr.mxu0 0.0
    %1200 = vmatpush1.msra.mxu0 0.0
    %1201 = vmatprep.subr.mxu0 0.0
    %1202 = vmatpush1.msra.mxu0 0.0
    %1203 = vmatprep.subr.mxu0 0.0
    %1204 = vmatpush1.msra.mxu0 0.0
    %1205 = vmatprep.mubr.f32.mxu0 0.0
    %1206 = vmatmul.mubr.f32.gmra.mrb[0].mxu0 %v1130
    %v1207 = vpop.f32.mrb[0].mxu0
    %v1208 = vadd.f32 0.0, %v1207
    %v1209 = vpop.f32.mrb[0].mxu0
    %1210 = vmatprep.mubr.f32.mxu0 0.0
    %1211 = vmatmul.mubr.f32.gmra.mrb[0].mxu0 %v1133
    %v1212 = vpop.f32.mrb[0].mxu0
    %v1213 = vadd.f32 0.0, %v1212
    %v1214 = vpop.f32.mrb[0].mxu0
    %1215 = vmatprep.mubr.f32.mxu0 0.0
    %1216 = vmatmul.mubr.f32.gmra.mrb[0].mxu0 %v1136
    %v1217 = vpop.f32.mrb[0].mxu0
    %v1218 = vadd.f32 0.0, %v1217
    %v1219 = vpop.f32.mrb[0].mxu0
    %1220 = vmatprep.mubr.f32.mxu0 0.0
    %1221 = vmatmul.mubr.f32.gmra.mrb[0].mxu0 %v1139
    %v1222 = vpop.f32.mrb[0].mxu0
    %v1223 = vadd.f32 0.0, %v1222
    %v1224 = vpop.f32.mrb[0].mxu0
    %1225 = vdwg.mxu0
    %v1226 = vmax.f32 %v1106, %v1208
    %v1227 = vmax.f32 %v1111, %v1213
    %v1228 = vmax.f32 %v1116, %v1218
    %v1229 = vmax.f32 %v1121, %v1223
    %v1230 = vld [vmem:[%s6] sm:$0xff]
    %v1231 = vld [vmem:[%s6 + $0x8] sm:$0xff]
    %v1232 = vld [vmem:[%s6 + $0x10] sm:$0xff]
    %v1233 = vld [vmem:[%s6 + $0x18] sm:$0xf]
    %v1235 = vsel %vm358, %v1230, 0
    %v1238 = vsel %vm358, %v1231, 0
    %v1241 = vsel %vm358, %v1232, 0
    %v1244 = vsel %vm358, %v1233, 0
    %v1247 = vsel %vm380, %v1229, 0
    %1249 = vmatprep.subr.mxu0 0.0
    %1250 = vmatpush1.msra.mxu0 %v1226
    %1251 = vmatprep.subr.mxu0 0.0
    %1252 = vmatpush1.msra.mxu0 %v1227
    %1253 = vmatprep.subr.mxu0 0.0
    %1254 = vmatpush1.msra.mxu0 %v1228
    %1255 = vmatprep.subr.mxu0 0.0
    %1256 = vmatpush1.msra.mxu0 %v1247
    %1257 = vmatprep.subr.mxu0 0.0
    %1258 = vmatpush1.msra.mxu0 0.0
    %1259 = vmatprep.subr.mxu0 0.0
    %1260 = vmatpush1.msra.mxu0 0.0
    %1261 = vmatprep.subr.mxu0 0.0
    %1262 = vmatpush1.msra.mxu0 0.0
    %1263 = vmatprep.subr.mxu0 0.0
    %1264 = vmatpush1.msra.mxu0 0.0
    %1265 = vmatprep.subr.mxu0 0.0
    %1266 = vmatpush1.msra.mxu0 0.0
    %1267 = vmatprep.subr.mxu0 0.0
    %1268 = vmatpush1.msra.mxu0 0.0
    %1269 = vmatprep.subr.mxu0 0.0
    %1270 = vmatpush1.msra.mxu0 0.0
    %1271 = vmatprep.subr.mxu0 0.0
    %1272 = vmatpush1.msra.mxu0 0.0
    %1273 = vmatprep.subr.mxu0 0.0
    %1274 = vmatpush1.msra.mxu0 0.0
    %1275 = vmatprep.subr.mxu0 0.0
    %1276 = vmatpush1.msra.mxu0 0.0
    %1277 = vmatprep.subr.mxu0 0.0
    %1278 = vmatpush1.msra.mxu0 0.0
    %1279 = vmatprep.subr.mxu0 0.0
    %1280 = vmatpush1.msra.mxu0 0.0
    %1281 = vmatprep.subr.mxu0 0.0
    %1282 = vmatpush1.msra.mxu0 0.0
    %1283 = vmatprep.subr.mxu0 0.0
    %1284 = vmatpush1.msra.mxu0 0.0
    %1285 = vmatprep.subr.mxu0 0.0
    %1286 = vmatpush1.msra.mxu0 0.0
    %1287 = vmatprep.subr.mxu0 0.0
    %1288 = vmatpush1.msra.mxu0 0.0
    %1289 = vmatprep.subr.mxu0 0.0
    %1290 = vmatpush1.msra.mxu0 0.0
    %1291 = vmatprep.subr.mxu0 0.0
    %1292 = vmatpush1.msra.mxu0 0.0
    %1293 = vmatprep.subr.mxu0 0.0
    %1294 = vmatpush1.msra.mxu0 0.0
    %1295 = vmatprep.subr.mxu0 0.0
    %1296 = vmatpush1.msra.mxu0 0.0
    %1297 = vmatprep.subr.mxu0 0.0
    %1298 = vmatpush1.msra.mxu0 0.0
    %1299 = vmatprep.subr.mxu0 0.0
    %1300 = vmatpush1.msra.mxu0 0.0
    %1301 = vmatprep.subr.mxu0 0.0
    %1302 = vmatpush1.msra.mxu0 0.0
    %1303 = vmatprep.subr.mxu0 0.0
    %1304 = vmatpush1.msra.mxu0 0.0
    %1305 = vmatprep.subr.mxu0 0.0
    %1306 = vmatpush1.msra.mxu0 0.0
    %1307 = vmatprep.subr.mxu0 0.0
    %1308 = vmatpush1.msra.mxu0 0.0
    %1309 = vmatprep.subr.mxu0 0.0
    %1310 = vmatpush1.msra.mxu0 0.0
    %1311 = vmatprep.subr.mxu0 0.0
    %1312 = vmatpush1.msra.mxu0 0.0
    %1313 = vmatprep.mubr.f32.mxu0 0.0
    %1314 = vmatmul.mubr.f32.gmra.mrb[0].mxu0 %v1235
    %v1315 = vpop.f32.mrb[0].mxu0
    %v1316 = vadd.f32 0.0, %v1315
    %v1317 = vpop.f32.mrb[0].mxu0
    %1318 = vmatprep.mubr.f32.mxu0 0.0
    %1319 = vmatmul.mubr.f32.gmra.mrb[0].mxu0 %v1238
    %v1320 = vpop.f32.mrb[0].mxu0
    %v1321 = vadd.f32 0.0, %v1320
    %v1322 = vpop.f32.mrb[0].mxu0
    %1323 = vmatprep.mubr.f32.mxu0 0.0
    %1324 = vmatmul.mubr.f32.gmra.mrb[0].mxu0 %v1241
    %v1325 = vpop.f32.mrb[0].mxu0
    %v1326 = vadd.f32 0.0, %v1325
    %v1327 = vpop.f32.mrb[0].mxu0
    %1328 = vmatprep.mubr.f32.mxu0 0.0
    %1329 = vmatmul.mubr.f32.gmra.mrb[0].mxu0 %v1244
    %v1330 = vpop.f32.mrb[0].mxu0
    %v1331 = vadd.f32 0.0, %v1330
    %v1332 = vpop.f32.mrb[0].mxu0
    %1333 = vdwg.mxu0
    %s1334 = scalar_lea.vmem %s6, 32
    %v1335 = vld [vmem:[%s1334] sm:$0xff]
    %v1336 = vld [vmem:[%s1334 + $0x8] sm:$0xff]
    %v1337 = vld [vmem:[%s1334 + $0x10] sm:$0xff]
    %v1338 = vld [vmem:[%s1334 + $0x18] sm:$0xf]
    %v1340 = vsel %vm358, %v1335, 0
    %v1343 = vsel %vm358, %v1336, 0
    %v1346 = vsel %vm358, %v1337, 0
    %v1349 = vsel %vm358, %v1338, 0
    %1351 = vmatprep.subr.mxu0 0.0
    %1352 = vmatpush1.msra.mxu0 %v1226
    %1353 = vmatprep.subr.mxu0 0.0
    %1354 = vmatpush1.msra.mxu0 %v1227
    %1355 = vmatprep.subr.mxu0 0.0
    %1356 = vmatpush1.msra.mxu0 %v1228
    %1357 = vmatprep.subr.mxu0 0.0
    %1358 = vmatpush1.msra.mxu0 %v1247
    %1359 = vmatprep.subr.mxu0 0.0
    %1360 = vmatpush1.msra.mxu0 0.0
    %1361 = vmatprep.subr.mxu0 0.0
    %1362 = vmatpush1.msra.mxu0 0.0
    %1363 = vmatprep.subr.mxu0 0.0
    %1364 = vmatpush1.msra.mxu0 0.0
    %1365 = vmatprep.subr.mxu0 0.0
    %1366 = vmatpush1.msra.mxu0 0.0
    %1367 = vmatprep.subr.mxu0 0.0
    %1368 = vmatpush1.msra.mxu0 0.0
    %1369 = vmatprep.subr.mxu0 0.0
    %1370 = vmatpush1.msra.mxu0 0.0
    %1371 = vmatprep.subr.mxu0 0.0
    %1372 = vmatpush1.msra.mxu0 0.0
    %1373 = vmatprep.subr.mxu0 0.0
    %1374 = vmatpush1.msra.mxu0 0.0
    %1375 = vmatprep.subr.mxu0 0.0
    %1376 = vmatpush1.msra.mxu0 0.0
    %1377 = vmatprep.subr.mxu0 0.0
    %1378 = vmatpush1.msra.mxu0 0.0
    %1379 = vmatprep.subr.mxu0 0.0
    %1380 = vmatpush1.msra.mxu0 0.0
    %1381 = vmatprep.subr.mxu0 0.0
    %1382 = vmatpush1.msra.mxu0 0.0
    %1383 = vmatprep.subr.mxu0 0.0
    %1384 = vmatpush1.msra.mxu0 0.0
    %1385 = vmatprep.subr.mxu0 0.0
    %1386 = vmatpush1.msra.mxu0 0.0
    %1387 = vmatprep.subr.mxu0 0.0
    %1388 = vmatpush1.msra.mxu0 0.0
    %1389 = vmatprep.subr.mxu0 0.0
    %1390 = vmatpush1.msra.mxu0 0.0
    %1391 = vmatprep.subr.mxu0 0.0
    %1392 = vmatpush1.msra.mxu0 0.0
    %1393 = vmatprep.subr.mxu0 0.0
    %1394 = vmatpush1.msra.mxu0 0.0
    %1395 = vmatprep.subr.mxu0 0.0
    %1396 = vmatpush1.msra.mxu0 0.0
    %1397 = vmatprep.subr.mxu0 0.0
    %1398 = vmatpush1.msra.mxu0 0.0
    %1399 = vmatprep.subr.mxu0 0.0
    %1400 = vmatpush1.msra.mxu0 0.0
    %1401 = vmatprep.subr.mxu0 0.0
    %1402 = vmatpush1.msra.mxu0 0.0
    %1403 = vmatprep.subr.mxu0 0.0
    %1404 = vmatpush1.msra.mxu0 0.0
    %1405 = vmatprep.subr.mxu0 0.0
    %1406 = vmatpush1.msra.mxu0 0.0
    %1407 = vmatprep.subr.mxu0 0.0
    %1408 = vmatpush1.msra.mxu0 0.0
    %1409 = vmatprep.subr.mxu0 0.0
    %1410 = vmatpush1.msra.mxu0 0.0
    %1411 = vmatprep.subr.mxu0 0.0
    %1412 = vmatpush1.msra.mxu0 0.0
    %1413 = vmatprep.subr.mxu0 0.0
    %1414 = vmatpush1.msra.mxu0 0.0
    %1415 = vmatprep.mubr.f32.mxu0 0.0
    %1416 = vmatmul.mubr.f32.gmra.mrb[0].mxu0 %v1340
    %v1417 = vpop.f32.mrb[0].mxu0
    %v1418 = vadd.f32 0.0, %v1417
    %v1419 = vpop.f32.mrb[0].mxu0
    %1420 = vmatprep.mubr.f32.mxu0 0.0
    %1421 = vmatmul.mubr.f32.gmra.mrb[0].mxu0 %v1343
    %v1422 = vpop.f32.mrb[0].mxu0
    %v1423 = vadd.f32 0.0, %v1422
    %v1424 = vpop.f32.mrb[0].mxu0
    %1425 = vmatprep.mubr.f32.mxu0 0.0
    %1426 = vmatmul.mubr.f32.gmra.mrb[0].mxu0 %v1346
    %v1427 = vpop.f32.mrb[0].mxu0
    %v1428 = vadd.f32 0.0, %v1427
    %v1429 = vpop.f32.mrb[0].mxu0
    %1430 = vmatprep.mubr.f32.mxu0 0.0
    %1431 = vmatmul.mubr.f32.gmra.mrb[0].mxu0 %v1349
    %v1432 = vpop.f32.mrb[0].mxu0
    %v1433 = vadd.f32 0.0, %v1432
    %v1434 = vpop.f32.mrb[0].mxu0
    %1435 = vdwg.mxu0
    %v1436 = vld [vmem:[%s7] sm:$0xff]
    %v1437 = vld [vmem:[%s7 + $0x8] sm:$0xff]
    %v1438 = vld [vmem:[%s7 + $0x10] sm:$0xff]
    %v1439 = vld [vmem:[%s7 + $0x18] sm:$0xff]
    %v1440 = vld [vmem:[%s7 + $0x20] sm:$0xff]
    %v1441 = vld [vmem:[%s7 + $0x28] sm:$0xff]
    %v1442 = vld [vmem:[%s7 + $0x30] sm:$0xff]
    %s1443 = scalar_lea.vmem %s7, 56
    %v1444 = vld [vmem:[%s1443] sm:$0xff]
    %v1445 = vld [vmem:[%s1443 + $0x8] sm:$0xff]
    %v1446 = vld [vmem:[%s1443 + $0x10] sm:$0xff]
    %v1447 = vld [vmem:[%s1443 + $0x18] sm:$0xff]
    %v1448 = vld [vmem:[%s1443 + $0x20] sm:$0xff]
    %v1449 = vld [vmem:[%s1443 + $0x28] sm:$0xff]
    %v1450 = vld [vmem:[%s1443 + $0x30] sm:$0xff]
    %v1452 = vsel %vm98, %v1226, 0
    %v1455 = vsel %vm98, %v1227, 0
    %v1458 = vsel %vm98, %v1228, 0
    %v1460 = vsel %vm98, %v1229, 0
    %1462 = vmatprep.subr.mxu0 0.0
    %1463 = vmatpush1.msra.mxu0 %v1444
    %1464 = vmatprep.subr.mxu0 0.0
    %1465 = vmatpush1.msra.mxu0 %v1445
    %1466 = vmatprep.subr.mxu0 0.0
    %1467 = vmatpush1.msra.mxu0 %v1446
    %1468 = vmatprep.subr.mxu0 0.0
    %1469 = vmatpush1.msra.mxu0 %v1447
    %1470 = vmatprep.subr.mxu0 0.0
    %1471 = vmatpush1.msra.mxu0 %v1448
    %1472 = vmatprep.subr.mxu0 0.0
    %1473 = vmatpush1.msra.mxu0 %v1449
    %1474 = vmatprep.subr.mxu0 0.0
    %1475 = vmatpush1.msra.mxu0 %v1450
    %1476 = vmatprep.subr.mxu0 0.0
    %1477 = vmatpush1.msra.mxu0 0.0
    %1478 = vmatprep.subr.mxu0 0.0
    %1479 = vmatpush1.msra.mxu0 0.0
    %1480 = vmatprep.subr.mxu0 0.0
    %1481 = vmatpush1.msra.mxu0 0.0
    %1482 = vmatprep.subr.mxu0 0.0
    %1483 = vmatpush1.msra.mxu0 0.0
    %1484 = vmatprep.subr.mxu0 0.0
    %1485 = vmatpush1.msra.mxu0 0.0
    %1486 = vmatprep.subr.mxu0 0.0
    %1487 = vmatpush1.msra.mxu0 0.0
    %1488 = vmatprep.subr.mxu0 0.0
    %1489 = vmatpush1.msra.mxu0 0.0
    %1490 = vmatprep.subr.mxu0 0.0
    %1491 = vmatpush1.msra.mxu0 0.0
    %1492 = vmatprep.subr.mxu0 0.0
    %1493 = vmatpush1.msra.mxu0 0.0
    %1494 = vmatprep.subr.mxu0 0.0
    %1495 = vmatpush1.msra.mxu0 0.0
    %1496 = vmatprep.subr.mxu0 0.0
    %1497 = vmatpush1.msra.mxu0 0.0
    %1498 = vmatprep.subr.mxu0 0.0
    %1499 = vmatpush1.msra.mxu0 0.0
    %1500 = vmatprep.subr.mxu0 0.0
    %1501 = vmatpush1.msra.mxu0 0.0
    %1502 = vmatprep.subr.mxu0 0.0
    %1503 = vmatpush1.msra.mxu0 0.0
    %1504 = vmatprep.subr.mxu0 0.0
    %1505 = vmatpush1.msra.mxu0 0.0
    %1506 = vmatprep.subr.mxu0 0.0
    %1507 = vmatpush1.msra.mxu0 0.0
    %1508 = vmatprep.subr.mxu0 0.0
    %1509 = vmatpush1.msra.mxu0 0.0
    %1510 = vmatprep.subr.mxu0 0.0
    %1511 = vmatpush1.msra.mxu0 0.0
    %1512 = vmatprep.subr.mxu0 0.0
    %1513 = vmatpush1.msra.mxu0 0.0
    %1514 = vmatprep.subr.mxu0 0.0
    %1515 = vmatpush1.msra.mxu0 0.0
    %1516 = vmatprep.subr.mxu0 0.0
    %1517 = vmatpush1.msra.mxu0 0.0
    %1518 = vmatprep.subr.mxu0 0.0
    %1519 = vmatpush1.msra.mxu0 0.0
    %1520 = vmatprep.subr.mxu0 0.0
    %1521 = vmatpush1.msra.mxu0 0.0
    %1522 = vmatprep.subr.mxu0 0.0
    %1523 = vmatpush1.msra.mxu0 0.0
    %1524 = vmatprep.subr.mxu0 0.0
    %1525 = vmatpush1.msra.mxu0 0.0
    %1526 = vmatprep.mubr.f32.mxu0 0.0
    %1527 = vmatmul.mubr.f32.gmra.mrb[0].mxu0 %v1452
    %v1528 = vpop.f32.mrb[0].mxu0
    %v1529 = vadd.f32 0.0, %v1528
    %v1530 = vpop.f32.mrb[0].mxu0
    %1531 = vmatprep.mubr.f32.mxu0 0.0
    %1532 = vmatmul.mubr.f32.gmra.mrb[0].mxu0 %v1455
    %v1533 = vpop.f32.mrb[0].mxu0
    %v1534 = vadd.f32 0.0, %v1533
    %v1535 = vpop.f32.mrb[0].mxu0
    %1536 = vmatprep.mubr.f32.mxu0 0.0
    %1537 = vmatmul.mubr.f32.gmra.mrb[0].mxu0 %v1458
    %v1538 = vpop.f32.mrb[0].mxu0
    %v1539 = vadd.f32 0.0, %v1538
    %v1540 = vpop.f32.mrb[0].mxu0
    %1541 = vmatprep.mubr.f32.mxu0 0.0
    %1542 = vmatmul.mubr.f32.gmra.mrb[0].mxu0 %v1460
    %v1543 = vpop.f32.mrb[0].mxu0
    %v1544 = vadd.f32 0.0, %v1543
    %v1545 = vpop.f32.mrb[0].mxu0
    %1546 = vdwg.mxu0
    %v1548 = vsel %vm98, %v1316, 0
    %v1551 = vsel %vm98, %v1321, 0
    %v1554 = vsel %vm98, %v1326, 0
    %v1557 = vsel %vm98, %v1331, 0
    %1559 = vmatprep.subr.mxu0 0.0
    %1560 = vmatpush1.msra.mxu0 %v1436
    %1561 = vmatprep.subr.mxu0 0.0
    %1562 = vmatpush1.msra.mxu0 %v1437
    %1563 = vmatprep.subr.mxu0 0.0
    %1564 = vmatpush1.msra.mxu0 %v1438
    %1565 = vmatprep.subr.mxu0 0.0
    %1566 = vmatpush1.msra.mxu0 %v1439
    %1567 = vmatprep.subr.mxu0 0.0
    %1568 = vmatpush1.msra.mxu0 %v1440
    %1569 = vmatprep.subr.mxu0 0.0
    %1570 = vmatpush1.msra.mxu0 %v1441
    %1571 = vmatprep.subr.mxu0 0.0
    %1572 = vmatpush1.msra.mxu0 %v1442
    %1573 = vmatprep.subr.mxu0 0.0
    %1574 = vmatpush1.msra.mxu0 0.0
    %1575 = vmatprep.subr.mxu0 0.0
    %1576 = vmatpush1.msra.mxu0 0.0
    %1577 = vmatprep.subr.mxu0 0.0
    %1578 = vmatpush1.msra.mxu0 0.0
    %1579 = vmatprep.subr.mxu0 0.0
    %1580 = vmatpush1.msra.mxu0 0.0
    %1581 = vmatprep.subr.mxu0 0.0
    %1582 = vmatpush1.msra.mxu0 0.0
    %1583 = vmatprep.subr.mxu0 0.0
    %1584 = vmatpush1.msra.mxu0 0.0
    %1585 = vmatprep.subr.mxu0 0.0
    %1586 = vmatpush1.msra.mxu0 0.0
    %1587 = vmatprep.subr.mxu0 0.0
    %1588 = vmatpush1.msra.mxu0 0.0
    %1589 = vmatprep.subr.mxu0 0.0
    %1590 = vmatpush1.msra.mxu0 0.0
    %1591 = vmatprep.subr.mxu0 0.0
    %1592 = vmatpush1.msra.mxu0 0.0
    %1593 = vmatprep.subr.mxu0 0.0
    %1594 = vmatpush1.msra.mxu0 0.0
    %1595 = vmatprep.subr.mxu0 0.0
    %1596 = vmatpush1.msra.mxu0 0.0
    %1597 = vmatprep.subr.mxu0 0.0
    %1598 = vmatpush1.msra.mxu0 0.0
    %1599 = vmatprep.subr.mxu0 0.0
    %1600 = vmatpush1.msra.mxu0 0.0
    %1601 = vmatprep.subr.mxu0 0.0
    %1602 = vmatpush1.msra.mxu0 0.0
    %1603 = vmatprep.subr.mxu0 0.0
    %1604 = vmatpush1.msra.mxu0 0.0
    %1605 = vmatprep.subr.mxu0 0.0
    %1606 = vmatpush1.msra.mxu0 0.0
    %1607 = vmatprep.subr.mxu0 0.0
    %1608 = vmatpush1.msra.mxu0 0.0
    %1609 = vmatprep.subr.mxu0 0.0
    %1610 = vmatpush1.msra.mxu0 0.0
    %1611 = vmatprep.subr.mxu0 0.0
    %1612 = vmatpush1.msra.mxu0 0.0
    %1613 = vmatprep.subr.mxu0 0.0
    %1614 = vmatpush1.msra.mxu0 0.0
    %1615 = vmatprep.subr.mxu0 0.0
    %1616 = vmatpush1.msra.mxu0 0.0
    %1617 = vmatprep.subr.mxu0 0.0
    %1618 = vmatpush1.msra.mxu0 0.0
    %1619 = vmatprep.subr.mxu0 0.0
    %1620 = vmatpush1.msra.mxu0 0.0
    %1621 = vmatprep.subr.mxu0 0.0
    %1622 = vmatpush1.msra.mxu0 0.0
    %1623 = vmatprep.mubr.f32.mxu0 0.0
    %1624 = vmatmul.mubr.f32.gmra.mrb[0].mxu0 %v1548
    %v1625 = vpop.f32.mrb[0].mxu0
    %v1626 = vadd.f32 %v1529, %v1625
    %v1627 = vpop.f32.mrb[0].mxu0
    %1628 = vmatprep.mubr.f32.mxu0 0.0
    %1629 = vmatmul.mubr.f32.gmra.mrb[0].mxu0 %v1551
    %v1630 = vpop.f32.mrb[0].mxu0
    %v1631 = vadd.f32 %v1534, %v1630
    %v1632 = vpop.f32.mrb[0].mxu0
    %1633 = vmatprep.mubr.f32.mxu0 0.0
    %1634 = vmatmul.mubr.f32.gmra.mrb[0].mxu0 %v1554
    %v1635 = vpop.f32.mrb[0].mxu0
    %v1636 = vadd.f32 %v1539, %v1635
    %v1637 = vpop.f32.mrb[0].mxu0
    %1638 = vmatprep.mubr.f32.mxu0 0.0
    %1639 = vmatmul.mubr.f32.gmra.mrb[0].mxu0 %v1557
    %v1640 = vpop.f32.mrb[0].mxu0
    %v1641 = vadd.f32 %v1544, %v1640
    %v1642 = vpop.f32.mrb[0].mxu0
    %1643 = vdwg.mxu0
    %s1644 = scalar_lea.vmem %s7, 112
    %v1645 = vld [vmem:[%s1644] sm:$0xff]
    %v1646 = vld [vmem:[%s1644 + $0x8] sm:$0xff]
    %v1647 = vld [vmem:[%s1644 + $0x10] sm:$0xff]
    %v1648 = vld [vmem:[%s1644 + $0x18] sm:$0xff]
    %v1649 = vld [vmem:[%s1644 + $0x20] sm:$0xff]
    %v1650 = vld [vmem:[%s1644 + $0x28] sm:$0xff]
    %v1651 = vld [vmem:[%s1644 + $0x30] sm:$0xff]
    %v1653 = vsel %vm98, %v1418, 0
    %v1656 = vsel %vm98, %v1423, 0
    %v1659 = vsel %vm98, %v1428, 0
    %v1662 = vsel %vm98, %v1433, 0
    %1664 = vmatprep.subr.mxu0 0.0
    %1665 = vmatpush1.msra.mxu0 %v1645
    %1666 = vmatprep.subr.mxu0 0.0
    %1667 = vmatpush1.msra.mxu0 %v1646
    %1668 = vmatprep.subr.mxu0 0.0
    %1669 = vmatpush1.msra.mxu0 %v1647
    %1670 = vmatprep.subr.mxu0 0.0
    %1671 = vmatpush1.msra.mxu0 %v1648
    %1672 = vmatprep.subr.mxu0 0.0
    %1673 = vmatpush1.msra.mxu0 %v1649
    %1674 = vmatprep.subr.mxu0 0.0
    %1675 = vmatpush1.msra.mxu0 %v1650
    %1676 = vmatprep.subr.mxu0 0.0
    %1677 = vmatpush1.msra.mxu0 %v1651
    %1678 = vmatprep.subr.mxu0 0.0
    %1679 = vmatpush1.msra.mxu0 0.0
    %1680 = vmatprep.subr.mxu0 0.0
    %1681 = vmatpush1.msra.mxu0 0.0
    %1682 = vmatprep.subr.mxu0 0.0
    %1683 = vmatpush1.msra.mxu0 0.0
    %1684 = vmatprep.subr.mxu0 0.0
    %1685 = vmatpush1.msra.mxu0 0.0
    %1686 = vmatprep.subr.mxu0 0.0
    %1687 = vmatpush1.msra.mxu0 0.0
    %1688 = vmatprep.subr.mxu0 0.0
    %1689 = vmatpush1.msra.mxu0 0.0
    %1690 = vmatprep.subr.mxu0 0.0
    %1691 = vmatpush1.msra.mxu0 0.0
    %1692 = vmatprep.subr.mxu0 0.0
    %1693 = vmatpush1.msra.mxu0 0.0
    %1694 = vmatprep.subr.mxu0 0.0
    %1695 = vmatpush1.msra.mxu0 0.0
    %1696 = vmatprep.subr.mxu0 0.0
    %1697 = vmatpush1.msra.mxu0 0.0
    %1698 = vmatprep.subr.mxu0 0.0
    %1699 = vmatpush1.msra.mxu0 0.0
    %1700 = vmatprep.subr.mxu0 0.0
    %1701 = vmatpush1.msra.mxu0 0.0
    %1702 = vmatprep.subr.mxu0 0.0
    %1703 = vmatpush1.msra.mxu0 0.0
    %1704 = vmatprep.subr.mxu0 0.0
    %1705 = vmatpush1.msra.mxu0 0.0
    %1706 = vmatprep.subr.mxu0 0.0
    %1707 = vmatpush1.msra.mxu0 0.0
    %1708 = vmatprep.subr.mxu0 0.0
    %1709 = vmatpush1.msra.mxu0 0.0
    %1710 = vmatprep.subr.mxu0 0.0
    %1711 = vmatpush1.msra.mxu0 0.0
    %1712 = vmatprep.subr.mxu0 0.0
    %1713 = vmatpush1.msra.mxu0 0.0
    %1714 = vmatprep.subr.mxu0 0.0
    %1715 = vmatpush1.msra.mxu0 0.0
    %1716 = vmatprep.subr.mxu0 0.0
    %1717 = vmatpush1.msra.mxu0 0.0
    %1718 = vmatprep.subr.mxu0 0.0
    %1719 = vmatpush1.msra.mxu0 0.0
    %1720 = vmatprep.subr.mxu0 0.0
    %1721 = vmatpush1.msra.mxu0 0.0
    %1722 = vmatprep.subr.mxu0 0.0
    %1723 = vmatpush1.msra.mxu0 0.0
    %1724 = vmatprep.subr.mxu0 0.0
    %1725 = vmatpush1.msra.mxu0 0.0
    %1726 = vmatprep.subr.mxu0 0.0
    %1727 = vmatpush1.msra.mxu0 0.0
    %1728 = vmatprep.mubr.f32.mxu0 0.0
    %1729 = vmatmul.mubr.f32.gmra.mrb[0].mxu0 %v1653
    %v1730 = vpop.f32.mrb[0].mxu0
    %v1731 = vadd.f32 0.0, %v1730
    %v1732 = vpop.f32.mrb[0].mxu0
    %1733 = vmatprep.mubr.f32.mxu0 0.0
    %1734 = vmatmul.mubr.f32.gmra.mrb[0].mxu0 %v1656
    %v1735 = vpop.f32.mrb[0].mxu0
    %v1736 = vadd.f32 0.0, %v1735
    %v1737 = vpop.f32.mrb[0].mxu0
    %1738 = vmatprep.mubr.f32.mxu0 0.0
    %1739 = vmatmul.mubr.f32.gmra.mrb[0].mxu0 %v1659
    %v1740 = vpop.f32.mrb[0].mxu0
    %v1741 = vadd.f32 0.0, %v1740
    %v1742 = vpop.f32.mrb[0].mxu0
    %1743 = vmatprep.mubr.f32.mxu0 0.0
    %1744 = vmatmul.mubr.f32.gmra.mrb[0].mxu0 %v1662
    %v1745 = vpop.f32.mrb[0].mxu0
    %v1746 = vadd.f32 0.0, %v1745
    %v1747 = vpop.f32.mrb[0].mxu0
    %1748 = vdwg.mxu0
    %v1749 = vadd.f32 %v1626, %v1731
    %v1750 = vadd.f32 %v1631, %v1736
    %v1751 = vadd.f32 %v1636, %v1741
    %v1752 = vadd.f32 %v1641, %v1746
    %v1753 = vld [vmem:[%s8] sm:$0x1]
    %v1755 = vlaneseq
    %v1756 = vshrl.u32 %v1755, 7
    %v1757 = vsub.s32 0, %v1756
    %v1758 = vrot.slane %v1753, %v1757
    %v1760 = vadd.f32 %v1749, %v1758
    %v1761 = vadd.f32 %v1750, %v1758
    %v1762 = vadd.f32 %v1751, %v1758
    %v1763 = vadd.f32 %v1752, %v1758
    %v1764 = vmax.f32 %v1760, 0.0
    %v1765 = vmax.f32 %v1761, 0.0
    %v1766 = vmax.f32 %v1762, 0.0
    %v1767 = vmax.f32 %v1763, 0.0
    %v1768 = vld [vmem:[%s9] sm:$0xff]
    %v1769 = vld [vmem:[%s9 + $0x8] sm:$0xff]
    %v1770 = vld [vmem:[%s9 + $0x10] sm:$0xff]
    %v1771 = vld [vmem:[%s9 + $0x18] sm:$0xff]
    %v1772 = vld [vmem:[%s9 + $0x20] sm:$0xff]
    %v1773 = vld [vmem:[%s9 + $0x28] sm:$0xff]
    %v1774 = vld [vmem:[%s9 + $0x30] sm:$0xff]
    %v1775 = vld [vmem:[%s9 + $0x38] sm:$0xff]
    %v1776 = vld [vmem:[%s9 + $0x40] sm:$0xff]
    %v1777 = vld [vmem:[%s9 + $0x48] sm:$0xff]
    %v1778 = vld [vmem:[%s9 + $0x50] sm:$0xff]
    %v1779 = vld [vmem:[%s9 + $0x58] sm:$0xff]
    %v1780 = vld [vmem:[%s9 + $0x60] sm:$0xff]
    %v1781 = vld [vmem:[%s9 + $0x68] sm:$0xff]
    %v1783 = vsel %vm779, %v1764, 0
    %v1786 = vsel %vm779, %v1765, 0
    %v1789 = vsel %vm779, %v1766, 0
    %v1792 = vsel %vm779, %v1767, 0
    %1794 = vmatprep.subr.mxu0 0.0
    %1795 = vmatpush1.msra.mxu0 %v1768
    %1796 = vmatprep.subr.mxu0 0.0
    %1797 = vmatpush1.msra.mxu0 %v1769
    %1798 = vmatprep.subr.mxu0 0.0
    %1799 = vmatpush1.msra.mxu0 %v1770
    %1800 = vmatprep.subr.mxu0 0.0
    %1801 = vmatpush1.msra.mxu0 %v1771
    %1802 = vmatprep.subr.mxu0 0.0
    %1803 = vmatpush1.msra.mxu0 %v1772
    %1804 = vmatprep.subr.mxu0 0.0
    %1805 = vmatpush1.msra.mxu0 %v1773
    %1806 = vmatprep.subr.mxu0 0.0
    %1807 = vmatpush1.msra.mxu0 %v1774
    %1808 = vmatprep.subr.mxu0 0.0
    %1809 = vmatpush1.msra.mxu0 %v1775
    %1810 = vmatprep.subr.mxu0 0.0
    %1811 = vmatpush1.msra.mxu0 %v1776
    %1812 = vmatprep.subr.mxu0 0.0
    %1813 = vmatpush1.msra.mxu0 %v1777
    %1814 = vmatprep.subr.mxu0 0.0
    %1815 = vmatpush1.msra.mxu0 %v1778
    %1816 = vmatprep.subr.mxu0 0.0
    %1817 = vmatpush1.msra.mxu0 %v1779
    %1818 = vmatprep.subr.mxu0 0.0
    %1819 = vmatpush1.msra.mxu0 %v1780
    %1820 = vmatprep.subr.mxu0 0.0
    %1821 = vmatpush1.msra.mxu0 %v1781
    %1822 = vmatprep.subr.mxu0 0.0
    %1823 = vmatpush1.msra.mxu0 0.0
    %1824 = vmatprep.subr.mxu0 0.0
    %1825 = vmatpush1.msra.mxu0 0.0
    %1826 = vmatprep.subr.mxu0 0.0
    %1827 = vmatpush1.msra.mxu0 0.0
    %1828 = vmatprep.subr.mxu0 0.0
    %1829 = vmatpush1.msra.mxu0 0.0
    %1830 = vmatprep.subr.mxu0 0.0
    %1831 = vmatpush1.msra.mxu0 0.0
    %1832 = vmatprep.subr.mxu0 0.0
    %1833 = vmatpush1.msra.mxu0 0.0
    %1834 = vmatprep.subr.mxu0 0.0
    %1835 = vmatpush1.msra.mxu0 0.0
    %1836 = vmatprep.subr.mxu0 0.0
    %1837 = vmatpush1.msra.mxu0 0.0
    %1838 = vmatprep.subr.mxu0 0.0
    %1839 = vmatpush1.msra.mxu0 0.0
    %1840 = vmatprep.subr.mxu0 0.0
    %1841 = vmatpush1.msra.mxu0 0.0
    %1842 = vmatprep.subr.mxu0 0.0
    %1843 = vmatpush1.msra.mxu0 0.0
    %1844 = vmatprep.subr.mxu0 0.0
    %1845 = vmatpush1.msra.mxu0 0.0
    %1846 = vmatprep.subr.mxu0 0.0
    %1847 = vmatpush1.msra.mxu0 0.0
    %1848 = vmatprep.subr.mxu0 0.0
    %1849 = vmatpush1.msra.mxu0 0.0
    %1850 = vmatprep.subr.mxu0 0.0
    %1851 = vmatpush1.msra.mxu0 0.0
    %1852 = vmatprep.subr.mxu0 0.0
    %1853 = vmatpush1.msra.mxu0 0.0
    %1854 = vmatprep.subr.mxu0 0.0
    %1855 = vmatpush1.msra.mxu0 0.0
    %1856 = vmatprep.subr.mxu0 0.0
    %1857 = vmatpush1.msra.mxu0 0.0
    %1858 = vmatprep.mubr.f32.mxu0 0.0
    %1859 = vmatmul.mubr.f32.gmra.mrb[0].mxu0 %v1783
    %v1860 = vpop.f32.mrb[0].mxu0
    %v1861 = vadd.f32 0.0, %v1860
    %v1862 = vpop.f32.mrb[0].mxu0
    %1863 = vmatprep.mubr.f32.mxu0 0.0
    %1864 = vmatmul.mubr.f32.gmra.mrb[0].mxu0 %v1786
    %v1865 = vpop.f32.mrb[0].mxu0
    %v1866 = vadd.f32 0.0, %v1865
    %v1867 = vpop.f32.mrb[0].mxu0
    %1868 = vmatprep.mubr.f32.mxu0 0.0
    %1869 = vmatmul.mubr.f32.gmra.mrb[0].mxu0 %v1789
    %v1870 = vpop.f32.mrb[0].mxu0
    %v1871 = vadd.f32 0.0, %v1870
    %v1872 = vpop.f32.mrb[0].mxu0
    %1873 = vmatprep.mubr.f32.mxu0 0.0
    %1874 = vmatmul.mubr.f32.gmra.mrb[0].mxu0 %v1792
    %v1875 = vpop.f32.mrb[0].mxu0
    %v1876 = vadd.f32 0.0, %v1875
    %v1877 = vpop.f32.mrb[0].mxu0
    %1878 = vdwg.mxu0
    %s1879 = scalar_lea.vmem %s9, 112
    %v1880 = vld [vmem:[%s1879] sm:$0xff]
    %v1881 = vld [vmem:[%s1879 + $0x8] sm:$0xff]
    %v1882 = vld [vmem:[%s1879 + $0x10] sm:$0xff]
    %v1883 = vld [vmem:[%s1879 + $0x18] sm:$0xff]
    %v1884 = vld [vmem:[%s1879 + $0x20] sm:$0xff]
    %v1885 = vld [vmem:[%s1879 + $0x28] sm:$0xff]
    %v1886 = vld [vmem:[%s1879 + $0x30] sm:$0xff]
    %v1887 = vld [vmem:[%s1879 + $0x38] sm:$0xff]
    %v1888 = vld [vmem:[%s1879 + $0x40] sm:$0xff]
    %v1889 = vld [vmem:[%s1879 + $0x48] sm:$0xff]
    %v1890 = vld [vmem:[%s1879 + $0x50] sm:$0xff]
    %v1891 = vld [vmem:[%s1879 + $0x58] sm:$0xff]
    %v1892 = vld [vmem:[%s1879 + $0x60] sm:$0xff]
    %v1893 = vld [vmem:[%s1879 + $0x68] sm:$0xff]
    %1894 = vmatprep.subr.mxu0 0.0
    %1895 = vmatpush1.msra.mxu0 %v1880
    %1896 = vmatprep.subr.mxu0 0.0
    %1897 = vmatpush1.msra.mxu0 %v1881
    %1898 = vmatprep.subr.mxu0 0.0
    %1899 = vmatpush1.msra.mxu0 %v1882
    %1900 = vmatprep.subr.mxu0 0.0
    %1901 = vmatpush1.msra.mxu0 %v1883
    %1902 = vmatprep.subr.mxu0 0.0
    %1903 = vmatpush1.msra.mxu0 %v1884
    %1904 = vmatprep.subr.mxu0 0.0
    %1905 = vmatpush1.msra.mxu0 %v1885
    %1906 = vmatprep.subr.mxu0 0.0
    %1907 = vmatpush1.msra.mxu0 %v1886
    %1908 = vmatprep.subr.mxu0 0.0
    %1909 = vmatpush1.msra.mxu0 %v1887
    %1910 = vmatprep.subr.mxu0 0.0
    %1911 = vmatpush1.msra.mxu0 %v1888
    %1912 = vmatprep.subr.mxu0 0.0
    %1913 = vmatpush1.msra.mxu0 %v1889
    %1914 = vmatprep.subr.mxu0 0.0
    %1915 = vmatpush1.msra.mxu0 %v1890
    %1916 = vmatprep.subr.mxu0 0.0
    %1917 = vmatpush1.msra.mxu0 %v1891
    %1918 = vmatprep.subr.mxu0 0.0
    %1919 = vmatpush1.msra.mxu0 %v1892
    %1920 = vmatprep.subr.mxu0 0.0
    %1921 = vmatpush1.msra.mxu0 %v1893
    %1922 = vmatprep.subr.mxu0 0.0
    %1923 = vmatpush1.msra.mxu0 0.0
    %1924 = vmatprep.subr.mxu0 0.0
    %1925 = vmatpush1.msra.mxu0 0.0
    %1926 = vmatprep.subr.mxu0 0.0
    %1927 = vmatpush1.msra.mxu0 0.0
    %1928 = vmatprep.subr.mxu0 0.0
    %1929 = vmatpush1.msra.mxu0 0.0
    %1930 = vmatprep.subr.mxu0 0.0
    %1931 = vmatpush1.msra.mxu0 0.0
    %1932 = vmatprep.subr.mxu0 0.0
    %1933 = vmatpush1.msra.mxu0 0.0
    %1934 = vmatprep.subr.mxu0 0.0
    %1935 = vmatpush1.msra.mxu0 0.0
    %1936 = vmatprep.subr.mxu0 0.0
    %1937 = vmatpush1.msra.mxu0 0.0
    %1938 = vmatprep.subr.mxu0 0.0
    %1939 = vmatpush1.msra.mxu0 0.0
    %1940 = vmatprep.subr.mxu0 0.0
    %1941 = vmatpush1.msra.mxu0 0.0
    %1942 = vmatprep.subr.mxu0 0.0
    %1943 = vmatpush1.msra.mxu0 0.0
    %1944 = vmatprep.subr.mxu0 0.0
    %1945 = vmatpush1.msra.mxu0 0.0
    %1946 = vmatprep.subr.mxu0 0.0
    %1947 = vmatpush1.msra.mxu0 0.0
    %1948 = vmatprep.subr.mxu0 0.0
    %1949 = vmatpush1.msra.mxu0 0.0
    %1950 = vmatprep.subr.mxu0 0.0
    %1951 = vmatpush1.msra.mxu0 0.0
    %1952 = vmatprep.subr.mxu0 0.0
    %1953 = vmatpush1.msra.mxu0 0.0
    %1954 = vmatprep.subr.mxu0 0.0
    %1955 = vmatpush1.msra.mxu0 0.0
    %1956 = vmatprep.subr.mxu0 0.0
    %1957 = vmatpush1.msra.mxu0 0.0
    %1958 = vmatprep.mubr.f32.mxu0 0.0
    %1959 = vmatmul.mubr.f32.gmra.mrb[0].mxu0 %v1783
    %v1960 = vpop.f32.mrb[0].mxu0
    %v1961 = vadd.f32 0.0, %v1960
    %v1962 = vpop.f32.mrb[0].mxu0
    %1963 = vmatprep.mubr.f32.mxu0 0.0
    %1964 = vmatmul.mubr.f32.gmra.mrb[0].mxu0 %v1786
    %v1965 = vpop.f32.mrb[0].mxu0
    %v1966 = vadd.f32 0.0, %v1965
    %v1967 = vpop.f32.mrb[0].mxu0
    %1968 = vmatprep.mubr.f32.mxu0 0.0
    %1969 = vmatmul.mubr.f32.gmra.mrb[0].mxu0 %v1789
    %v1970 = vpop.f32.mrb[0].mxu0
    %v1971 = vadd.f32 0.0, %v1970
    %v1972 = vpop.f32.mrb[0].mxu0
    %1973 = vmatprep.mubr.f32.mxu0 0.0
    %1974 = vmatmul.mubr.f32.gmra.mrb[0].mxu0 %v1792
    %v1975 = vpop.f32.mrb[0].mxu0
    %v1976 = vadd.f32 0.0, %v1975
    %v1977 = vpop.f32.mrb[0].mxu0
    %1978 = vdwg.mxu0
    %v1979 = vmax.f32 %v1861, %v1961
    %v1980 = vmax.f32 %v1866, %v1966
    %v1981 = vmax.f32 %v1871, %v1971
    %v1982 = vmax.f32 %v1876, %v1976
    %v1983 = vld [vmem:[%s10] sm:$0xff]
    %v1984 = vld [vmem:[%s10 + $0x8] sm:$0x3f]
    %v1986 = vsel %vm358, %v1983, 0
    %v1989 = vsel %vm358, %v1984, 0
    %v1992 = vsel %vm380, %v1982, 0
    %1994 = vmatprep.subr.mxu0 0.0
    %1995 = vmatpush1.msra.mxu0 %v1979
    %1996 = vmatprep.subr.mxu0 0.0
    %1997 = vmatpush1.msra.mxu0 %v1980
    %1998 = vmatprep.subr.mxu0 0.0
    %1999 = vmatpush1.msra.mxu0 %v1981
    %2000 = vmatprep.subr.mxu0 0.0
    %2001 = vmatpush1.msra.mxu0 %v1992
    %2002 = vmatprep.subr.mxu0 0.0
    %2003 = vmatpush1.msra.mxu0 0.0
    %2004 = vmatprep.subr.mxu0 0.0
    %2005 = vmatpush1.msra.mxu0 0.0
    %2006 = vmatprep.subr.mxu0 0.0
    %2007 = vmatpush1.msra.mxu0 0.0
    %2008 = vmatprep.subr.mxu0 0.0
    %2009 = vmatpush1.msra.mxu0 0.0
    %2010 = vmatprep.subr.mxu0 0.0
    %2011 = vmatpush1.msra.mxu0 0.0
    %2012 = vmatprep.subr.mxu0 0.0
    %2013 = vmatpush1.msra.mxu0 0.0
    %2014 = vmatprep.subr.mxu0 0.0
    %2015 = vmatpush1.msra.mxu0 0.0
    %2016 = vmatprep.subr.mxu0 0.0
    %2017 = vmatpush1.msra.mxu0 0.0
    %2018 = vmatprep.subr.mxu0 0.0
    %2019 = vmatpush1.msra.mxu0 0.0
    %2020 = vmatprep.subr.mxu0 0.0
    %2021 = vmatpush1.msra.mxu0 0.0
    %2022 = vmatprep.subr.mxu0 0.0
    %2023 = vmatpush1.msra.mxu0 0.0
    %2024 = vmatprep.subr.mxu0 0.0
    %2025 = vmatpush1.msra.mxu0 0.0
    %2026 = vmatprep.subr.mxu0 0.0
    %2027 = vmatpush1.msra.mxu0 0.0
    %2028 = vmatprep.subr.mxu0 0.0
    %2029 = vmatpush1.msra.mxu0 0.0
    %2030 = vmatprep.subr.mxu0 0.0
    %2031 = vmatpush1.msra.mxu0 0.0
    %2032 = vmatprep.subr.mxu0 0.0
    %2033 = vmatpush1.msra.mxu0 0.0
    %2034 = vmatprep.subr.mxu0 0.0
    %2035 = vmatpush1.msra.mxu0 0.0
    %2036 = vmatprep.subr.mxu0 0.0
    %2037 = vmatpush1.msra.mxu0 0.0
    %2038 = vmatprep.subr.mxu0 0.0
    %2039 = vmatpush1.msra.mxu0 0.0
    %2040 = vmatprep.subr.mxu0 0.0
    %2041 = vmatpush1.msra.mxu0 0.0
    %2042 = vmatprep.subr.mxu0 0.0
    %2043 = vmatpush1.msra.mxu0 0.0
    %2044 = vmatprep.subr.mxu0 0.0
    %2045 = vmatpush1.msra.mxu0 0.0
    %2046 = vmatprep.subr.mxu0 0.0
    %2047 = vmatpush1.msra.mxu0 0.0
    %2048 = vmatprep.subr.mxu0 0.0
    %2049 = vmatpush1.msra.mxu0 0.0
    %2050 = vmatprep.subr.mxu0 0.0
    %2051 = vmatpush1.msra.mxu0 0.0
    %2052 = vmatprep.subr.mxu0 0.0
    %2053 = vmatpush1.msra.mxu0 0.0
    %2054 = vmatprep.subr.mxu0 0.0
    %2055 = vmatpush1.msra.mxu0 0.0
    %2056 = vmatprep.subr.mxu0 0.0
    %2057 = vmatpush1.msra.mxu0 0.0
    %2058 = vmatprep.mubr.f32.mxu0 0.0
    %2059 = vmatmul.mubr.f32.gmra.mrb[0].mxu0 %v1986
    %v2060 = vpop.f32.mrb[0].mxu0
    %v2061 = vadd.f32 0.0, %v2060
    %v2062 = vpop.f32.mrb[0].mxu0
    %2063 = vmatprep.mubr.f32.mxu0 0.0
    %2064 = vmatmul.mubr.f32.gmra.mrb[0].mxu0 %v1989
    %v2065 = vpop.f32.mrb[0].mxu0
    %v2066 = vadd.f32 0.0, %v2065
    %v2067 = vpop.f32.mrb[0].mxu0
    %2068 = vdwg.mxu0
    %s2069 = scalar_lea.vmem %s10, 16
    %v2070 = vld [vmem:[%s2069] sm:$0xff]
    %v2071 = vld [vmem:[%s2069 + $0x8] sm:$0x3f]
    %v2073 = vsel %vm358, %v2070, 0
    %v2076 = vsel %vm358, %v2071, 0
    %2078 = vmatprep.subr.mxu0 0.0
    %2079 = vmatpush1.msra.mxu0 %v1979
    %2080 = vmatprep.subr.mxu0 0.0
    %2081 = vmatpush1.msra.mxu0 %v1980
    %2082 = vmatprep.subr.mxu0 0.0
    %2083 = vmatpush1.msra.mxu0 %v1981
    %2084 = vmatprep.subr.mxu0 0.0
    %2085 = vmatpush1.msra.mxu0 %v1992
    %2086 = vmatprep.subr.mxu0 0.0
    %2087 = vmatpush1.msra.mxu0 0.0
    %2088 = vmatprep.subr.mxu0 0.0
    %2089 = vmatpush1.msra.mxu0 0.0
    %2090 = vmatprep.subr.mxu0 0.0
    %2091 = vmatpush1.msra.mxu0 0.0
    %2092 = vmatprep.subr.mxu0 0.0
    %2093 = vmatpush1.msra.mxu0 0.0
    %2094 = vmatprep.subr.mxu0 0.0
    %2095 = vmatpush1.msra.mxu0 0.0
    %2096 = vmatprep.subr.mxu0 0.0
    %2097 = vmatpush1.msra.mxu0 0.0
    %2098 = vmatprep.subr.mxu0 0.0
    %2099 = vmatpush1.msra.mxu0 0.0
    %2100 = vmatprep.subr.mxu0 0.0
    %2101 = vmatpush1.msra.mxu0 0.0
    %2102 = vmatprep.subr.mxu0 0.0
    %2103 = vmatpush1.msra.mxu0 0.0
    %2104 = vmatprep.subr.mxu0 0.0
    %2105 = vmatpush1.msra.mxu0 0.0
    %2106 = vmatprep.subr.mxu0 0.0
    %2107 = vmatpush1.msra.mxu0 0.0
    %2108 = vmatprep.subr.mxu0 0.0
    %2109 = vmatpush1.msra.mxu0 0.0
    %2110 = vmatprep.subr.mxu0 0.0
    %2111 = vmatpush1.msra.mxu0 0.0
    %2112 = vmatprep.subr.mxu0 0.0
    %2113 = vmatpush1.msra.mxu0 0.0
    %2114 = vmatprep.subr.mxu0 0.0
    %2115 = vmatpush1.msra.mxu0 0.0
    %2116 = vmatprep.subr.mxu0 0.0
    %2117 = vmatpush1.msra.mxu0 0.0
    %2118 = vmatprep.subr.mxu0 0.0
    %2119 = vmatpush1.msra.mxu0 0.0
    %2120 = vmatprep.subr.mxu0 0.0
    %2121 = vmatpush1.msra.mxu0 0.0
    %2122 = vmatprep.subr.mxu0 0.0
    %2123 = vmatpush1.msra.mxu0 0.0
    %2124 = vmatprep.subr.mxu0 0.0
    %2125 = vmatpush1.msra.mxu0 0.0
    %2126 = vmatprep.subr.mxu0 0.0
    %2127 = vmatpush1.msra.mxu0 0.0
    %2128 = vmatprep.subr.mxu0 0.0
    %2129 = vmatpush1.msra.mxu0 0.0
    %2130 = vmatprep.subr.mxu0 0.0
    %2131 = vmatpush1.msra.mxu0 0.0
    %2132 = vmatprep.subr.mxu0 0.0
    %2133 = vmatpush1.msra.mxu0 0.0
    %2134 = vmatprep.subr.mxu0 0.0
    %2135 = vmatpush1.msra.mxu0 0.0
    %2136 = vmatprep.subr.mxu0 0.0
    %2137 = vmatpush1.msra.mxu0 0.0
    %2138 = vmatprep.subr.mxu0 0.0
    %2139 = vmatpush1.msra.mxu0 0.0
    %2140 = vmatprep.subr.mxu0 0.0
    %2141 = vmatpush1.msra.mxu0 0.0
    %2142 = vmatprep.mubr.f32.mxu0 0.0
    %2143 = vmatmul.mubr.f32.gmra.mrb[0].mxu0 %v2073
    %v2144 = vpop.f32.mrb[0].mxu0
    %v2145 = vadd.f32 0.0, %v2144
    %v2146 = vpop.f32.mrb[0].mxu0
    %2147 = vmatprep.mubr.f32.mxu0 0.0
    %2148 = vmatmul.mubr.f32.gmra.mrb[0].mxu0 %v2076
    %v2149 = vpop.f32.mrb[0].mxu0
    %v2150 = vadd.f32 0.0, %v2149
    %v2151 = vpop.f32.mrb[0].mxu0
    %2152 = vdwg.mxu0
    %v2153 = vmax.f32 %v2061, %v2145
    %v2154 = vmax.f32 %v2066, %v2150
    %v2155 = vld [vmem:[%s11] sm:$0xff]
    %v2156 = vld [vmem:[%s11 + $0x8] sm:$0x3f]
    %vm2157 = vcmask 113664
    %v2159 = vsel %vm2157, %v2155, 0
    %v2162 = vsel %vm2157, %v2156, 0
    %vm2164 = vcmask 1045504
    %v2166 = vsel %vm2164, %v2154, 0
    %2168 = vmatprep.subr.mxu0 0.0
    %2169 = vmatpush1.msra.mxu0 %v2153
    %2170 = vmatprep.subr.mxu0 0.0
    %2171 = vmatpush1.msra.mxu0 %v2166
    %2172 = vmatprep.subr.mxu0 0.0
    %2173 = vmatpush1.msra.mxu0 0.0
    %2174 = vmatprep.subr.mxu0 0.0
    %2175 = vmatpush1.msra.mxu0 0.0
    %2176 = vmatprep.subr.mxu0 0.0
    %2177 = vmatpush1.msra.mxu0 0.0
    %2178 = vmatprep.subr.mxu0 0.0
    %2179 = vmatpush1.msra.mxu0 0.0
    %2180 = vmatprep.subr.mxu0 0.0
    %2181 = vmatpush1.msra.mxu0 0.0
    %2182 = vmatprep.subr.mxu0 0.0
    %2183 = vmatpush1.msra.mxu0 0.0
    %2184 = vmatprep.subr.mxu0 0.0
    %2185 = vmatpush1.msra.mxu0 0.0
    %2186 = vmatprep.subr.mxu0 0.0
    %2187 = vmatpush1.msra.mxu0 0.0
    %2188 = vmatprep.subr.mxu0 0.0
    %2189 = vmatpush1.msra.mxu0 0.0
    %2190 = vmatprep.subr.mxu0 0.0
    %2191 = vmatpush1.msra.mxu0 0.0
    %2192 = vmatprep.subr.mxu0 0.0
    %2193 = vmatpush1.msra.mxu0 0.0
    %2194 = vmatprep.subr.mxu0 0.0
    %2195 = vmatpush1.msra.mxu0 0.0
    %2196 = vmatprep.subr.mxu0 0.0
    %2197 = vmatpush1.msra.mxu0 0.0
    %2198 = vmatprep.subr.mxu0 0.0
    %2199 = vmatpush1.msra.mxu0 0.0
    %2200 = vmatprep.subr.mxu0 0.0
    %2201 = vmatpush1.msra.mxu0 0.0
    %2202 = vmatprep.subr.mxu0 0.0
    %2203 = vmatpush1.msra.mxu0 0.0
    %2204 = vmatprep.subr.mxu0 0.0
    %2205 = vmatpush1.msra.mxu0 0.0
    %2206 = vmatprep.subr.mxu0 0.0
    %2207 = vmatpush1.msra.mxu0 0.0
    %2208 = vmatprep.subr.mxu0 0.0
    %2209 = vmatpush1.msra.mxu0 0.0
    %2210 = vmatprep.subr.mxu0 0.0
    %2211 = vmatpush1.msra.mxu0 0.0
    %2212 = vmatprep.subr.mxu0 0.0
    %2213 = vmatpush1.msra.mxu0 0.0
    %2214 = vmatprep.subr.mxu0 0.0
    %2215 = vmatpush1.msra.mxu0 0.0
    %2216 = vmatprep.subr.mxu0 0.0
    %2217 = vmatpush1.msra.mxu0 0.0
    %2218 = vmatprep.subr.mxu0 0.0
    %2219 = vmatpush1.msra.mxu0 0.0
    %2220 = vmatprep.subr.mxu0 0.0
    %2221 = vmatpush1.msra.mxu0 0.0
    %2222 = vmatprep.subr.mxu0 0.0
    %2223 = vmatpush1.msra.mxu0 0.0
    %2224 = vmatprep.subr.mxu0 0.0
    %2225 = vmatpush1.msra.mxu0 0.0
    %2226 = vmatprep.subr.mxu0 0.0
    %2227 = vmatpush1.msra.mxu0 0.0
    %2228 = vmatprep.subr.mxu0 0.0
    %2229 = vmatpush1.msra.mxu0 0.0
    %2230 = vmatprep.subr.mxu0 0.0
    %2231 = vmatpush1.msra.mxu0 0.0
    %2232 = vmatprep.mubr.f32.mxu0 0.0
    %2233 = vmatmul.mubr.f32.gmra.mrb[0].mxu0 %v2159
    %v2234 = vpop.f32.mrb[0].mxu0
    %v2235 = vadd.f32 0.0, %v2234
    %v2236 = vpop.f32.mrb[0].mxu0
    %2237 = vmatprep.mubr.f32.mxu0 0.0
    %2238 = vmatmul.mubr.f32.gmra.mrb[0].mxu0 %v2162
    %v2239 = vpop.f32.mrb[0].mxu0
    %v2240 = vadd.f32 0.0, %v2239
    %v2241 = vpop.f32.mrb[0].mxu0
    %2242 = vdwg.mxu0
    %s2243 = scalar_lea.vmem %s11, 16
    %v2244 = vld [vmem:[%s2243] sm:$0xff]
    %v2245 = vld [vmem:[%s2243 + $0x8] sm:$0x3f]
    %v2247 = vsel %vm2157, %v2244, 0
    %v2250 = vsel %vm2157, %v2245, 0
    %2252 = vmatprep.subr.mxu0 0.0
    %2253 = vmatpush1.msra.mxu0 %v2153
    %2254 = vmatprep.subr.mxu0 0.0
    %2255 = vmatpush1.msra.mxu0 %v2166
    %2256 = vmatprep.subr.mxu0 0.0
    %2257 = vmatpush1.msra.mxu0 0.0
    %2258 = vmatprep.subr.mxu0 0.0
    %2259 = vmatpush1.msra.mxu0 0.0
    %2260 = vmatprep.subr.mxu0 0.0
    %2261 = vmatpush1.msra.mxu0 0.0
    %2262 = vmatprep.subr.mxu0 0.0
    %2263 = vmatpush1.msra.mxu0 0.0
    %2264 = vmatprep.subr.mxu0 0.0
    %2265 = vmatpush1.msra.mxu0 0.0
    %2266 = vmatprep.subr.mxu0 0.0
    %2267 = vmatpush1.msra.mxu0 0.0
    %2268 = vmatprep.subr.mxu0 0.0
    %2269 = vmatpush1.msra.mxu0 0.0
    %2270 = vmatprep.subr.mxu0 0.0
    %2271 = vmatpush1.msra.mxu0 0.0
    %2272 = vmatprep.subr.mxu0 0.0
    %2273 = vmatpush1.msra.mxu0 0.0
    %2274 = vmatprep.subr.mxu0 0.0
    %2275 = vmatpush1.msra.mxu0 0.0
    %2276 = vmatprep.subr.mxu0 0.0
    %2277 = vmatpush1.msra.mxu0 0.0
    %2278 = vmatprep.subr.mxu0 0.0
    %2279 = vmatpush1.msra.mxu0 0.0
    %2280 = vmatprep.subr.mxu0 0.0
    %2281 = vmatpush1.msra.mxu0 0.0
    %2282 = vmatprep.subr.mxu0 0.0
    %2283 = vmatpush1.msra.mxu0 0.0
    %2284 = vmatprep.subr.mxu0 0.0
    %2285 = vmatpush1.msra.mxu0 0.0
    %2286 = vmatprep.subr.mxu0 0.0
    %2287 = vmatpush1.msra.mxu0 0.0
    %2288 = vmatprep.subr.mxu0 0.0
    %2289 = vmatpush1.msra.mxu0 0.0
    %2290 = vmatprep.subr.mxu0 0.0
    %2291 = vmatpush1.msra.mxu0 0.0
    %2292 = vmatprep.subr.mxu0 0.0
    %2293 = vmatpush1.msra.mxu0 0.0
    %2294 = vmatprep.subr.mxu0 0.0
    %2295 = vmatpush1.msra.mxu0 0.0
    %2296 = vmatprep.subr.mxu0 0.0
    %2297 = vmatpush1.msra.mxu0 0.0
    %2298 = vmatprep.subr.mxu0 0.0
    %2299 = vmatpush1.msra.mxu0 0.0
    %2300 = vmatprep.subr.mxu0 0.0
    %2301 = vmatpush1.msra.mxu0 0.0
    %2302 = vmatprep.subr.mxu0 0.0
    %2303 = vmatpush1.msra.mxu0 0.0
    %2304 = vmatprep.subr.mxu0 0.0
    %2305 = vmatpush1.msra.mxu0 0.0
    %2306 = vmatprep.subr.mxu0 0.0
    %2307 = vmatpush1.msra.mxu0 0.0
    %2308 = vmatprep.subr.mxu0 0.0
    %2309 = vmatpush1.msra.mxu0 0.0
    %2310 = vmatprep.subr.mxu0 0.0
    %2311 = vmatpush1.msra.mxu0 0.0
    %2312 = vmatprep.subr.mxu0 0.0
    %2313 = vmatpush1.msra.mxu0 0.0
    %2314 = vmatprep.subr.mxu0 0.0
    %2315 = vmatpush1.msra.mxu0 0.0
    %2316 = vmatprep.mubr.f32.mxu0 0.0
    %2317 = vmatmul.mubr.f32.gmra.mrb[0].mxu0 %v2247
    %v2318 = vpop.f32.mrb[0].mxu0
    %v2319 = vadd.f32 0.0, %v2318
    %v2320 = vpop.f32.mrb[0].mxu0
    %2321 = vmatprep.mubr.f32.mxu0 0.0
    %2322 = vmatmul.mubr.f32.gmra.mrb[0].mxu0 %v2250
    %v2323 = vpop.f32.mrb[0].mxu0
    %v2324 = vadd.f32 0.0, %v2323
    %v2325 = vpop.f32.mrb[0].mxu0
    %2326 = vdwg.mxu0
    %v2327 = vld [vmem:[%s12] sm:$0xff]
    %v2328 = vld [vmem:[%s12 + $0x8] sm:$0xff]
    %v2329 = vld [vmem:[%s12 + $0x10] sm:$0xff]
    %v2330 = vld [vmem:[%s12 + $0x18] sm:$0xff]
    %v2331 = vld [vmem:[%s12 + $0x20] sm:$0xff]
    %v2332 = vld [vmem:[%s12 + $0x28] sm:$0xff]
    %v2333 = vld [vmem:[%s12 + $0x30] sm:$0xff]
    %s2334 = scalar_lea.vmem %s12, 56
    %v2335 = vld [vmem:[%s2334] sm:$0xff]
    %v2336 = vld [vmem:[%s2334 + $0x8] sm:$0xff]
    %v2337 = vld [vmem:[%s2334 + $0x10] sm:$0xff]
    %v2338 = vld [vmem:[%s2334 + $0x18] sm:$0xff]
    %v2339 = vld [vmem:[%s2334 + $0x20] sm:$0xff]
    %v2340 = vld [vmem:[%s2334 + $0x28] sm:$0xff]
    %v2341 = vld [vmem:[%s2334 + $0x30] sm:$0xff]
    %v2343 = vsel %vm98, %v2153, 0
    %v2345 = vsel %vm98, %v2154, 0
    %2347 = vmatprep.subr.mxu0 0.0
    %2348 = vmatpush1.msra.mxu0 %v2335
    %2349 = vmatprep.subr.mxu0 0.0
    %2350 = vmatpush1.msra.mxu0 %v2336
    %2351 = vmatprep.subr.mxu0 0.0
    %2352 = vmatpush1.msra.mxu0 %v2337
    %2353 = vmatprep.subr.mxu0 0.0
    %2354 = vmatpush1.msra.mxu0 %v2338
    %2355 = vmatprep.subr.mxu0 0.0
    %2356 = vmatpush1.msra.mxu0 %v2339
    %2357 = vmatprep.subr.mxu0 0.0
    %2358 = vmatpush1.msra.mxu0 %v2340
    %2359 = vmatprep.subr.mxu0 0.0
    %2360 = vmatpush1.msra.mxu0 %v2341
    %2361 = vmatprep.subr.mxu0 0.0
    %2362 = vmatpush1.msra.mxu0 0.0
    %2363 = vmatprep.subr.mxu0 0.0
    %2364 = vmatpush1.msra.mxu0 0.0
    %2365 = vmatprep.subr.mxu0 0.0
    %2366 = vmatpush1.msra.mxu0 0.0
    %2367 = vmatprep.subr.mxu0 0.0
    %2368 = vmatpush1.msra.mxu0 0.0
    %2369 = vmatprep.subr.mxu0 0.0
    %2370 = vmatpush1.msra.mxu0 0.0
    %2371 = vmatprep.subr.mxu0 0.0
    %2372 = vmatpush1.msra.mxu0 0.0
    %2373 = vmatprep.subr.mxu0 0.0
    %2374 = vmatpush1.msra.mxu0 0.0
    %2375 = vmatprep.subr.mxu0 0.0
    %2376 = vmatpush1.msra.mxu0 0.0
    %2377 = vmatprep.subr.mxu0 0.0
    %2378 = vmatpush1.msra.mxu0 0.0
    %2379 = vmatprep.subr.mxu0 0.0
    %2380 = vmatpush1.msra.mxu0 0.0
    %2381 = vmatprep.subr.mxu0 0.0
    %2382 = vmatpush1.msra.mxu0 0.0
    %2383 = vmatprep.subr.mxu0 0.0
    %2384 = vmatpush1.msra.mxu0 0.0
    %2385 = vmatprep.subr.mxu0 0.0
    %2386 = vmatpush1.msra.mxu0 0.0
    %2387 = vmatprep.subr.mxu0 0.0
    %2388 = vmatpush1.msra.mxu0 0.0
    %2389 = vmatprep.subr.mxu0 0.0
    %2390 = vmatpush1.msra.mxu0 0.0
    %2391 = vmatprep.subr.mxu0 0.0
    %2392 = vmatpush1.msra.mxu0 0.0
    %2393 = vmatprep.subr.mxu0 0.0
    %2394 = vmatpush1.msra.mxu0 0.0
    %2395 = vmatprep.subr.mxu0 0.0
    %2396 = vmatpush1.msra.mxu0 0.0
    %2397 = vmatprep.subr.mxu0 0.0
    %2398 = vmatpush1.msra.mxu0 0.0
    %2399 = vmatprep.subr.mxu0 0.0
    %2400 = vmatpush1.msra.mxu0 0.0
    %2401 = vmatprep.subr.mxu0 0.0
    %2402 = vmatpush1.msra.mxu0 0.0
    %2403 = vmatprep.subr.mxu0 0.0
    %2404 = vmatpush1.msra.mxu0 0.0
    %2405 = vmatprep.subr.mxu0 0.0
    %2406 = vmatpush1.msra.mxu0 0.0
    %2407 = vmatprep.subr.mxu0 0.0
    %2408 = vmatpush1.msra.mxu0 0.0
    %2409 = vmatprep.subr.mxu0 0.0
    %2410 = vmatpush1.msra.mxu0 0.0
    %2411 = vmatprep.mubr.f32.mxu0 0.0
    %2412 = vmatmul.mubr.f32.gmra.mrb[0].mxu0 %v2343
    %v2413 = vpop.f32.mrb[0].mxu0
    %v2414 = vadd.f32 0.0, %v2413
    %v2415 = vpop.f32.mrb[0].mxu0
    %2416 = vmatprep.mubr.f32.mxu0 0.0
    %2417 = vmatmul.mubr.f32.gmra.mrb[0].mxu0 %v2345
    %v2418 = vpop.f32.mrb[0].mxu0
    %v2419 = vadd.f32 0.0, %v2418
    %v2420 = vpop.f32.mrb[0].mxu0
    %2421 = vdwg.mxu0
    %v2423 = vsel %vm98, %v2235, 0
    %v2426 = vsel %vm98, %v2240, 0
    %2428 = vmatprep.subr.mxu0 0.0
    %2429 = vmatpush1.msra.mxu0 %v2327
    %2430 = vmatprep.subr.mxu0 0.0
    %2431 = vmatpush1.msra.mxu0 %v2328
    %2432 = vmatprep.subr.mxu0 0.0
    %2433 = vmatpush1.msra.mxu0 %v2329
    %2434 = vmatprep.subr.mxu0 0.0
    %2435 = vmatpush1.msra.mxu0 %v2330
    %2436 = vmatprep.subr.mxu0 0.0
    %2437 = vmatpush1.msra.mxu0 %v2331
    %2438 = vmatprep.subr.mxu0 0.0
    %2439 = vmatpush1.msra.mxu0 %v2332
    %2440 = vmatprep.subr.mxu0 0.0
    %2441 = vmatpush1.msra.mxu0 %v2333
    %2442 = vmatprep.subr.mxu0 0.0
    %2443 = vmatpush1.msra.mxu0 0.0
    %2444 = vmatprep.subr.mxu0 0.0
    %2445 = vmatpush1.msra.mxu0 0.0
    %2446 = vmatprep.subr.mxu0 0.0
    %2447 = vmatpush1.msra.mxu0 0.0
    %2448 = vmatprep.subr.mxu0 0.0
    %2449 = vmatpush1.msra.mxu0 0.0
    %2450 = vmatprep.subr.mxu0 0.0
    %2451 = vmatpush1.msra.mxu0 0.0
    %2452 = vmatprep.subr.mxu0 0.0
    %2453 = vmatpush1.msra.mxu0 0.0
    %2454 = vmatprep.subr.mxu0 0.0
    %2455 = vmatpush1.msra.mxu0 0.0
    %2456 = vmatprep.subr.mxu0 0.0
    %2457 = vmatpush1.msra.mxu0 0.0
    %2458 = vmatprep.subr.mxu0 0.0
    %2459 = vmatpush1.msra.mxu0 0.0
    %2460 = vmatprep.subr.mxu0 0.0
    %2461 = vmatpush1.msra.mxu0 0.0
    %2462 = vmatprep.subr.mxu0 0.0
    %2463 = vmatpush1.msra.mxu0 0.0
    %2464 = vmatprep.subr.mxu0 0.0
    %2465 = vmatpush1.msra.mxu0 0.0
    %2466 = vmatprep.subr.mxu0 0.0
    %2467 = vmatpush1.msra.mxu0 0.0
    %2468 = vmatprep.subr.mxu0 0.0
    %2469 = vmatpush1.msra.mxu0 0.0
    %2470 = vmatprep.subr.mxu0 0.0
    %2471 = vmatpush1.msra.mxu0 0.0
    %2472 = vmatprep.subr.mxu0 0.0
    %2473 = vmatpush1.msra.mxu0 0.0
    %2474 = vmatprep.subr.mxu0 0.0
    %2475 = vmatpush1.msra.mxu0 0.0
    %2476 = vmatprep.subr.mxu0 0.0
    %2477 = vmatpush1.msra.mxu0 0.0
    %2478 = vmatprep.subr.mxu0 0.0
    %2479 = vmatpush1.msra.mxu0 0.0
    %2480 = vmatprep.subr.mxu0 0.0
    %2481 = vmatpush1.msra.mxu0 0.0
    %2482 = vmatprep.subr.mxu0 0.0
    %2483 = vmatpush1.msra.mxu0 0.0
    %2484 = vmatprep.subr.mxu0 0.0
    %2485 = vmatpush1.msra.mxu0 0.0
    %2486 = vmatprep.subr.mxu0 0.0
    %2487 = vmatpush1.msra.mxu0 0.0
    %2488 = vmatprep.subr.mxu0 0.0
    %2489 = vmatpush1.msra.mxu0 0.0
    %2490 = vmatprep.subr.mxu0 0.0
    %2491 = vmatpush1.msra.mxu0 0.0
    %2492 = vmatprep.mubr.f32.mxu0 0.0
    %2493 = vmatmul.mubr.f32.gmra.mrb[0].mxu0 %v2423
    %v2494 = vpop.f32.mrb[0].mxu0
    %v2495 = vadd.f32 %v2414, %v2494
    %v2496 = vpop.f32.mrb[0].mxu0
    %2497 = vmatprep.mubr.f32.mxu0 0.0
    %2498 = vmatmul.mubr.f32.gmra.mrb[0].mxu0 %v2426
    %v2499 = vpop.f32.mrb[0].mxu0
    %v2500 = vadd.f32 %v2419, %v2499
    %v2501 = vpop.f32.mrb[0].mxu0
    %2502 = vdwg.mxu0
    %s2503 = scalar_lea.vmem %s12, 112
    %v2504 = vld [vmem:[%s2503] sm:$0xff]
    %v2505 = vld [vmem:[%s2503 + $0x8] sm:$0xff]
    %v2506 = vld [vmem:[%s2503 + $0x10] sm:$0xff]
    %v2507 = vld [vmem:[%s2503 + $0x18] sm:$0xff]
    %v2508 = vld [vmem:[%s2503 + $0x20] sm:$0xff]
    %v2509 = vld [vmem:[%s2503 + $0x28] sm:$0xff]
    %v2510 = vld [vmem:[%s2503 + $0x30] sm:$0xff]
    %v2512 = vsel %vm98, %v2319, 0
    %v2515 = vsel %vm98, %v2324, 0
    %2517 = vmatprep.subr.mxu0 0.0
    %2518 = vmatpush1.msra.mxu0 %v2504
    %2519 = vmatprep.subr.mxu0 0.0
    %2520 = vmatpush1.msra.mxu0 %v2505
    %2521 = vmatprep.subr.mxu0 0.0
    %2522 = vmatpush1.msra.mxu0 %v2506
    %2523 = vmatprep.subr.mxu0 0.0
    %2524 = vmatpush1.msra.mxu0 %v2507
    %2525 = vmatprep.subr.mxu0 0.0
    %2526 = vmatpush1.msra.mxu0 %v2508
    %2527 = vmatprep.subr.mxu0 0.0
    %2528 = vmatpush1.msra.mxu0 %v2509
    %2529 = vmatprep.subr.mxu0 0.0
    %2530 = vmatpush1.msra.mxu0 %v2510
    %2531 = vmatprep.subr.mxu0 0.0
    %2532 = vmatpush1.msra.mxu0 0.0
    %2533 = vmatprep.subr.mxu0 0.0
    %2534 = vmatpush1.msra.mxu0 0.0
    %2535 = vmatprep.subr.mxu0 0.0
    %2536 = vmatpush1.msra.mxu0 0.0
    %2537 = vmatprep.subr.mxu0 0.0
    %2538 = vmatpush1.msra.mxu0 0.0
    %2539 = vmatprep.subr.mxu0 0.0
    %2540 = vmatpush1.msra.mxu0 0.0
    %2541 = vmatprep.subr.mxu0 0.0
    %2542 = vmatpush1.msra.mxu0 0.0
    %2543 = vmatprep.subr.mxu0 0.0
    %2544 = vmatpush1.msra.mxu0 0.0
    %2545 = vmatprep.subr.mxu0 0.0
    %2546 = vmatpush1.msra.mxu0 0.0
    %2547 = vmatprep.subr.mxu0 0.0
    %2548 = vmatpush1.msra.mxu0 0.0
    %2549 = vmatprep.subr.mxu0 0.0
    %2550 = vmatpush1.msra.mxu0 0.0
    %2551 = vmatprep.subr.mxu0 0.0
    %2552 = vmatpush1.msra.mxu0 0.0
    %2553 = vmatprep.subr.mxu0 0.0
    %2554 = vmatpush1.msra.mxu0 0.0
    %2555 = vmatprep.subr.mxu0 0.0
    %2556 = vmatpush1.msra.mxu0 0.0
    %2557 = vmatprep.subr.mxu0 0.0
    %2558 = vmatpush1.msra.mxu0 0.0
    %2559 = vmatprep.subr.mxu0 0.0
    %2560 = vmatpush1.msra.mxu0 0.0
    %2561 = vmatprep.subr.mxu0 0.0
    %2562 = vmatpush1.msra.mxu0 0.0
    %2563 = vmatprep.subr.mxu0 0.0
    %2564 = vmatpush1.msra.mxu0 0.0
    %2565 = vmatprep.subr.mxu0 0.0
    %2566 = vmatpush1.msra.mxu0 0.0
    %2567 = vmatprep.subr.mxu0 0.0
    %2568 = vmatpush1.msra.mxu0 0.0
    %2569 = vmatprep.subr.mxu0 0.0
    %2570 = vmatpush1.msra.mxu0 0.0
    %2571 = vmatprep.subr.mxu0 0.0
    %2572 = vmatpush1.msra.mxu0 0.0
    %2573 = vmatprep.subr.mxu0 0.0
    %2574 = vmatpush1.msra.mxu0 0.0
    %2575 = vmatprep.subr.mxu0 0.0
    %2576 = vmatpush1.msra.mxu0 0.0
    %2577 = vmatprep.subr.mxu0 0.0
    %2578 = vmatpush1.msra.mxu0 0.0
    %2579 = vmatprep.subr.mxu0 0.0
    %2580 = vmatpush1.msra.mxu0 0.0
    %2581 = vmatprep.mubr.f32.mxu0 0.0
    %2582 = vmatmul.mubr.f32.gmra.mrb[0].mxu0 %v2512
    %v2583 = vpop.f32.mrb[0].mxu0
    %v2584 = vadd.f32 0.0, %v2583
    %v2585 = vpop.f32.mrb[0].mxu0
    %2586 = vmatprep.mubr.f32.mxu0 0.0
    %2587 = vmatmul.mubr.f32.gmra.mrb[0].mxu0 %v2515
    %v2588 = vpop.f32.mrb[0].mxu0
    %v2589 = vadd.f32 0.0, %v2588
    %v2590 = vpop.f32.mrb[0].mxu0
    %2591 = vdwg.mxu0
    %v2592 = vadd.f32 %v2495, %v2584
    %v2593 = vadd.f32 %v2500, %v2589
    %v2594 = vld [vmem:[%s13] sm:$0x1]
    %v2596 = vlaneseq
    %v2597 = vshrl.u32 %v2596, 7
    %v2598 = vsub.s32 0, %v2597
    %v2599 = vrot.slane %v2594, %v2598
    %v2601 = vadd.f32 %v2592, %v2599
    %v2602 = vadd.f32 %v2593, %v2599
    %v2603 = vmax.f32 %v2601, 0.0
    %v2604 = vmax.f32 %v2602, 0.0
    %v2605 = vld [vmem:[%s14] sm:$0x7f]
    %s2606 = scalar_lea.vmem %s14, 8
    %v2607 = vld [vmem:[%s2606] sm:$0x7f]
    %v2608 = vld [vmem:[%s16] sm:$0x7f]
    %s2609 = scalar_lea.vmem %s16, 8
    %v2610 = vld [vmem:[%s2609] sm:$0x7f]
    %v2611 = vld [vmem:[%s15] sm:$0x1]
    %v2612 = vld [vmem:[%s17] sm:$0x7f]
    %v2613 = vmul.f32 %v2603, %v2605
    %vm2614 = vcmask 456704
    %v2615 = vsel %vm2614, %v2613, 0.0
    %2616 = vadd.xlane.f32.xlu0 %v2615
    %v2617 = vpop.xlane.xlu0 %2616
    %vm2618 = vcmask 1046528
    %v2619 = vsel %vm2618, %v2617, 0.0
    %v2620 = vrot.slane %v2619, 4
    %v2621 = vadd.f32 %v2619, %v2620
    %v2622 = vrot.slane %v2621, 2
    %v2623 = vadd.f32 %v2621, %v2622
    %v2624 = vrot.slane %v2623, 1
    %v2625 = vadd.f32 %v2623, %v2624
    %v2626 = vmul.f32 %v2603, %v2607
    %v2627 = vsel %vm2614, %v2626, 0.0
    %2628 = vadd.xlane.f32.xlu0 %v2627
    %v2629 = vpop.xlane.xlu0 %2628
    %v2630 = vsel %vm2618, %v2629, 0.0
    %v2631 = vrot.slane %v2630, 4
    %v2632 = vadd.f32 %v2630, %v2631
    %v2633 = vrot.slane %v2632, 2
    %v2634 = vadd.f32 %v2632, %v2633
    %v2635 = vrot.slane %v2634, 1
    %v2636 = vadd.f32 %v2634, %v2635
    %v2637 = vadd.f32 %v2625, %v2611
    %v2638 = vmax.f32 %v2637, 0.0
    %v2639 = vadd.f32 %v2636, %v2611
    %v2640 = vmax.f32 %v2639, 0.0
    %v2642 = vlaneseq
    %v2643 = vshrl.u32 %v2642, 7
    %v2644 = vsub.s32 0, %v2643
    %v2645 = vrot.slane %v2638, %v2644
    %2646 = vset.pattern.permute.xlu0 0
    %2647 = vperm.xlu0 %2646, %v2645
    %v2648 = vpop.permute.xlu0 %2647
    %v2650 = vmul.f32 %v2648, %v2608
    %v2652 = vlaneseq
    %v2653 = vshrl.u32 %v2652, 7
    %v2654 = vsub.s32 0, %v2653
    %v2655 = vrot.slane %v2640, %v2654
    %2656 = vset.pattern.permute.xlu0 1
    %2657 = vperm.xlu0 %2656, %v2655
    %v2658 = vpop.permute.xlu0 %2657
    %v2660 = vmul.f32 %v2658, %v2610
    %v2661 = vadd.f32 %v2650, %v2660
    %v2662 = vadd.f32 %v2661, %v2612
    %v2663 = vmax.f32 %v2662, 0.0
    %v2665 = vrot.slane %v2605, 1
    %v2667 = vmul.f32 %v2603, %v2665
    %v2668 = vmul.f32 %v2604, %v2665
    %vm2669 = vcmask 457735
    %v2670 = vsel %vm2669, %v2667, 0.0
    %2671 = vadd.xlane.f32.xlu0 %v2670
    %v2672 = vpop.xlane.xlu0 %2671
    %vm2673 = vcmask 455680
    %v2674 = vsel %vm2673, %v2668, 0.0
    %2675 = vadd.xlane.f32.xlu0 %v2674
    %v2676 = vpop.xlane.xlu0 %2675
    %vm2679 = vcmask 1040384
    %v2680 = vrot.slane %v2672, 7
    %v2681 = vrot.slane %v2676, 7
    %v2682 = vsel %vm2679, %v2680, %v2681
    %v2684 = vsel %vm2618, %v2682, 0.0
    %v2685 = vrot.slane %v2684, 4
    %v2686 = vadd.f32 %v2684, %v2685
    %v2687 = vrot.slane %v2686, 2
    %v2688 = vadd.f32 %v2686, %v2687
    %v2689 = vrot.slane %v2688, 1
    %v2690 = vadd.f32 %v2688, %v2689
    %v2692 = vrot.slane %v2607, 1
    %v2694 = vmul.f32 %v2603, %v2692
    %v2695 = vmul.f32 %v2604, %v2692
    %v2696 = vsel %vm2669, %v2694, 0.0
    %2697 = vadd.xlane.f32.xlu0 %v2696
    %v2698 = vpop.xlane.xlu0 %2697
    %v2699 = vsel %vm2673, %v2695, 0.0
    %2700 = vadd.xlane.f32.xlu0 %v2699
    %v2701 = vpop.xlane.xlu0 %2700
    %v2704 = vrot.slane %v2698, 7
    %v2705 = vrot.slane %v2701, 7
    %v2706 = vsel %vm2679, %v2704, %v2705
    %v2708 = vsel %vm2618, %v2706, 0.0
    %v2709 = vrot.slane %v2708, 4
    %v2710 = vadd.f32 %v2708, %v2709
    %v2711 = vrot.slane %v2710, 2
    %v2712 = vadd.f32 %v2710, %v2711
    %v2713 = vrot.slane %v2712, 1
    %v2714 = vadd.f32 %v2712, %v2713
    %v2715 = vadd.f32 %v2690, %v2611
    %v2716 = vmax.f32 %v2715, 0.0
    %v2717 = vadd.f32 %v2714, %v2611
    %v2718 = vmax.f32 %v2717, 0.0
    %v2720 = vlaneseq
    %v2721 = vshrl.u32 %v2720, 7
    %v2722 = vsub.s32 0, %v2721
    %v2723 = vrot.slane %v2716, %v2722
    %2724 = vset.pattern.permute.xlu0 0
    %2725 = vperm.xlu0 %2724, %v2723
    %v2726 = vpop.permute.xlu0 %2725
    %v2728 = vmul.f32 %v2726, %v2608
    %v2730 = vlaneseq
    %v2731 = vshrl.u32 %v2730, 7
    %v2732 = vsub.s32 0, %v2731
    %v2733 = vrot.slane %v2718, %v2732
    %2734 = vset.pattern.permute.xlu0 1
    %2735 = vperm.xlu0 %2734, %v2733
    %v2736 = vpop.permute.xlu0 %2735
    %v2738 = vmul.f32 %v2736, %v2610
    %v2739 = vadd.f32 %v2728, %v2738
    %v2740 = vadd.f32 %v2739, %v2612
    %v2741 = vmax.f32 %v2740, 0.0
    %v2743 = vrot.slane %v2741, 1
    %v2745 = vsel %vm2618, %v2663, %v2743
    %v2746 = vld [vmem:[%s18] sm:$0xff]
    %v2747 = vld [vmem:[%s18 + $0x8] sm:$0xff]
    %v2748 = vld [vmem:[%s18 + $0x10] sm:$0xff]
    %v2749 = vld [vmem:[%s18 + $0x18] sm:$0xff]
    %v2750 = vld [vmem:[%s18 + $0x20] sm:$0xff]
    %v2751 = vld [vmem:[%s18 + $0x28] sm:$0xff]
    %v2752 = vld [vmem:[%s18 + $0x30] sm:$0xff]
    %v2753 = vld [vmem:[%s19] sm:$0x1]
    %v2755 = vlaneseq
    %v2756 = vshrl.u32 %v2755, 7
    %v2757 = vsub.s32 0, %v2756
    %v2758 = vrot.slane %v2753, %v2757
    %v2761 = vsel %vm98, %v2745, 0
    %v2763 = vsel %vm98, %v2743, 0
    %2765 = vmatprep.subr.mxu0 0.0
    %2766 = vmatpush1.msra.mxu0 %v2746
    %2767 = vmatprep.subr.mxu0 0.0
    %2768 = vmatpush1.msra.mxu0 %v2747
    %2769 = vmatprep.subr.mxu0 0.0
    %2770 = vmatpush1.msra.mxu0 %v2748
    %2771 = vmatprep.subr.mxu0 0.0
    %2772 = vmatpush1.msra.mxu0 %v2749
    %2773 = vmatprep.subr.mxu0 0.0
    %2774 = vmatpush1.msra.mxu0 %v2750
    %2775 = vmatprep.subr.mxu0 0.0
    %2776 = vmatpush1.msra.mxu0 %v2751
    %2777 = vmatprep.subr.mxu0 0.0
    %2778 = vmatpush1.msra.mxu0 %v2752
    %2779 = vmatprep.subr.mxu0 0.0
    %2780 = vmatpush1.msra.mxu0 0.0
    %2781 = vmatprep.subr.mxu0 0.0
    %2782 = vmatpush1.msra.mxu0 0.0
    %2783 = vmatprep.subr.mxu0 0.0
    %2784 = vmatpush1.msra.mxu0 0.0
    %2785 = vmatprep.subr.mxu0 0.0
    %2786 = vmatpush1.msra.mxu0 0.0
    %2787 = vmatprep.subr.mxu0 0.0
    %2788 = vmatpush1.msra.mxu0 0.0
    %2789 = vmatprep.subr.mxu0 0.0
    %2790 = vmatpush1.msra.mxu0 0.0
    %2791 = vmatprep.subr.mxu0 0.0
    %2792 = vmatpush1.msra.mxu0 0.0
    %2793 = vmatprep.subr.mxu0 0.0
    %2794 = vmatpush1.msra.mxu0 0.0
    %2795 = vmatprep.subr.mxu0 0.0
    %2796 = vmatpush1.msra.mxu0 0.0
    %2797 = vmatprep.subr.mxu0 0.0
    %2798 = vmatpush1.msra.mxu0 0.0
    %2799 = vmatprep.subr.mxu0 0.0
    %2800 = vmatpush1.msra.mxu0 0.0
    %2801 = vmatprep.subr.mxu0 0.0
    %2802 = vmatpush1.msra.mxu0 0.0
    %2803 = vmatprep.subr.mxu0 0.0
    %2804 = vmatpush1.msra.mxu0 0.0
    %2805 = vmatprep.subr.mxu0 0.0
    %2806 = vmatpush1.msra.mxu0 0.0
    %2807 = vmatprep.subr.mxu0 0.0
    %2808 = vmatpush1.msra.mxu0 0.0
    %2809 = vmatprep.subr.mxu0 0.0
    %2810 = vmatpush1.msra.mxu0 0.0
    %2811 = vmatprep.subr.mxu0 0.0
    %2812 = vmatpush1.msra.mxu0 0.0
    %2813 = vmatprep.subr.mxu0 0.0
    %2814 = vmatpush1.msra.mxu0 0.0
    %2815 = vmatprep.subr.mxu0 0.0
    %2816 = vmatpush1.msra.mxu0 0.0
    %2817 = vmatprep.subr.mxu0 0.0
    %2818 = vmatpush1.msra.mxu0 0.0
    %2819 = vmatprep.subr.mxu0 0.0
    %2820 = vmatpush1.msra.mxu0 0.0
    %2821 = vmatprep.subr.mxu0 0.0
    %2822 = vmatpush1.msra.mxu0 0.0
    %2823 = vmatprep.subr.mxu0 0.0
    %2824 = vmatpush1.msra.mxu0 0.0
    %2825 = vmatprep.subr.mxu0 0.0
    %2826 = vmatpush1.msra.mxu0 0.0
    %2827 = vmatprep.subr.mxu0 0.0
    %2828 = vmatpush1.msra.mxu0 0.0
    %2829 = vmatprep.mubr.f32.mxu0 0.0
    %2830 = vmatmul.mubr.f32.gmra.mrb[0].mxu0 %v2761
    %v2831 = vpop.f32.mrb[0].mxu0
    %v2832 = vadd.f32 %v2758, %v2831
    %v2833 = vpop.f32.mrb[0].mxu0
    %2834 = vmatprep.mubr.f32.mxu0 0.0
    %2835 = vmatmul.mubr.f32.gmra.mrb[0].mxu0 %v2763
    %v2836 = vpop.f32.mrb[0].mxu0
    %v2837 = vadd.f32 %v2758, %v2836
    %v2838 = vpop.f32.mrb[0].mxu0
    %2839 = vdwg.mxu0
    %v2840 = vmax.f32 %v2832, 0.0
    %v2841 = vmax.f32 %v2837, 0.0
    %v2842 = vld [vmem:[%s20] sm:$0xff]
    %v2843 = vld [vmem:[%s20 + $0x8] sm:$0xff]
    %v2844 = vld [vmem:[%s20 + $0x10] sm:$0xff]
    %v2845 = vld [vmem:[%s20 + $0x18] sm:$0xff]
    %v2846 = vld [vmem:[%s20 + $0x20] sm:$0xff]
    %v2847 = vld [vmem:[%s20 + $0x28] sm:$0xff]
    %v2848 = vld [vmem:[%s20 + $0x30] sm:$0xff]
    %v2850 = vsel %vm98, %v2840, 0
    %v2853 = vsel %vm98, %v2841, 0
    %2855 = vmatprep.subr.mxu0 0.0
    %2856 = vmatpush1.msra.mxu0 %v2842
    %2857 = vmatprep.subr.mxu0 0.0
    %2858 = vmatpush1.msra.mxu0 %v2843
    %2859 = vmatprep.subr.mxu0 0.0
    %2860 = vmatpush1.msra.mxu0 %v2844
    %2861 = vmatprep.subr.mxu0 0.0
    %2862 = vmatpush1.msra.mxu0 %v2845
    %2863 = vmatprep.subr.mxu0 0.0
    %2864 = vmatpush1.msra.mxu0 %v2846
    %2865 = vmatprep.subr.mxu0 0.0
    %2866 = vmatpush1.msra.mxu0 %v2847
    %2867 = vmatprep.subr.mxu0 0.0
    %2868 = vmatpush1.msra.mxu0 %v2848
    %2869 = vmatprep.subr.mxu0 0.0
    %2870 = vmatpush1.msra.mxu0 0.0
    %2871 = vmatprep.subr.mxu0 0.0
    %2872 = vmatpush1.msra.mxu0 0.0
    %2873 = vmatprep.subr.mxu0 0.0
    %2874 = vmatpush1.msra.mxu0 0.0
    %2875 = vmatprep.subr.mxu0 0.0
    %2876 = vmatpush1.msra.mxu0 0.0
    %2877 = vmatprep.subr.mxu0 0.0
    %2878 = vmatpush1.msra.mxu0 0.0
    %2879 = vmatprep.subr.mxu0 0.0
    %2880 = vmatpush1.msra.mxu0 0.0
    %2881 = vmatprep.subr.mxu0 0.0
    %2882 = vmatpush1.msra.mxu0 0.0
    %2883 = vmatprep.subr.mxu0 0.0
    %2884 = vmatpush1.msra.mxu0 0.0
    %2885 = vmatprep.subr.mxu0 0.0
    %2886 = vmatpush1.msra.mxu0 0.0
    %2887 = vmatprep.subr.mxu0 0.0
    %2888 = vmatpush1.msra.mxu0 0.0
    %2889 = vmatprep.subr.mxu0 0.0
    %2890 = vmatpush1.msra.mxu0 0.0
    %2891 = vmatprep.subr.mxu0 0.0
    %2892 = vmatpush1.msra.mxu0 0.0
    %2893 = vmatprep.subr.mxu0 0.0
    %2894 = vmatpush1.msra.mxu0 0.0
    %2895 = vmatprep.subr.mxu0 0.0
    %2896 = vmatpush1.msra.mxu0 0.0
    %2897 = vmatprep.subr.mxu0 0.0
    %2898 = vmatpush1.msra.mxu0 0.0
    %2899 = vmatprep.subr.mxu0 0.0
    %2900 = vmatpush1.msra.mxu0 0.0
    %2901 = vmatprep.subr.mxu0 0.0
    %2902 = vmatpush1.msra.mxu0 0.0
    %2903 = vmatprep.subr.mxu0 0.0
    %2904 = vmatpush1.msra.mxu0 0.0
    %2905 = vmatprep.subr.mxu0 0.0
    %2906 = vmatpush1.msra.mxu0 0.0
    %2907 = vmatprep.subr.mxu0 0.0
    %2908 = vmatpush1.msra.mxu0 0.0
    %2909 = vmatprep.subr.mxu0 0.0
    %2910 = vmatpush1.msra.mxu0 0.0
    %2911 = vmatprep.subr.mxu0 0.0
    %2912 = vmatpush1.msra.mxu0 0.0
    %2913 = vmatprep.subr.mxu0 0.0
    %2914 = vmatpush1.msra.mxu0 0.0
    %2915 = vmatprep.subr.mxu0 0.0
    %2916 = vmatpush1.msra.mxu0 0.0
    %2917 = vmatprep.subr.mxu0 0.0
    %2918 = vmatpush1.msra.mxu0 0.0
    %2919 = vmatprep.mubr.f32.mxu0 0.0
    %2920 = vmatmul.mubr.f32.gmra.mrb[0].mxu0 %v2850
    %v2921 = vpop.f32.mrb[0].mxu0
    %v2922 = vadd.f32 0.0, %v2921
    %v2923 = vpop.f32.mrb[0].mxu0
    %2924 = vmatprep.mubr.f32.mxu0 0.0
    %2925 = vmatmul.mubr.f32.gmra.mrb[0].mxu0 %v2853
    %v2926 = vpop.f32.mrb[0].mxu0
    %v2927 = vadd.f32 0.0, %v2926
    %v2928 = vpop.f32.mrb[0].mxu0
    %2929 = vdwg.mxu0
    %s2930 = scalar_lea.vmem %s20, 56
    %v2931 = vld [vmem:[%s2930] sm:$0xff]
    %v2932 = vld [vmem:[%s2930 + $0x8] sm:$0xff]
    %v2933 = vld [vmem:[%s2930 + $0x10] sm:$0xff]
    %v2934 = vld [vmem:[%s2930 + $0x18] sm:$0xff]
    %v2935 = vld [vmem:[%s2930 + $0x20] sm:$0xff]
    %v2936 = vld [vmem:[%s2930 + $0x28] sm:$0xff]
    %v2937 = vld [vmem:[%s2930 + $0x30] sm:$0xff]
    %2938 = vmatprep.subr.mxu0 0.0
    %2939 = vmatpush1.msra.mxu0 %v2931
    %2940 = vmatprep.subr.mxu0 0.0
    %2941 = vmatpush1.msra.mxu0 %v2932
    %2942 = vmatprep.subr.mxu0 0.0
    %2943 = vmatpush1.msra.mxu0 %v2933
    %2944 = vmatprep.subr.mxu0 0.0
    %2945 = vmatpush1.msra.mxu0 %v2934
    %2946 = vmatprep.subr.mxu0 0.0
    %2947 = vmatpush1.msra.mxu0 %v2935
    %2948 = vmatprep.subr.mxu0 0.0
    %2949 = vmatpush1.msra.mxu0 %v2936
    %2950 = vmatprep.subr.mxu0 0.0
    %2951 = vmatpush1.msra.mxu0 %v2937
    %2952 = vmatprep.subr.mxu0 0.0
    %2953 = vmatpush1.msra.mxu0 0.0
    %2954 = vmatprep.subr.mxu0 0.0
    %2955 = vmatpush1.msra.mxu0 0.0
    %2956 = vmatprep.subr.mxu0 0.0
    %2957 = vmatpush1.msra.mxu0 0.0
    %2958 = vmatprep.subr.mxu0 0.0
    %2959 = vmatpush1.msra.mxu0 0.0
    %2960 = vmatprep.subr.mxu0 0.0
    %2961 = vmatpush1.msra.mxu0 0.0
    %2962 = vmatprep.subr.mxu0 0.0
    %2963 = vmatpush1.msra.mxu0 0.0
    %2964 = vmatprep.subr.mxu0 0.0
    %2965 = vmatpush1.msra.mxu0 0.0
    %2966 = vmatprep.subr.mxu0 0.0
    %2967 = vmatpush1.msra.mxu0 0.0
    %2968 = vmatprep.subr.mxu0 0.0
    %2969 = vmatpush1.msra.mxu0 0.0
    %2970 = vmatprep.subr.mxu0 0.0
    %2971 = vmatpush1.msra.mxu0 0.0
    %2972 = vmatprep.subr.mxu0 0.0
    %2973 = vmatpush1.msra.mxu0 0.0
    %2974 = vmatprep.subr.mxu0 0.0
    %2975 = vmatpush1.msra.mxu0 0.0
    %2976 = vmatprep.subr.mxu0 0.0
    %2977 = vmatpush1.msra.mxu0 0.0
    %2978 = vmatprep.subr.mxu0 0.0
    %2979 = vmatpush1.msra.mxu0 0.0
    %2980 = vmatprep.subr.mxu0 0.0
    %2981 = vmatpush1.msra.mxu0 0.0
    %2982 = vmatprep.subr.mxu0 0.0
    %2983 = vmatpush1.msra.mxu0 0.0
    %2984 = vmatprep.subr.mxu0 0.0
    %2985 = vmatpush1.msra.mxu0 0.0
    %2986 = vmatprep.subr.mxu0 0.0
    %2987 = vmatpush1.msra.mxu0 0.0
    %2988 = vmatprep.subr.mxu0 0.0
    %2989 = vmatpush1.msra.mxu0 0.0
    %2990 = vmatprep.subr.mxu0 0.0
    %2991 = vmatpush1.msra.mxu0 0.0
    %2992 = vmatprep.subr.mxu0 0.0
    %2993 = vmatpush1.msra.mxu0 0.0
    %2994 = vmatprep.subr.mxu0 0.0
    %2995 = vmatpush1.msra.mxu0 0.0
    %2996 = vmatprep.subr.mxu0 0.0
    %2997 = vmatpush1.msra.mxu0 0.0
    %2998 = vmatprep.subr.mxu0 0.0
    %2999 = vmatpush1.msra.mxu0 0.0
    %3000 = vmatprep.subr.mxu0 0.0
    %3001 = vmatpush1.msra.mxu0 0.0
    %3002 = vmatprep.mubr.f32.mxu0 0.0
    %3003 = vmatmul.mubr.f32.gmra.mrb[0].mxu0 %v2850
    %v3004 = vpop.f32.mrb[0].mxu0
    %v3005 = vadd.f32 0.0, %v3004
    %v3006 = vpop.f32.mrb[0].mxu0
    %3007 = vmatprep.mubr.f32.mxu0 0.0
    %3008 = vmatmul.mubr.f32.gmra.mrb[0].mxu0 %v2853
    %v3009 = vpop.f32.mrb[0].mxu0
    %v3010 = vadd.f32 0.0, %v3009
    %v3011 = vpop.f32.mrb[0].mxu0
    %3012 = vdwg.mxu0
    %v3013 = vld [vmem:[%s21] sm:$0xff]
    %v3014 = vld [vmem:[%s21 + $0x8] sm:$0xff]
    %v3015 = vld [vmem:[%s21 + $0x10] sm:$0xff]
    %v3016 = vld [vmem:[%s21 + $0x18] sm:$0xf]
    %s3017 = scalar_lea.vmem %s21, 32
    %v3018 = vld [vmem:[%s3017] sm:$0xff]
    %v3019 = vld [vmem:[%s3017 + $0x8] sm:$0xff]
    %v3020 = vld [vmem:[%s3017 + $0x10] sm:$0xff]
    %v3021 = vld [vmem:[%s3017 + $0x18] sm:$0xf]
    %v3023 = vsel %vm2157, %v3018, 0
    %v3026 = vsel %vm2157, %v3019, 0
    %v3029 = vsel %vm2157, %v3020, 0
    %v3032 = vsel %vm2157, %v3021, 0
    %v3035 = vsel %vm2164, %v3010, 0
    %3037 = vmatprep.subr.mxu0 0.0
    %3038 = vmatpush1.msra.mxu0 %v3005
    %3039 = vmatprep.subr.mxu0 0.0
    %3040 = vmatpush1.msra.mxu0 %v3035
    %3041 = vmatprep.subr.mxu0 0.0
    %3042 = vmatpush1.msra.mxu0 0.0
    %3043 = vmatprep.subr.mxu0 0.0
    %3044 = vmatpush1.msra.mxu0 0.0
    %3045 = vmatprep.subr.mxu0 0.0
    %3046 = vmatpush1.msra.mxu0 0.0
    %3047 = vmatprep.subr.mxu0 0.0
    %3048 = vmatpush1.msra.mxu0 0.0
    %3049 = vmatprep.subr.mxu0 0.0
    %3050 = vmatpush1.msra.mxu0 0.0
    %3051 = vmatprep.subr.mxu0 0.0
    %3052 = vmatpush1.msra.mxu0 0.0
    %3053 = vmatprep.subr.mxu0 0.0
    %3054 = vmatpush1.msra.mxu0 0.0
    %3055 = vmatprep.subr.mxu0 0.0
    %3056 = vmatpush1.msra.mxu0 0.0
    %3057 = vmatprep.subr.mxu0 0.0
    %3058 = vmatpush1.msra.mxu0 0.0
    %3059 = vmatprep.subr.mxu0 0.0
    %3060 = vmatpush1.msra.mxu0 0.0
    %3061 = vmatprep.subr.mxu0 0.0
    %3062 = vmatpush1.msra.mxu0 0.0
    %3063 = vmatprep.subr.mxu0 0.0
    %3064 = vmatpush1.msra.mxu0 0.0
    %3065 = vmatprep.subr.mxu0 0.0
    %3066 = vmatpush1.msra.mxu0 0.0
    %3067 = vmatprep.subr.mxu0 0.0
    %3068 = vmatpush1.msra.mxu0 0.0
    %3069 = vmatprep.subr.mxu0 0.0
    %3070 = vmatpush1.msra.mxu0 0.0
    %3071 = vmatprep.subr.mxu0 0.0
    %3072 = vmatpush1.msra.mxu0 0.0
    %3073 = vmatprep.subr.mxu0 0.0
    %3074 = vmatpush1.msra.mxu0 0.0
    %3075 = vmatprep.subr.mxu0 0.0
    %3076 = vmatpush1.msra.mxu0 0.0
    %3077 = vmatprep.subr.mxu0 0.0
    %3078 = vmatpush1.msra.mxu0 0.0
    %3079 = vmatprep.subr.mxu0 0.0
    %3080 = vmatpush1.msra.mxu0 0.0
    %3081 = vmatprep.subr.mxu0 0.0
    %3082 = vmatpush1.msra.mxu0 0.0
    %3083 = vmatprep.subr.mxu0 0.0
    %3084 = vmatpush1.msra.mxu0 0.0
    %3085 = vmatprep.subr.mxu0 0.0
    %3086 = vmatpush1.msra.mxu0 0.0
    %3087 = vmatprep.subr.mxu0 0.0
    %3088 = vmatpush1.msra.mxu0 0.0
    %3089 = vmatprep.subr.mxu0 0.0
    %3090 = vmatpush1.msra.mxu0 0.0
    %3091 = vmatprep.subr.mxu0 0.0
    %3092 = vmatpush1.msra.mxu0 0.0
    %3093 = vmatprep.subr.mxu0 0.0
    %3094 = vmatpush1.msra.mxu0 0.0
    %3095 = vmatprep.subr.mxu0 0.0
    %3096 = vmatpush1.msra.mxu0 0.0
    %3097 = vmatprep.subr.mxu0 0.0
    %3098 = vmatpush1.msra.mxu0 0.0
    %3099 = vmatprep.subr.mxu0 0.0
    %3100 = vmatpush1.msra.mxu0 0.0
    %3101 = vmatprep.mubr.f32.mxu0 0.0
    %3102 = vmatmul.mubr.f32.gmra.mrb[0].mxu0 %v3023
    %v3103 = vpop.f32.mrb[0].mxu0
    %v3104 = vadd.f32 0.0, %v3103
    %v3105 = vpop.f32.mrb[0].mxu0
    %3106 = vmatprep.mubr.f32.mxu0 0.0
    %3107 = vmatmul.mubr.f32.gmra.mrb[0].mxu0 %v3026
    %v3108 = vpop.f32.mrb[0].mxu0
    %v3109 = vadd.f32 0.0, %v3108
    %v3110 = vpop.f32.mrb[0].mxu0
    %3111 = vmatprep.mubr.f32.mxu0 0.0
    %3112 = vmatmul.mubr.f32.gmra.mrb[0].mxu0 %v3029
    %v3113 = vpop.f32.mrb[0].mxu0
    %v3114 = vadd.f32 0.0, %v3113
    %v3115 = vpop.f32.mrb[0].mxu0
    %3116 = vmatprep.mubr.f32.mxu0 0.0
    %3117 = vmatmul.mubr.f32.gmra.mrb[0].mxu0 %v3032
    %v3118 = vpop.f32.mrb[0].mxu0
    %v3119 = vadd.f32 0.0, %v3118
    %v3120 = vpop.f32.mrb[0].mxu0
    %3121 = vdwg.mxu0
    %v3123 = vsel %vm2157, %v3013, 0
    %v3126 = vsel %vm2157, %v3014, 0
    %v3129 = vsel %vm2157, %v3015, 0
    %v3132 = vsel %vm2157, %v3016, 0
    %v3135 = vsel %vm2164, %v2927, 0
    %3137 = vmatprep.subr.mxu0 0.0
    %3138 = vmatpush1.msra.mxu0 %v2922
    %3139 = vmatprep.subr.mxu0 0.0
    %3140 = vmatpush1.msra.mxu0 %v3135
    %3141 = vmatprep.subr.mxu0 0.0
    %3142 = vmatpush1.msra.mxu0 0.0
    %3143 = vmatprep.subr.mxu0 0.0
    %3144 = vmatpush1.msra.mxu0 0.0
    %3145 = vmatprep.subr.mxu0 0.0
    %3146 = vmatpush1.msra.mxu0 0.0
    %3147 = vmatprep.subr.mxu0 0.0
    %3148 = vmatpush1.msra.mxu0 0.0
    %3149 = vmatprep.subr.mxu0 0.0
    %3150 = vmatpush1.msra.mxu0 0.0
    %3151 = vmatprep.subr.mxu0 0.0
    %3152 = vmatpush1.msra.mxu0 0.0
    %3153 = vmatprep.subr.mxu0 0.0
    %3154 = vmatpush1.msra.mxu0 0.0
    %3155 = vmatprep.subr.mxu0 0.0
    %3156 = vmatpush1.msra.mxu0 0.0
    %3157 = vmatprep.subr.mxu0 0.0
    %3158 = vmatpush1.msra.mxu0 0.0
    %3159 = vmatprep.subr.mxu0 0.0
    %3160 = vmatpush1.msra.mxu0 0.0
    %3161 = vmatprep.subr.mxu0 0.0
    %3162 = vmatpush1.msra.mxu0 0.0
    %3163 = vmatprep.subr.mxu0 0.0
    %3164 = vmatpush1.msra.mxu0 0.0
    %3165 = vmatprep.subr.mxu0 0.0
    %3166 = vmatpush1.msra.mxu0 0.0
    %3167 = vmatprep.subr.mxu0 0.0
    %3168 = vmatpush1.msra.mxu0 0.0
    %3169 = vmatprep.subr.mxu0 0.0
    %3170 = vmatpush1.msra.mxu0 0.0
    %3171 = vmatprep.subr.mxu0 0.0
    %3172 = vmatpush1.msra.mxu0 0.0
    %3173 = vmatprep.subr.mxu0 0.0
    %3174 = vmatpush1.msra.mxu0 0.0
    %3175 = vmatprep.subr.mxu0 0.0
    %3176 = vmatpush1.msra.mxu0 0.0
    %3177 = vmatprep.subr.mxu0 0.0
    %3178 = vmatpush1.msra.mxu0 0.0
    %3179 = vmatprep.subr.mxu0 0.0
    %3180 = vmatpush1.msra.mxu0 0.0
    %3181 = vmatprep.subr.mxu0 0.0
    %3182 = vmatpush1.msra.mxu0 0.0
    %3183 = vmatprep.subr.mxu0 0.0
    %3184 = vmatpush1.msra.mxu0 0.0
    %3185 = vmatprep.subr.mxu0 0.0
    %3186 = vmatpush1.msra.mxu0 0.0
    %3187 = vmatprep.subr.mxu0 0.0
    %3188 = vmatpush1.msra.mxu0 0.0
    %3189 = vmatprep.subr.mxu0 0.0
    %3190 = vmatpush1.msra.mxu0 0.0
    %3191 = vmatprep.subr.mxu0 0.0
    %3192 = vmatpush1.msra.mxu0 0.0
    %3193 = vmatprep.subr.mxu0 0.0
    %3194 = vmatpush1.msra.mxu0 0.0
    %3195 = vmatprep.subr.mxu0 0.0
    %3196 = vmatpush1.msra.mxu0 0.0
    %3197 = vmatprep.subr.mxu0 0.0
    %3198 = vmatpush1.msra.mxu0 0.0
    %3199 = vmatprep.subr.mxu0 0.0
    %3200 = vmatpush1.msra.mxu0 0.0
    %3201 = vmatprep.mubr.f32.mxu0 0.0
    %3202 = vmatmul.mubr.f32.gmra.mrb[0].mxu0 %v3123
    %v3203 = vpop.f32.mrb[0].mxu0
    %v3204 = vadd.f32 %v3104, %v3203
    %v3205 = vpop.f32.mrb[0].mxu0
    %3206 = vmatprep.mubr.f32.mxu0 0.0
    %3207 = vmatmul.mubr.f32.gmra.mrb[0].mxu0 %v3126
    %v3208 = vpop.f32.mrb[0].mxu0
    %v3209 = vadd.f32 %v3109, %v3208
    %v3210 = vpop.f32.mrb[0].mxu0
    %3211 = vmatprep.mubr.f32.mxu0 0.0
    %3212 = vmatmul.mubr.f32.gmra.mrb[0].mxu0 %v3129
    %v3213 = vpop.f32.mrb[0].mxu0
    %v3214 = vadd.f32 %v3114, %v3213
    %v3215 = vpop.f32.mrb[0].mxu0
    %3216 = vmatprep.mubr.f32.mxu0 0.0
    %3217 = vmatmul.mubr.f32.gmra.mrb[0].mxu0 %v3132
    %v3218 = vpop.f32.mrb[0].mxu0
    %v3219 = vadd.f32 %v3119, %v3218
    %v3220 = vpop.f32.mrb[0].mxu0
    %3221 = vdwg.mxu0
    %v3222 = vld [vmem:[%s22] sm:$0x1]
    %v3224 = vlaneseq
    %v3225 = vshrl.u32 %v3224, 7
    %v3226 = vsub.s32 0, %v3225
    %v3227 = vrot.slane %v3222, %v3226
    %v3229 = vadd.f32 %v3204, %v3227
    %v3230 = vadd.f32 %v3209, %v3227
    %v3231 = vadd.f32 %v3214, %v3227
    %v3232 = vadd.f32 %v3219, %v3227
    %v3233 = vmax.f32 %v3229, 0.0
    %v3234 = vmax.f32 %v3230, 0.0
    %v3235 = vmax.f32 %v3231, 0.0
    %v3236 = vmax.f32 %v3232, 0.0
    %v3237 = vld [vmem:[%s23] sm:$0xff]
    %v3238 = vld [vmem:[%s23 + $0x8] sm:$0xff]
    %v3239 = vld [vmem:[%s23 + $0x10] sm:$0xff]
    %v3240 = vld [vmem:[%s23 + $0x18] sm:$0xff]
    %v3241 = vld [vmem:[%s23 + $0x20] sm:$0xff]
    %v3242 = vld [vmem:[%s23 + $0x28] sm:$0xff]
    %v3243 = vld [vmem:[%s23 + $0x30] sm:$0xff]
    %v3245 = vsel %vm98, %v3233, 0
    %v3248 = vsel %vm98, %v3234, 0
    %v3251 = vsel %vm98, %v3235, 0
    %v3254 = vsel %vm98, %v3236, 0
    %3256 = vmatprep.subr.mxu0 0.0
    %3257 = vmatpush1.msra.mxu0 %v3237
    %3258 = vmatprep.subr.mxu0 0.0
    %3259 = vmatpush1.msra.mxu0 %v3238
    %3260 = vmatprep.subr.mxu0 0.0
    %3261 = vmatpush1.msra.mxu0 %v3239
    %3262 = vmatprep.subr.mxu0 0.0
    %3263 = vmatpush1.msra.mxu0 %v3240
    %3264 = vmatprep.subr.mxu0 0.0
    %3265 = vmatpush1.msra.mxu0 %v3241
    %3266 = vmatprep.subr.mxu0 0.0
    %3267 = vmatpush1.msra.mxu0 %v3242
    %3268 = vmatprep.subr.mxu0 0.0
    %3269 = vmatpush1.msra.mxu0 %v3243
    %3270 = vmatprep.subr.mxu0 0.0
    %3271 = vmatpush1.msra.mxu0 0.0
    %3272 = vmatprep.subr.mxu0 0.0
    %3273 = vmatpush1.msra.mxu0 0.0
    %3274 = vmatprep.subr.mxu0 0.0
    %3275 = vmatpush1.msra.mxu0 0.0
    %3276 = vmatprep.subr.mxu0 0.0
    %3277 = vmatpush1.msra.mxu0 0.0
    %3278 = vmatprep.subr.mxu0 0.0
    %3279 = vmatpush1.msra.mxu0 0.0
    %3280 = vmatprep.subr.mxu0 0.0
    %3281 = vmatpush1.msra.mxu0 0.0
    %3282 = vmatprep.subr.mxu0 0.0
    %3283 = vmatpush1.msra.mxu0 0.0
    %3284 = vmatprep.subr.mxu0 0.0
    %3285 = vmatpush1.msra.mxu0 0.0
    %3286 = vmatprep.subr.mxu0 0.0
    %3287 = vmatpush1.msra.mxu0 0.0
    %3288 = vmatprep.subr.mxu0 0.0
    %3289 = vmatpush1.msra.mxu0 0.0
    %3290 = vmatprep.subr.mxu0 0.0
    %3291 = vmatpush1.msra.mxu0 0.0
    %3292 = vmatprep.subr.mxu0 0.0
    %3293 = vmatpush1.msra.mxu0 0.0
    %3294 = vmatprep.subr.mxu0 0.0
    %3295 = vmatpush1.msra.mxu0 0.0
    %3296 = vmatprep.subr.mxu0 0.0
    %3297 = vmatpush1.msra.mxu0 0.0
    %3298 = vmatprep.subr.mxu0 0.0
    %3299 = vmatpush1.msra.mxu0 0.0
    %3300 = vmatprep.subr.mxu0 0.0
    %3301 = vmatpush1.msra.mxu0 0.0
    %3302 = vmatprep.subr.mxu0 0.0
    %3303 = vmatpush1.msra.mxu0 0.0
    %3304 = vmatprep.subr.mxu0 0.0
    %3305 = vmatpush1.msra.mxu0 0.0
    %3306 = vmatprep.subr.mxu0 0.0
    %3307 = vmatpush1.msra.mxu0 0.0
    %3308 = vmatprep.subr.mxu0 0.0
    %3309 = vmatpush1.msra.mxu0 0.0
    %3310 = vmatprep.subr.mxu0 0.0
    %3311 = vmatpush1.msra.mxu0 0.0
    %3312 = vmatprep.subr.mxu0 0.0
    %3313 = vmatpush1.msra.mxu0 0.0
    %3314 = vmatprep.subr.mxu0 0.0
    %3315 = vmatpush1.msra.mxu0 0.0
    %3316 = vmatprep.subr.mxu0 0.0
    %3317 = vmatpush1.msra.mxu0 0.0
    %3318 = vmatprep.subr.mxu0 0.0
    %3319 = vmatpush1.msra.mxu0 0.0
    %3320 = vmatprep.mubr.f32.mxu0 0.0
    %3321 = vmatmul.mubr.f32.gmra.mrb[0].mxu0 %v3245
    %v3322 = vpop.f32.mrb[0].mxu0
    %v3323 = vadd.f32 0.0, %v3322
    %v3324 = vpop.f32.mrb[0].mxu0
    %3325 = vmatprep.mubr.f32.mxu0 0.0
    %3326 = vmatmul.mubr.f32.gmra.mrb[0].mxu0 %v3248
    %v3327 = vpop.f32.mrb[0].mxu0
    %v3328 = vadd.f32 0.0, %v3327
    %v3329 = vpop.f32.mrb[0].mxu0
    %3330 = vmatprep.mubr.f32.mxu0 0.0
    %3331 = vmatmul.mubr.f32.gmra.mrb[0].mxu0 %v3251
    %v3332 = vpop.f32.mrb[0].mxu0
    %v3333 = vadd.f32 0.0, %v3332
    %v3334 = vpop.f32.mrb[0].mxu0
    %3335 = vmatprep.mubr.f32.mxu0 0.0
    %3336 = vmatmul.mubr.f32.gmra.mrb[0].mxu0 %v3254
    %v3337 = vpop.f32.mrb[0].mxu0
    %v3338 = vadd.f32 0.0, %v3337
    %v3339 = vpop.f32.mrb[0].mxu0
    %3340 = vdwg.mxu0
    %s3341 = scalar_lea.vmem %s23, 56
    %v3342 = vld [vmem:[%s3341] sm:$0xff]
    %v3343 = vld [vmem:[%s3341 + $0x8] sm:$0xff]
    %v3344 = vld [vmem:[%s3341 + $0x10] sm:$0xff]
    %v3345 = vld [vmem:[%s3341 + $0x18] sm:$0xff]
    %v3346 = vld [vmem:[%s3341 + $0x20] sm:$0xff]
    %v3347 = vld [vmem:[%s3341 + $0x28] sm:$0xff]
    %v3348 = vld [vmem:[%s3341 + $0x30] sm:$0xff]
    %3349 = vmatprep.subr.mxu0 0.0
    %3350 = vmatpush1.msra.mxu0 %v3342
    %3351 = vmatprep.subr.mxu0 0.0
    %3352 = vmatpush1.msra.mxu0 %v3343
    %3353 = vmatprep.subr.mxu0 0.0
    %3354 = vmatpush1.msra.mxu0 %v3344
    %3355 = vmatprep.subr.mxu0 0.0
    %3356 = vmatpush1.msra.mxu0 %v3345
    %3357 = vmatprep.subr.mxu0 0.0
    %3358 = vmatpush1.msra.mxu0 %v3346
    %3359 = vmatprep.subr.mxu0 0.0
    %3360 = vmatpush1.msra.mxu0 %v3347
    %3361 = vmatprep.subr.mxu0 0.0
    %3362 = vmatpush1.msra.mxu0 %v3348
    %3363 = vmatprep.subr.mxu0 0.0
    %3364 = vmatpush1.msra.mxu0 0.0
    %3365 = vmatprep.subr.mxu0 0.0
    %3366 = vmatpush1.msra.mxu0 0.0
    %3367 = vmatprep.subr.mxu0 0.0
    %3368 = vmatpush1.msra.mxu0 0.0
    %3369 = vmatprep.subr.mxu0 0.0
    %3370 = vmatpush1.msra.mxu0 0.0
    %3371 = vmatprep.subr.mxu0 0.0
    %3372 = vmatpush1.msra.mxu0 0.0
    %3373 = vmatprep.subr.mxu0 0.0
    %3374 = vmatpush1.msra.mxu0 0.0
    %3375 = vmatprep.subr.mxu0 0.0
    %3376 = vmatpush1.msra.mxu0 0.0
    %3377 = vmatprep.subr.mxu0 0.0
    %3378 = vmatpush1.msra.mxu0 0.0
    %3379 = vmatprep.subr.mxu0 0.0
    %3380 = vmatpush1.msra.mxu0 0.0
    %3381 = vmatprep.subr.mxu0 0.0
    %3382 = vmatpush1.msra.mxu0 0.0
    %3383 = vmatprep.subr.mxu0 0.0
    %3384 = vmatpush1.msra.mxu0 0.0
    %3385 = vmatprep.subr.mxu0 0.0
    %3386 = vmatpush1.msra.mxu0 0.0
    %3387 = vmatprep.subr.mxu0 0.0
    %3388 = vmatpush1.msra.mxu0 0.0
    %3389 = vmatprep.subr.mxu0 0.0
    %3390 = vmatpush1.msra.mxu0 0.0
    %3391 = vmatprep.subr.mxu0 0.0
    %3392 = vmatpush1.msra.mxu0 0.0
    %3393 = vmatprep.subr.mxu0 0.0
    %3394 = vmatpush1.msra.mxu0 0.0
    %3395 = vmatprep.subr.mxu0 0.0
    %3396 = vmatpush1.msra.mxu0 0.0
    %3397 = vmatprep.subr.mxu0 0.0
    %3398 = vmatpush1.msra.mxu0 0.0
    %3399 = vmatprep.subr.mxu0 0.0
    %3400 = vmatpush1.msra.mxu0 0.0
    %3401 = vmatprep.subr.mxu0 0.0
    %3402 = vmatpush1.msra.mxu0 0.0
    %3403 = vmatprep.subr.mxu0 0.0
    %3404 = vmatpush1.msra.mxu0 0.0
    %3405 = vmatprep.subr.mxu0 0.0
    %3406 = vmatpush1.msra.mxu0 0.0
    %3407 = vmatprep.subr.mxu0 0.0
    %3408 = vmatpush1.msra.mxu0 0.0
    %3409 = vmatprep.subr.mxu0 0.0
    %3410 = vmatpush1.msra.mxu0 0.0
    %3411 = vmatprep.subr.mxu0 0.0
    %3412 = vmatpush1.msra.mxu0 0.0
    %3413 = vmatprep.mubr.f32.mxu0 0.0
    %3414 = vmatmul.mubr.f32.gmra.mrb[0].mxu0 %v3245
    %v3415 = vpop.f32.mrb[0].mxu0
    %v3416 = vadd.f32 0.0, %v3415
    %v3417 = vpop.f32.mrb[0].mxu0
    %3418 = vmatprep.mubr.f32.mxu0 0.0
    %3419 = vmatmul.mubr.f32.gmra.mrb[0].mxu0 %v3248
    %v3420 = vpop.f32.mrb[0].mxu0
    %v3421 = vadd.f32 0.0, %v3420
    %v3422 = vpop.f32.mrb[0].mxu0
    %3423 = vmatprep.mubr.f32.mxu0 0.0
    %3424 = vmatmul.mubr.f32.gmra.mrb[0].mxu0 %v3251
    %v3425 = vpop.f32.mrb[0].mxu0
    %v3426 = vadd.f32 0.0, %v3425
    %v3427 = vpop.f32.mrb[0].mxu0
    %3428 = vmatprep.mubr.f32.mxu0 0.0
    %3429 = vmatmul.mubr.f32.gmra.mrb[0].mxu0 %v3254
    %v3430 = vpop.f32.mrb[0].mxu0
    %v3431 = vadd.f32 0.0, %v3430
    %v3432 = vpop.f32.mrb[0].mxu0
    %3433 = vdwg.mxu0
    %v3434 = vld [vmem:[%s24] sm:$0xff]
    %v3435 = vld [vmem:[%s24 + $0x8] sm:$0xff]
    %v3436 = vld [vmem:[%s24 + $0x10] sm:$0xff]
    %v3437 = vld [vmem:[%s24 + $0x18] sm:$0xff]
    %v3438 = vld [vmem:[%s24 + $0x20] sm:$0xff]
    %v3439 = vld [vmem:[%s24 + $0x28] sm:$0xff]
    %v3440 = vld [vmem:[%s24 + $0x30] sm:$0xff]
    %s3441 = scalar_lea.vmem %s24, 56
    %v3442 = vld [vmem:[%s3441] sm:$0xff]
    %v3443 = vld [vmem:[%s3441 + $0x8] sm:$0xff]
    %v3444 = vld [vmem:[%s3441 + $0x10] sm:$0xff]
    %v3445 = vld [vmem:[%s3441 + $0x18] sm:$0xff]
    %v3446 = vld [vmem:[%s3441 + $0x20] sm:$0xff]
    %v3447 = vld [vmem:[%s3441 + $0x28] sm:$0xff]
    %v3448 = vld [vmem:[%s3441 + $0x30] sm:$0xff]
    %v3450 = vsel %vm358, %v3442, 0
    %v3453 = vsel %vm358, %v3443, 0
    %v3456 = vsel %vm358, %v3444, 0
    %v3459 = vsel %vm358, %v3445, 0
    %v3462 = vsel %vm358, %v3446, 0
    %v3465 = vsel %vm358, %v3447, 0
    %v3468 = vsel %vm358, %v3448, 0
    %v3471 = vsel %vm380, %v3431, 0
    %3473 = vmatprep.subr.mxu0 0.0
    %3474 = vmatpush1.msra.mxu0 %v3416
    %3475 = vmatprep.subr.mxu0 0.0
    %3476 = vmatpush1.msra.mxu0 %v3421
    %3477 = vmatprep.subr.mxu0 0.0
    %3478 = vmatpush1.msra.mxu0 %v3426
    %3479 = vmatprep.subr.mxu0 0.0
    %3480 = vmatpush1.msra.mxu0 %v3471
    %3481 = vmatprep.subr.mxu0 0.0
    %3482 = vmatpush1.msra.mxu0 0.0
    %3483 = vmatprep.subr.mxu0 0.0
    %3484 = vmatpush1.msra.mxu0 0.0
    %3485 = vmatprep.subr.mxu0 0.0
    %3486 = vmatpush1.msra.mxu0 0.0
    %3487 = vmatprep.subr.mxu0 0.0
    %3488 = vmatpush1.msra.mxu0 0.0
    %3489 = vmatprep.subr.mxu0 0.0
    %3490 = vmatpush1.msra.mxu0 0.0
    %3491 = vmatprep.subr.mxu0 0.0
    %3492 = vmatpush1.msra.mxu0 0.0
    %3493 = vmatprep.subr.mxu0 0.0
    %3494 = vmatpush1.msra.mxu0 0.0
    %3495 = vmatprep.subr.mxu0 0.0
    %3496 = vmatpush1.msra.mxu0 0.0
    %3497 = vmatprep.subr.mxu0 0.0
    %3498 = vmatpush1.msra.mxu0 0.0
    %3499 = vmatprep.subr.mxu0 0.0
    %3500 = vmatpush1.msra.mxu0 0.0
    %3501 = vmatprep.subr.mxu0 0.0
    %3502 = vmatpush1.msra.mxu0 0.0
    %3503 = vmatprep.subr.mxu0 0.0
    %3504 = vmatpush1.msra.mxu0 0.0
    %3505 = vmatprep.subr.mxu0 0.0
    %3506 = vmatpush1.msra.mxu0 0.0
    %3507 = vmatprep.subr.mxu0 0.0
    %3508 = vmatpush1.msra.mxu0 0.0
    %3509 = vmatprep.subr.mxu0 0.0
    %3510 = vmatpush1.msra.mxu0 0.0
    %3511 = vmatprep.subr.mxu0 0.0
    %3512 = vmatpush1.msra.mxu0 0.0
    %3513 = vmatprep.subr.mxu0 0.0
    %3514 = vmatpush1.msra.mxu0 0.0
    %3515 = vmatprep.subr.mxu0 0.0
    %3516 = vmatpush1.msra.mxu0 0.0
    %3517 = vmatprep.subr.mxu0 0.0
    %3518 = vmatpush1.msra.mxu0 0.0
    %3519 = vmatprep.subr.mxu0 0.0
    %3520 = vmatpush1.msra.mxu0 0.0
    %3521 = vmatprep.subr.mxu0 0.0
    %3522 = vmatpush1.msra.mxu0 0.0
    %3523 = vmatprep.subr.mxu0 0.0
    %3524 = vmatpush1.msra.mxu0 0.0
    %3525 = vmatprep.subr.mxu0 0.0
    %3526 = vmatpush1.msra.mxu0 0.0
    %3527 = vmatprep.subr.mxu0 0.0
    %3528 = vmatpush1.msra.mxu0 0.0
    %3529 = vmatprep.subr.mxu0 0.0
    %3530 = vmatpush1.msra.mxu0 0.0
    %3531 = vmatprep.subr.mxu0 0.0
    %3532 = vmatpush1.msra.mxu0 0.0
    %3533 = vmatprep.subr.mxu0 0.0
    %3534 = vmatpush1.msra.mxu0 0.0
    %3535 = vmatprep.subr.mxu0 0.0
    %3536 = vmatpush1.msra.mxu0 0.0
    %3537 = vmatprep.mubr.f32.mxu0 0.0
    %3538 = vmatmul.mubr.f32.gmra.mrb[0].mxu0 %v3450
    %v3539 = vpop.f32.mrb[0].mxu0
    %v3540 = vadd.f32 0.0, %v3539
    %v3541 = vpop.f32.mrb[0].mxu0
    %3542 = vmatprep.mubr.f32.mxu0 0.0
    %3543 = vmatmul.mubr.f32.gmra.mrb[0].mxu0 %v3453
    %v3544 = vpop.f32.mrb[0].mxu0
    %v3545 = vadd.f32 0.0, %v3544
    %v3546 = vpop.f32.mrb[0].mxu0
    %3547 = vmatprep.mubr.f32.mxu0 0.0
    %3548 = vmatmul.mubr.f32.gmra.mrb[0].mxu0 %v3456
    %v3549 = vpop.f32.mrb[0].mxu0
    %v3550 = vadd.f32 0.0, %v3549
    %v3551 = vpop.f32.mrb[0].mxu0
    %3552 = vmatprep.mubr.f32.mxu0 0.0
    %3553 = vmatmul.mubr.f32.gmra.mrb[0].mxu0 %v3459
    %v3554 = vpop.f32.mrb[0].mxu0
    %v3555 = vadd.f32 0.0, %v3554
    %v3556 = vpop.f32.mrb[0].mxu0
    %3557 = vmatprep.mubr.f32.mxu0 0.0
    %3558 = vmatmul.mubr.f32.gmra.mrb[0].mxu0 %v3462
    %v3559 = vpop.f32.mrb[0].mxu0
    %v3560 = vadd.f32 0.0, %v3559
    %v3561 = vpop.f32.mrb[0].mxu0
    %3562 = vmatprep.mubr.f32.mxu0 0.0
    %3563 = vmatmul.mubr.f32.gmra.mrb[0].mxu0 %v3465
    %v3564 = vpop.f32.mrb[0].mxu0
    %v3565 = vadd.f32 0.0, %v3564
    %v3566 = vpop.f32.mrb[0].mxu0
    %3567 = vmatprep.mubr.f32.mxu0 0.0
    %3568 = vmatmul.mubr.f32.gmra.mrb[0].mxu0 %v3468
    %v3569 = vpop.f32.mrb[0].mxu0
    %v3570 = vadd.f32 0.0, %v3569
    %v3571 = vpop.f32.mrb[0].mxu0
    %3572 = vdwg.mxu0
    %v3574 = vsel %vm358, %v3434, 0
    %v3577 = vsel %vm358, %v3435, 0
    %v3580 = vsel %vm358, %v3436, 0
    %v3583 = vsel %vm358, %v3437, 0
    %v3586 = vsel %vm358, %v3438, 0
    %v3589 = vsel %vm358, %v3439, 0
    %v3592 = vsel %vm358, %v3440, 0
    %v3595 = vsel %vm380, %v3338, 0
    %3597 = vmatprep.subr.mxu0 0.0
    %3598 = vmatpush1.msra.mxu0 %v3323
    %3599 = vmatprep.subr.mxu0 0.0
    %3600 = vmatpush1.msra.mxu0 %v3328
    %3601 = vmatprep.subr.mxu0 0.0
    %3602 = vmatpush1.msra.mxu0 %v3333
    %3603 = vmatprep.subr.mxu0 0.0
    %3604 = vmatpush1.msra.mxu0 %v3595
    %3605 = vmatprep.subr.mxu0 0.0
    %3606 = vmatpush1.msra.mxu0 0.0
    %3607 = vmatprep.subr.mxu0 0.0
    %3608 = vmatpush1.msra.mxu0 0.0
    %3609 = vmatprep.subr.mxu0 0.0
    %3610 = vmatpush1.msra.mxu0 0.0
    %3611 = vmatprep.subr.mxu0 0.0
    %3612 = vmatpush1.msra.mxu0 0.0
    %3613 = vmatprep.subr.mxu0 0.0
    %3614 = vmatpush1.msra.mxu0 0.0
    %3615 = vmatprep.subr.mxu0 0.0
    %3616 = vmatpush1.msra.mxu0 0.0
    %3617 = vmatprep.subr.mxu0 0.0
    %3618 = vmatpush1.msra.mxu0 0.0
    %3619 = vmatprep.subr.mxu0 0.0
    %3620 = vmatpush1.msra.mxu0 0.0
    %3621 = vmatprep.subr.mxu0 0.0
    %3622 = vmatpush1.msra.mxu0 0.0
    %3623 = vmatprep.subr.mxu0 0.0
    %3624 = vmatpush1.msra.mxu0 0.0
    %3625 = vmatprep.subr.mxu0 0.0
    %3626 = vmatpush1.msra.mxu0 0.0
    %3627 = vmatprep.subr.mxu0 0.0
    %3628 = vmatpush1.msra.mxu0 0.0
    %3629 = vmatprep.subr.mxu0 0.0
    %3630 = vmatpush1.msra.mxu0 0.0
    %3631 = vmatprep.subr.mxu0 0.0
    %3632 = vmatpush1.msra.mxu0 0.0
    %3633 = vmatprep.subr.mxu0 0.0
    %3634 = vmatpush1.msra.mxu0 0.0
    %3635 = vmatprep.subr.mxu0 0.0
    %3636 = vmatpush1.msra.mxu0 0.0
    %3637 = vmatprep.subr.mxu0 0.0
    %3638 = vmatpush1.msra.mxu0 0.0
    %3639 = vmatprep.subr.mxu0 0.0
    %3640 = vmatpush1.msra.mxu0 0.0
    %3641 = vmatprep.subr.mxu0 0.0
    %3642 = vmatpush1.msra.mxu0 0.0
    %3643 = vmatprep.subr.mxu0 0.0
    %3644 = vmatpush1.msra.mxu0 0.0
    %3645 = vmatprep.subr.mxu0 0.0
    %3646 = vmatpush1.msra.mxu0 0.0
    %3647 = vmatprep.subr.mxu0 0.0
    %3648 = vmatpush1.msra.mxu0 0.0
    %3649 = vmatprep.subr.mxu0 0.0
    %3650 = vmatpush1.msra.mxu0 0.0
    %3651 = vmatprep.subr.mxu0 0.0
    %3652 = vmatpush1.msra.mxu0 0.0
    %3653 = vmatprep.subr.mxu0 0.0
    %3654 = vmatpush1.msra.mxu0 0.0
    %3655 = vmatprep.subr.mxu0 0.0
    %3656 = vmatpush1.msra.mxu0 0.0
    %3657 = vmatprep.subr.mxu0 0.0
    %3658 = vmatpush1.msra.mxu0 0.0
    %3659 = vmatprep.subr.mxu0 0.0
    %3660 = vmatpush1.msra.mxu0 0.0
    %3661 = vmatprep.mubr.f32.mxu0 0.0
    %3662 = vmatmul.mubr.f32.gmra.mrb[0].mxu0 %v3574
    %v3663 = vpop.f32.mrb[0].mxu0
    %v3664 = vadd.f32 %v3540, %v3663
    %v3665 = vpop.f32.mrb[0].mxu0
    %3666 = vmatprep.mubr.f32.mxu0 0.0
    %3667 = vmatmul.mubr.f32.gmra.mrb[0].mxu0 %v3577
    %v3668 = vpop.f32.mrb[0].mxu0
    %v3669 = vadd.f32 %v3545, %v3668
    %v3670 = vpop.f32.mrb[0].mxu0
    %3671 = vmatprep.mubr.f32.mxu0 0.0
    %3672 = vmatmul.mubr.f32.gmra.mrb[0].mxu0 %v3580
    %v3673 = vpop.f32.mrb[0].mxu0
    %v3674 = vadd.f32 %v3550, %v3673
    %v3675 = vpop.f32.mrb[0].mxu0
    %3676 = vmatprep.mubr.f32.mxu0 0.0
    %3677 = vmatmul.mubr.f32.gmra.mrb[0].mxu0 %v3583
    %v3678 = vpop.f32.mrb[0].mxu0
    %v3679 = vadd.f32 %v3555, %v3678
    %v3680 = vpop.f32.mrb[0].mxu0
    %3681 = vmatprep.mubr.f32.mxu0 0.0
    %3682 = vmatmul.mubr.f32.gmra.mrb[0].mxu0 %v3586
    %v3683 = vpop.f32.mrb[0].mxu0
    %v3684 = vadd.f32 %v3560, %v3683
    %v3685 = vpop.f32.mrb[0].mxu0
    %3686 = vmatprep.mubr.f32.mxu0 0.0
    %3687 = vmatmul.mubr.f32.gmra.mrb[0].mxu0 %v3589
    %v3688 = vpop.f32.mrb[0].mxu0
    %v3689 = vadd.f32 %v3565, %v3688
    %v3690 = vpop.f32.mrb[0].mxu0
    %3691 = vmatprep.mubr.f32.mxu0 0.0
    %3692 = vmatmul.mubr.f32.gmra.mrb[0].mxu0 %v3592
    %v3693 = vpop.f32.mrb[0].mxu0
    %v3694 = vadd.f32 %v3570, %v3693
    %v3695 = vpop.f32.mrb[0].mxu0
    %3696 = vdwg.mxu0
    %v3697 = vld [vmem:[%s25] sm:$0x1]
    %v3699 = vlaneseq
    %v3700 = vshrl.u32 %v3699, 7
    %v3701 = vsub.s32 0, %v3700
    %v3702 = vrot.slane %v3697, %v3701
    %v3704 = vadd.f32 %v3664, %v3702
    %v3705 = vadd.f32 %v3669, %v3702
    %v3706 = vadd.f32 %v3674, %v3702
    %v3707 = vadd.f32 %v3679, %v3702
    %v3708 = vadd.f32 %v3684, %v3702
    %v3709 = vadd.f32 %v3689, %v3702
    %v3710 = vadd.f32 %v3694, %v3702
    %3711 = vst.msk [vmem:[#allocation2] sm:$0xff] %vm358, %v3704
    %3712 = vst.msk [vmem:[#allocation2 + $0x8] sm:$0xff] %vm358, %v3705
    %3713 = vst.msk [vmem:[#allocation2 + $0x10] sm:$0xff] %vm358, %v3706
    %3714 = vst.msk [vmem:[#allocation2 + $0x18] sm:$0xff] %vm358, %v3707
    %3715 = vst.msk [vmem:[#allocation2 + $0x20] sm:$0xff] %vm358, %v3708
    %3716 = vst.msk [vmem:[#allocation2 + $0x28] sm:$0xff] %vm358, %v3709
    %3717 = vst.msk [vmem:[#allocation2 + $0x30] sm:$0xff] %vm358, %v3710
    // Predicated region
    $region106: #{chan_small_forward.1} parent=1 // pred_check
      _
    $region107: #{chan_small_forward.1} parent=1 // pred_check_branch
      %3719 = sbr.rel (0) target = $region109
    $region108: #{chan_small_forward.1} parent=1 // pred_region
      %s3721 = ssub.s32 896, 896
      %3722 = vsyncadd [#allocation3], %s3721
      %s3723 = sshll.u32 [#allocation2], 4
      %s3724 = int_to_ptr.vmem [resolvable:$true] %s3723
      %3729 = dma.vmem_to_hbm [thread:$0]  %s3724, 896, %s26, [#allocation3], 128, 128, 8
    $region109: #{chan_small_forward.1} parent=1 // pred_fallthru
      _
    // Predicated region
    $region110: #{chan_small_forward.1} parent=1 // pred_check
      _
    $region111: #{chan_small_forward.1} parent=1 // pred_check_branch
      %3731 = sbr.rel (0) target = $region113
    $region112: #{chan_small_forward.1} parent=1 // pred_region
      %3732 = dma.done [#allocation3], 896
    $region113: #{chan_small_forward.1} parent=1 // pred_fallthru
      _
    %3733 = vsyncpa [#allocation3], 1

</llo_original>
